<compile_context>
chip_gen: v6e
topology: v6e:2x2x1
jax: 0.10.0
libtpu: 0.0.40
codegen_flags: <defaults>
</compile_context>

<pallas_src>
import numpy as np
import jax
import jax.numpy as jnp
from jax.experimental import pallas as pl
from jax.experimental.pallas import tpu as pltpu


# -----------------------------------------------------------------------------
# small helpers
# -----------------------------------------------------------------------------
def _pad8(n):
    return ((n + 7) // 8) * 8


def _leaky_relu(a):
    return jnp.where(a >= 0, a, 0.01 * a)      # PyTorch LeakyReLU default slope


# Fused gate-column layout (per LSTM, width 8*Hh):
#   [ i_f | i_b | f_f | f_b | o_f | o_b | g_f | g_b ]   (each block Hh wide)
# -> all sigmoid gates are the leading 6*Hh columns (one sigmoid per step),
#    both tanh "g" gates are the trailing 2*Hh columns (one tanh per step),
#    and i/f/o blocks line up with the concatenated [c_f|c_b] / [h_f|h_b]
#    state vectors, so the cell update needs no lane shuffles at all.
_GATE_ROW = {"i": 0, "f": 1, "g": 2, "o": 3}                    # PyTorch order
_COL_BLOCK = {("i", 0): 0, ("i", 1): 1, ("f", 0): 2, ("f", 1): 3,
              ("o", 0): 4, ("o", 1): 5, ("g", 0): 6, ("g", 1): 7}


def _reorder_dir(w, Hh, d):
    """[4Hh, In] PyTorch (i,f,g,o) weight -> [In, 8Hh] in the fused layout,
    with only direction d's column blocks filled (others zero)."""
    w = np.asarray(w)
    In = w.shape[1]
    out = np.zeros((In, 8 * Hh), np.float32)
    for gate in ("i", "f", "g", "o"):
        r = _GATE_ROW[gate]
        cb = _COL_BLOCK[(gate, d)]
        out[:, cb * Hh:(cb + 1) * Hh] = w[r * Hh:(r + 1) * Hh, :].T
    return out


def _reorder_bias(bih, bhh, Hh, d):
    b = np.asarray(bih) + np.asarray(bhh)
    out = np.zeros((8 * Hh,), np.float32)
    for gate in ("i", "f", "g", "o"):
        r = _GATE_ROW[gate]
        cb = _COL_BLOCK[(gate, d)]
        out[cb * Hh:(cb + 1) * Hh] = b[r * Hh:(r + 1) * Hh]
    return out


def _layout(D, H, Hs, classes):
    """Row/column offsets of the packed parameter slabs (8-row aligned)."""
    H2, Hs2 = 2 * H, 2 * Hs
    hid1, hid2 = 120, 80
    lay = {"hid1": hid1, "hid2": hid2}
    # pack A: main LSTM, width 8H
    lay["A_wx"] = 0
    lay["A_whh"] = _pad8(2 * D)
    lay["A_b"] = _pad8(lay["A_whh"] + H2)
    lay["A_h0"] = _pad8(lay["A_b"] + 1)
    lay["A_c0"] = _pad8(lay["A_h0"] + 1)
    lay["A_rows"] = _pad8(lay["A_c0"] + 1)
    lay["A_cols"] = 8 * H
    # pack B: segment LSTM, width 16Hs (fwd x-proj | bwd x-proj)
    lay["B_wx"] = 0
    lay["B_whh"] = _pad8(H2)
    lay["B_b"] = _pad8(lay["B_whh"] + Hs2)
    lay["B_h0"] = _pad8(lay["B_b"] + 1)
    lay["B_c0"] = _pad8(lay["B_h0"] + 1)
    lay["B_rows"] = _pad8(lay["B_c0"] + 1)
    lay["B_cols"] = 16 * Hs
    # pack M: ClassPredictor MLP, width 128
    lay["M_w1"] = 0
    lay["M_b1"] = _pad8(Hs2)
    lay["M_w2"] = _pad8(lay["M_b1"] + 1)
    lay["M_b2"] = _pad8(lay["M_w2"] + hid1)
    lay["M_w3"] = _pad8(lay["M_b2"] + 1)
    lay["M_b3"] = _pad8(lay["M_w3"] + hid2)
    lay["M_rows"] = _pad8(lay["M_b3"] + 1)
    lay["M_cols"] = 128
    assert hid1 <= lay["M_cols"] and classes <= lay["M_cols"]
    return lay


# -----------------------------------------------------------------------------
# The single fused kernel
# -----------------------------------------------------------------------------
def make_fused_kernel(T, D, H, Hs, n_seg, classes, lay):
    H2, H6, H8 = 2 * H, 6 * H, 8 * H
    Hs2, Hs6, Hs8 = 2 * Hs, 6 * Hs, 8 * Hs
    hid1, hid2 = lay["hid1"], lay["hid2"]
    f32 = jnp.float32

    def kernel(seg_ref,                                     # SMEM [n_seg+1] i32
               x_ref, pA_ref, pB_ref, sel_ref, pM_ref,      # packed VMEM inputs
               o_ref):
        # ---------------- unpack main-LSTM parameter slab -------------------
        pA = pA_ref[...]
        wx_main = pA[lay["A_wx"]:lay["A_wx"] + 2 * D, :]          # [2D, 8H]
        whh_main = pA[lay["A_whh"]:lay["A_whh"] + H2, :]          # [2H, 8H]
        b_main = pA[lay["A_b"]:lay["A_b"] + 1, :]                 # [1, 8H]
        h = pA[lay["A_h0"]:lay["A_h0"] + 1, 0:H2]                 # [1, 2H]
        c = pA[lay["A_c0"]:lay["A_c0"] + 1, 0:H2]                 # [1, 2H]

        # ------ hoisted fwd+bwd input projection (ONE pipelined MXU op) -----
        # x_ref[t] = [x[t] | x[T-1-t]]  ->  gx[t] holds both directions' gate
        # input contributions (biases folded in).
        gx = jnp.dot(x_ref[...], wx_main, preferred_element_type=f32) + b_main

        # --------- main bi-LSTM recurrence (fully unrolled; T small) --------
        h_steps = []
        for t in range(T):
            g = jnp.dot(h, whh_main, preferred_element_type=f32) + gx[t:t + 1, :]
            sg = jax.nn.sigmoid(g[:, 0:H6])          # [i_f i_b f_f f_b o_f o_b]
            gg = jnp.tanh(g[:, H6:H8])               # [g_f g_b]
            c = sg[:, H2:2 * H2] * c + sg[:, 0:H2] * gg
            h = sg[:, 2 * H2:3 * H2] * jnp.tanh(c)
            h_steps.append(h)                        # [1, 2H] = [h_f | h_b]

        # out_main[t] = [h_fwd(time t) | h_bwd(time t)]   (built once)
        fwd = jnp.concatenate([h_steps[t][:, 0:H] for t in range(T)], axis=0)
        bwd = jnp.concatenate([h_steps[T - 1 - t][:, H:H2] for t in range(T)],
                              axis=0)
        out_main = jnp.concatenate([fwd, bwd], axis=1)            # [T, 2H]

        # ---------------- unpack segment-LSTM parameter slab ----------------
        pB = pB_ref[...]
        wx_seg = pB[lay["B_wx"]:lay["B_wx"] + H2, :]              # [2H, 16Hs]
        whh_seg = pB[lay["B_whh"]:lay["B_whh"] + Hs2, 0:Hs8]      # [2Hs, 8Hs]
        b_seg = pB[lay["B_b"]:lay["B_b"] + 1, 0:Hs8]              # [1, 8Hs]
        hs = jnp.broadcast_to(pB[lay["B_h0"]:lay["B_h0"] + 1, 0:Hs2],
                              (n_seg, Hs2))
        cs = jnp.broadcast_to(pB[lay["B_c0"]:lay["B_c0"] + 1, 0:Hs2],
                              (n_seg, Hs2))

        # ---- hoisted segment input projection + one-hot gather (MXU) -------
        px = jnp.dot(out_main, wx_seg, preferred_element_type=f32)  # [T, 16Hs]
        px_stack = jnp.concatenate([px[:, 0:Hs8], px[:, Hs8:2 * Hs8]],
                                   axis=0)                          # [2T, 8Hs]
        # sel = [S_f | S_b] one-hot rows (t-major, n_seg per step); biases
        # folded in so the per-step input is a free static slice of gin.
        gin = (jnp.dot(sel_ref[...], px_stack, preferred_element_type=f32)
               + b_seg)                                             # [T*n_seg, 8Hs]

        # per-row segment lengths from SMEM scalars (hoisted out of the loop)
        row_ids = jax.lax.broadcasted_iota(jnp.int32, (n_seg, 1), 0)
        len_col = jnp.zeros((n_seg, 1), jnp.int32)
        for i in range(n_seg):
            len_col = jnp.where(row_ids == i, seg_ref[i + 1] - seg_ref[i],
                                len_col)

        # ----- segment recurrence, all segments batched as matmul rows ------
        # Steps past a segment's end use clamped in-segment inputs and are
        # masked out of the running max (adaptive_max_pool1d(1) fold-in).
        feat = jnp.full((n_seg, Hs2), -jnp.inf, dtype=f32)
        for t in range(T):
            g = (jnp.dot(hs, whh_seg, preferred_element_type=f32)
                 + gin[t * n_seg:(t + 1) * n_seg, :])
            sg = jax.nn.sigmoid(g[:, 0:Hs6])
            gg = jnp.tanh(g[:, Hs6:Hs8])
            cs = sg[:, Hs2:2 * Hs2] * cs + sg[:, 0:Hs2] * gg
            hs = sg[:, 2 * Hs2:3 * Hs2] * jnp.tanh(cs)
            feat = jnp.where(t < len_col, jnp.maximum(feat, hs), feat)

        # -------------------- ClassPredictor MLP epilogue -------------------
        # (Dropout layers are identity at inference.)
        pM = pM_ref[...]
        w1 = pM[lay["M_w1"]:lay["M_w1"] + Hs2, 0:hid1]
        b1 = pM[lay["M_b1"]:lay["M_b1"] + 1, 0:hid1]
        w2 = pM[lay["M_w2"]:lay["M_w2"] + hid1, 0:hid2]
        b2 = pM[lay["M_b2"]:lay["M_b2"] + 1, 0:hid2]
        w3 = pM[lay["M_w3"]:lay["M_w3"] + hid2, 0:classes]
        b3 = pM[lay["M_b3"]:lay["M_b3"] + 1, 0:classes]
        a1 = _leaky_relu(jnp.dot(feat, w1, preferred_element_type=f32) + b1)
        a2 = _leaky_relu(jnp.dot(a1, w2, preferred_element_type=f32) + b2)
        o_ref[...] = jnp.dot(a2, w3, preferred_element_type=f32) + b3

    return kernel


# -----------------------------------------------------------------------------
# pallas_call wrapper
# -----------------------------------------------------------------------------
def fused_forward(x_pair, seg_bounds, sel, packed):
    meta = packed["meta"]
    D, H, Hs, classes, lay = (meta["D"], meta["H"], meta["Hs"],
                              meta["classes"], meta["lay"])
    T = x_pair.shape[0]
    n_seg = seg_bounds.shape[0] - 1
    assert x_pair.shape[1] == 2 * D
    assert sel.shape == (T * n_seg, 2 * T)

    tensor_inputs = [x_pair, packed["packA"], packed["packB"], sel,
                     packed["packM"]]
    # Every block equals the full (tiny) array -> everything resident in VMEM.
    in_specs = [pl.BlockSpec(a.shape, lambda i, sb: (0, 0))
                for a in tensor_inputs]

    grid_spec = pltpu.PrefetchScalarGridSpec(
        num_scalar_prefetch=1,               # seg_bounds -> SMEM scalars
        grid=(1,),
        in_specs=in_specs,
        out_specs=pl.BlockSpec((n_seg, classes), lambda i, sb: (0, 0)),
    )
    return pl.pallas_call(
        make_fused_kernel(T, D, H, Hs, n_seg, classes, lay),
        out_shape=jax.ShapeDtypeStruct((n_seg, classes), jnp.float32),
        grid_spec=grid_spec,
        compiler_params=pltpu.CompilerParams(
            dimension_semantics=("arbitrary",)),
    )(seg_bounds, *tensor_inputs)


def build_selection(seg_bounds, T, n_seg):
    """One-hot row-selection matrices for the segment LSTM's fwd/bwd inputs.

    Returns [T*n_seg, 2T] float32, row r = t*n_seg + i:
      cols [0:T)   one-hot at min(start_i + t, end_i - 1)   (fwd input row)
      cols [T:2T)  one-hot at max(end_i - 1 - t, start_i)   (bwd input row)
    Pure index prep (layout plumbing); the gather itself runs on the MXU.
    """
    t_idx = jnp.arange(T, dtype=jnp.int32).reshape(T, 1, 1)
    j_idx = jnp.arange(T, dtype=jnp.int32).reshape(1, 1, T)
    starts = seg_bounds[:-1].reshape(1, n_seg, 1)
    ends = seg_bounds[1:].reshape(1, n_seg, 1)
    idx_f = jnp.minimum(starts + t_idx, ends - 1)
    idx_b = jnp.maximum(ends - 1 - t_idx, starts)
    s_f = (j_idx == idx_f).astype(jnp.float32).reshape(T * n_seg, T)
    s_b = (j_idx == idx_b).astype(jnp.float32).reshape(T * n_seg, T)
    return jnp.concatenate([s_f, s_b], axis=1)


def forward(x, segment_indices, labels, packed):
    """Mirrors new_model.forward (inference).  batch_size must be 1 — the
    original module's squeeze()-based feature stacking requires it."""
    assert x.shape[0] == 1, "new_model's squeeze() semantics require batch == 1"
    seg_np = np.asarray(segment_indices)
    # Correctness guards: segments must be non-empty, increasing and in-range
    # (the in-kernel/selection gather is undefined otherwise).
    assert np.all(np.diff(seg_np) >= 1), "segments must be non-empty/increasing"
    assert seg_np[0] >= 0 and seg_np[-1] <= x.shape[1], "segment bounds OOB"

    x_tm = jnp.asarray(x, jnp.float32)[0]                      # [T, D]
    T = x_tm.shape[0]
    seg_bounds = jnp.asarray(seg_np, jnp.int32)                # [n_seg + 1]
    n_seg = seg_bounds.shape[0] - 1

    # Layout plumbing (no model compute):  x_pair[t] = [x[t] | x[T-1-t]] so one
    # fused matmul produces both directions' input-gate projections.
    x_pair = jnp.concatenate([x_tm, x_tm[::-1]], axis=1)       # [T, 2D]
    sel = build_selection(seg_bounds, T, n_seg)                # [T*n_seg, 2T]

    logits = fused_forward(x_pair, seg_bounds, sel, packed)    # [n_seg, classes]
    concat_labels = jnp.take(jnp.asarray(labels, jnp.int32), seg_bounds[:-1])
    return logits, concat_labels


# -----------------------------------------------------------------------------
# Parameter construction (deterministic, PyTorch-style inits) + packing
# -----------------------------------------------------------------------------
def orthogonal(key, shape):
    flat = (shape[0], int(np.prod(shape[1:])))
    w = jax.nn.initializers.orthogonal()(key, flat, jnp.float32)
    return w.reshape(shape)


def init_lstm_raw(key, input_size, hidden):
    """Per-direction PyTorch-style LSTM params (gate row order i,f,g,o)."""
    bound = 1.0 / np.sqrt(hidden)
    dirs = []
    for _ in range(2):                      # forward, backward
        key, k1, k2, k3, k4 = jax.random.split(key, 5)
        dirs.append({
            "wih": jax.random.uniform(k1, (4 * hidden, input_size),
                                      minval=-bound, maxval=bound,
                                      dtype=jnp.float32),
            "whh": jax.random.uniform(k2, (4 * hidden, hidden),
                                      minval=-bound, maxval=bound,
                                      dtype=jnp.float32),
            "bih": jax.random.uniform(k3, (4 * hidden,), minval=-bound,
                                      maxval=bound, dtype=jnp.float32),
            "bhh": jax.random.uniform(k4, (4 * hidden,), minval=-bound,
                                      maxval=bound, dtype=jnp.float32),
        })
    return dirs, key


def init_raw_params(key, D, H, Hs, classes, B):
    raw = {}
    raw["main"], key = init_lstm_raw(key, D, H)
    raw["seg"], key = init_lstm_raw(key, 2 * H, Hs)
    hid1, hid2 = 120, 80
    key, k1, k2, k3, kb1, kb2, kb3 = jax.random.split(key, 7)
    raw["w1"] = orthogonal(k1, (hid1, 2 * Hs)).T            # [2Hs, 120]
    raw["w2"] = orthogonal(k2, (hid2, hid1)).T              # [120, 80]
    raw["w3"] = orthogonal(k3, (classes, hid2)).T           # [80, classes]
    for name, kk, fan_in, fan_out in (("b1", kb1, 2 * Hs, hid1),
                                      ("b2", kb2, hid1, hid2),
                                      ("b3", kb3, hid2, classes)):
        bnd = 1.0 / np.sqrt(fan_in)
        raw[name] = jax.random.uniform(kk, (1, fan_out), minval=-bnd,
                                       maxval=bnd, dtype=jnp.float32)
    key, k1, k2, k3, k4 = jax.random.split(key, 5)
    raw["h0"] = orthogonal(k1, (2, B, H))[:, 0, :]           # [2, H]
    raw["c0"] = orthogonal(k2, (2, B, H))[:, 0, :]
    raw["sh0"] = orthogonal(k3, (2, B, Hs))[:, 0, :]         # [2, Hs]
    raw["sc0"] = orthogonal(k4, (2, B, Hs))[:, 0, :]
    return raw, key


def pack_params(raw, D, H, Hs, classes):
    """One-time packing of all parameters into 3 contiguous VMEM slabs."""
    lay = _layout(D, H, Hs, classes)
    H2, Hs2, Hs8 = 2 * H, 2 * Hs, 8 * Hs
    hid1, hid2 = lay["hid1"], lay["hid2"]

    # Reordered per-direction weights (fused gate-column layout).
    wxf_m = _reorder_dir(raw["main"][0]["wih"], H, 0)        # [D, 8H]
    wxb_m = _reorder_dir(raw["main"][1]["wih"], H, 1)
    whhf_m = _reorder_dir(raw["main"][0]["whh"], H, 0)       # [H, 8H]
    whhb_m = _reorder_dir(raw["main"][1]["whh"], H, 1)
    bias_m = (_reorder_bias(raw["main"][0]["bih"], raw["main"][0]["bhh"], H, 0)
              + _reorder_bias(raw["main"][1]["bih"], raw["main"][1]["bhh"], H, 1))

    wxf_s = _reorder_dir(raw["seg"][0]["wih"], Hs, 0)        # [2H, 8Hs]
    wxb_s = _reorder_dir(raw["seg"][1]["wih"], Hs, 1)
    whhf_s = _reorder_dir(raw["seg"][0]["whh"], Hs, 0)       # [Hs, 8Hs]
    whhb_s = _reorder_dir(raw["seg"][1]["whh"], Hs, 1)
    bias_s = (_reorder_bias(raw["seg"][0]["bih"], raw["seg"][0]["bhh"], Hs, 0)
              + _reorder_bias(raw["seg"][1]["bih"], raw["seg"][1]["bhh"], Hs, 1))

    packA = np.zeros((lay["A_rows"], lay["A_cols"]), np.float32)
    packA[lay["A_wx"]:lay["A_wx"] + D] = wxf_m
    packA[lay["A_wx"] + D:lay["A_wx"] + 2 * D] = wxb_m
    packA[lay["A_whh"]:lay["A_whh"] + H] = whhf_m
    packA[lay["A_whh"] + H:lay["A_whh"] + H2] = whhb_m
    packA[lay["A_b"]] = bias_m
    packA[lay["A_h0"], 0:H2] = np.concatenate(
        [np.asarray(raw["h0"][0]), np.asarray(raw["h0"][1])])
    packA[lay["A_c0"], 0:H2] = np.concatenate(
        [np.asarray(raw["c0"][0]), np.asarray(raw["c0"][1])])

    packB = np.zeros((lay["B_rows"], lay["B_cols"]), np.float32)
    packB[lay["B_wx"]:lay["B_wx"] + H2, 0:Hs8] = wxf_s
    packB[lay["B_wx"]:lay["B_wx"] + H2, Hs8:2 * Hs8] = wxb_s
    packB[lay["B_whh"]:lay["B_whh"] + Hs, 0:Hs8] = whhf_s
    packB[lay["B_whh"] + Hs:lay["B_whh"] + Hs2, 0:Hs8] = whhb_s
    packB[lay["B_b"], 0:Hs8] = bias_s
    packB[lay["B_h0"], 0:Hs2] = np.concatenate(
        [np.asarray(raw["sh0"][0]), np.asarray(raw["sh0"][1])])
    packB[lay["B_c0"], 0:Hs2] = np.concatenate(
        [np.asarray(raw["sc0"][0]), np.asarray(raw["sc0"][1])])

    packM = np.zeros((lay["M_rows"], lay["M_cols"]), np.float32)
    packM[lay["M_w1"]:lay["M_w1"] + Hs2, 0:hid1] = np.asarray(raw["w1"])
    packM[lay["M_b1"], 0:hid1] = np.asarray(raw["b1"]).reshape(-1)
    packM[lay["M_w2"]:lay["M_w2"] + hid1, 0:hid2] = np.asarray(raw["w2"])
    packM[lay["M_b2"], 0:hid2] = np.asarray(raw["b2"]).reshape(-1)
    packM[lay["M_w3"]:lay["M_w3"] + hid2, 0:classes] = np.asarray(raw["w3"])
    packM[lay["M_b3"], 0:classes] = np.asarray(raw["b3"]).reshape(-1)

    return {
        "packA": jnp.asarray(packA),
        "packB": jnp.asarray(packB),
        "packM": jnp.asarray(packM),
        "meta": {"D": D, "H": H, "Hs": Hs, "classes": classes, "lay": lay},
    }


# -----------------------------------------------------------------------------
# Pure-JAX reference (independent math, standard i/f/g/o formulation)
# -----------------------------------------------------------------------------
def reference_forward(x_tm, seg_bounds, raw, H, Hs):
    HI = jax.lax.Precision.HIGHEST

    def run_dir(seq, p, Hh, h0, c0):
        h = h0.reshape(1, Hh)
        c = c0.reshape(1, Hh)
        wih_t, whh_t = p["wih"].T, p["whh"].T
        b = (p["bih"] + p["bhh"]).reshape(1, 4 * Hh)
        outs = []
        for t in range(seq.shape[0]):
            g = (jnp.dot(seq[t:t + 1], wih_t, precision=HI)
                 + jnp.dot(h, whh_t, precision=HI) + b)
            i = jax.nn.sigmoid(g[:, 0:Hh])
            f = jax.nn.sigmoid(g[:, Hh:2 * Hh])
            gg = jnp.tanh(g[:, 2 * Hh:3 * Hh])
            o = jax.nn.sigmoid(g[:, 3 * Hh:4 * Hh])
            c = f * c + i * gg
            h = o * jnp.tanh(c)
            outs.append(h)
        return jnp.concatenate(outs, axis=0)

    def bilstm(seq, dirs, h0, c0, Hh):
        of = run_dir(seq, dirs[0], Hh, h0[0], c0[0])
        ob = run_dir(seq[::-1], dirs[1], Hh, h0[1], c0[1])[::-1]
        return jnp.concatenate([of, ob], axis=1)

    out_main = bilstm(x_tm, raw["main"], raw["h0"], raw["c0"], H)
    feats = []
    for i in range(len(seg_bounds) - 1):
        s, e = int(seg_bounds[i]), int(seg_bounds[i + 1])
        seg_out = bilstm(out_main[s:e], raw["seg"], raw["sh0"], raw["sc0"], Hs)
        feats.append(jnp.max(seg_out, axis=0, keepdims=True))
    features = jnp.concatenate(feats, axis=0)
    a1 = _leaky_relu(jnp.dot(features, raw["w1"], precision=HI) + raw["b1"])
    a2 = _leaky_relu(jnp.dot(a1, raw["w2"], precision=HI) + raw["b2"])
    return jnp.dot(a2, raw["w3"], precision=HI) + raw["b3"]


# -----------------------------------------------------------------------------
# Harness
# -----------------------------------------------------------------------------
if __name__ == "__main__":
    input_dim, hidden_dim, segment_hidden_dim, n_layers, classes = 16, 32, 16, 1, 5
    assert n_layers == 1          # fused kernel supports single-layer bi-LSTMs
    B, T = 1, 8
    key = jax.random.PRNGKey(0)

    key, kx = jax.random.split(key)
    x = jax.random.normal(kx, (B, T, input_dim), dtype=jnp.float32)
    segment_indices = np.array([0, 3, 6, 8], dtype=np.int32)
    labels = (np.arange(T) % classes).astype(np.int32)

    raw, key = init_raw_params(key, input_dim, hidden_dim, segment_hidden_dim,
                               classes, B)
    packed = pack_params(raw, input_dim, hidden_dim, segment_hidden_dim, classes)

    logits, seg_labels = forward(x, segment_indices, labels, packed)
    jax.block_until_ready(logits)
    jax.block_until_ready(seg_labels)
    assert logits.shape == (len(segment_indices) - 1, classes)
    assert seg_labels.shape == (len(segment_indices) - 1,)

    # Loose numerical sanity check against an independent pure-JAX reference.
    ref_logits = reference_forward(jnp.asarray(x, jnp.float32)[0],
                                   segment_indices, raw,
                                   hidden_dim, segment_hidden_dim)
    np.testing.assert_allclose(np.asarray(logits), np.asarray(ref_logits),
                               rtol=5e-2, atol=5e-2)

    print("KERNEL_OK")
</pallas_src>

<mosaic_0001>
module attributes {stable_mosaic.version = 11 : i64} {
  func.func @kernel(%arg0: i32, %arg1: memref<4xi32, #tpu.memory_space<smem>>, %arg2: memref<8x32xf32, #tpu.memory_space<vmem>>, %arg3: memref<120x256xf32, #tpu.memory_space<vmem>>, %arg4: memref<120x256xf32, #tpu.memory_space<vmem>>, %arg5: memref<24x16xf32, #tpu.memory_space<vmem>>, %arg6: memref<256x128xf32, #tpu.memory_space<vmem>>, %arg7: memref<3x5xf32, #tpu.memory_space<vmem>>) attributes {dimension_semantics = [#tpu.dimension_semantics<arbitrary>], iteration_bounds = array<i64: 1>, scalar_prefetch = 1 : i64, scratch_operands = 0 : i64, tpu.core_type = #tpu.core_type<tc>, window_params = [{pipeline_mode = #tpu.pipeline_mode<synchronous>, transform_indices = @transform_0, window_bounds = array<i64: 8, 32>}, {pipeline_mode = #tpu.pipeline_mode<synchronous>, transform_indices = @transform_1, window_bounds = array<i64: 120, 256>}, {pipeline_mode = #tpu.pipeline_mode<synchronous>, transform_indices = @transform_2, window_bounds = array<i64: 120, 256>}, {pipeline_mode = #tpu.pipeline_mode<synchronous>, transform_indices = @transform_3, window_bounds = array<i64: 24, 16>}, {pipeline_mode = #tpu.pipeline_mode<synchronous>, transform_indices = @transform_4, window_bounds = array<i64: 256, 128>}, {pipeline_mode = #tpu.pipeline_mode<synchronous>, transform_indices = @transform_5, window_bounds = array<i64: 3, 5>}]} {
    %c0 = arith.constant 0 : index
    %c0_0 = arith.constant 0 : index
    %0 = vector.load %arg3[%c0, %c0_0] : memref<120x256xf32, #tpu.memory_space<vmem>>, vector<120x256xf32>
    %1 = vector.extract_strided_slice %0 {offsets = [0, 0], sizes = [32, 256], strides = [1, 1]} : vector<120x256xf32> to vector<32x256xf32>
    %2 = vector.extract_strided_slice %0 {offsets = [32, 0], sizes = [64, 256], strides = [1, 1]} : vector<120x256xf32> to vector<64x256xf32>
    %3 = vector.extract_strided_slice %0 {offsets = [96, 0], sizes = [1, 256], strides = [1, 1]} : vector<120x256xf32> to vector<1x256xf32>
    %4 = vector.extract_strided_slice %0 {offsets = [104, 0], sizes = [1, 64], strides = [1, 1]} : vector<120x256xf32> to vector<1x64xf32>
    %5 = vector.extract_strided_slice %0 {offsets = [112, 0], sizes = [1, 64], strides = [1, 1]} : vector<120x256xf32> to vector<1x64xf32>
    %c0_1 = arith.constant 0 : index
    %c0_2 = arith.constant 0 : index
    %6 = vector.load %arg2[%c0_1, %c0_2] : memref<8x32xf32, #tpu.memory_space<vmem>>, vector<8x32xf32>
    %cst = arith.constant dense<0.000000e+00> : vector<8x256xf32>
    %7 = tpu.matmul %6, %1, %cst {dimension_numbers = #tpu.dot_dimension_numbers<[1], [0], [0], [1], [0, 0, 1, 1], [], []>} : vector<8x32xf32>, vector<32x256xf32>, vector<8x256xf32> -> vector<8x256xf32>
    %8 = vector.broadcast %3 : vector<1x256xf32> to vector<8x256xf32>
    %9 = arith.addf %7, %8 : vector<8x256xf32>
    %cst_3 = arith.constant dense<0.000000e+00> : vector<1x256xf32>
    %10 = tpu.matmul %4, %2, %cst_3 {dimension_numbers = #tpu.dot_dimension_numbers<[1], [0], [0], [1], [0, 0, 1, 1], [], []>} : vector<1x64xf32>, vector<64x256xf32>, vector<1x256xf32> -> vector<1x256xf32>
    %11 = vector.extract_strided_slice %9 {offsets = [0, 0], sizes = [1, 256], strides = [1, 1]} : vector<8x256xf32> to vector<1x256xf32>
    %12 = arith.addf %10, %11 : vector<1x256xf32>
    %13 = vector.extract_strided_slice %12 {offsets = [0, 0], sizes = [1, 192], strides = [1, 1]} : vector<1x256xf32> to vector<1x192xf32>
    %14 = arith.negf %13 : vector<1x192xf32>
    %15 = math.exp %14 : vector<1x192xf32>
    %cst_4 = arith.constant 1.000000e+00 : f32
    %16 = vector.broadcast %cst_4 : f32 to vector<1x192xf32>
    %17 = arith.addf %16, %15 : vector<1x192xf32>
    %18 = arith.divf %16, %17 : vector<1x192xf32>
    %19 = vector.extract_strided_slice %12 {offsets = [0, 192], sizes = [1, 64], strides = [1, 1]} : vector<1x256xf32> to vector<1x64xf32>
    %20 = math.tanh %19 : vector<1x64xf32>
    %21 = vector.extract_strided_slice %18 {offsets = [0, 64], sizes = [1, 64], strides = [1, 1]} : vector<1x192xf32> to vector<1x64xf32>
    %22 = arith.mulf %21, %5 : vector<1x64xf32>
    %23 = vector.extract_strided_slice %18 {offsets = [0, 0], sizes = [1, 64], strides = [1, 1]} : vector<1x192xf32> to vector<1x64xf32>
    %24 = arith.mulf %23, %20 : vector<1x64xf32>
    %25 = arith.addf %22, %24 : vector<1x64xf32>
    %26 = vector.extract_strided_slice %18 {offsets = [0, 128], sizes = [1, 64], strides = [1, 1]} : vector<1x192xf32> to vector<1x64xf32>
    %27 = math.tanh %25 : vector<1x64xf32>
    %28 = arith.mulf %26, %27 : vector<1x64xf32>
    %cst_5 = arith.constant dense<0.000000e+00> : vector<1x256xf32>
    %29 = tpu.matmul %28, %2, %cst_5 {dimension_numbers = #tpu.dot_dimension_numbers<[1], [0], [0], [1], [0, 0, 1, 1], [], []>} : vector<1x64xf32>, vector<64x256xf32>, vector<1x256xf32> -> vector<1x256xf32>
    %30 = vector.extract_strided_slice %9 {offsets = [1, 0], sizes = [1, 256], strides = [1, 1]} : vector<8x256xf32> to vector<1x256xf32>
    %31 = arith.addf %29, %30 : vector<1x256xf32>
    %32 = vector.extract_strided_slice %31 {offsets = [0, 0], sizes = [1, 192], strides = [1, 1]} : vector<1x256xf32> to vector<1x192xf32>
    %33 = arith.negf %32 : vector<1x192xf32>
    %34 = math.exp %33 : vector<1x192xf32>
    %cst_6 = arith.constant 1.000000e+00 : f32
    %35 = vector.broadcast %cst_6 : f32 to vector<1x192xf32>
    %36 = arith.addf %35, %34 : vector<1x192xf32>
    %37 = arith.divf %35, %36 : vector<1x192xf32>
    %38 = vector.extract_strided_slice %31 {offsets = [0, 192], sizes = [1, 64], strides = [1, 1]} : vector<1x256xf32> to vector<1x64xf32>
    %39 = math.tanh %38 : vector<1x64xf32>
    %40 = vector.extract_strided_slice %37 {offsets = [0, 64], sizes = [1, 64], strides = [1, 1]} : vector<1x192xf32> to vector<1x64xf32>
    %41 = arith.mulf %40, %25 : vector<1x64xf32>
    %42 = vector.extract_strided_slice %37 {offsets = [0, 0], sizes = [1, 64], strides = [1, 1]} : vector<1x192xf32> to vector<1x64xf32>
    %43 = arith.mulf %42, %39 : vector<1x64xf32>
    %44 = arith.addf %41, %43 : vector<1x64xf32>
    %45 = vector.extract_strided_slice %37 {offsets = [0, 128], sizes = [1, 64], strides = [1, 1]} : vector<1x192xf32> to vector<1x64xf32>
    %46 = math.tanh %44 : vector<1x64xf32>
    %47 = arith.mulf %45, %46 : vector<1x64xf32>
    %cst_7 = arith.constant dense<0.000000e+00> : vector<1x256xf32>
    %48 = tpu.matmul %47, %2, %cst_7 {dimension_numbers = #tpu.dot_dimension_numbers<[1], [0], [0], [1], [0, 0, 1, 1], [], []>} : vector<1x64xf32>, vector<64x256xf32>, vector<1x256xf32> -> vector<1x256xf32>
    %49 = vector.extract_strided_slice %9 {offsets = [2, 0], sizes = [1, 256], strides = [1, 1]} : vector<8x256xf32> to vector<1x256xf32>
    %50 = arith.addf %48, %49 : vector<1x256xf32>
    %51 = vector.extract_strided_slice %50 {offsets = [0, 0], sizes = [1, 192], strides = [1, 1]} : vector<1x256xf32> to vector<1x192xf32>
    %52 = arith.negf %51 : vector<1x192xf32>
    %53 = math.exp %52 : vector<1x192xf32>
    %cst_8 = arith.constant 1.000000e+00 : f32
    %54 = vector.broadcast %cst_8 : f32 to vector<1x192xf32>
    %55 = arith.addf %54, %53 : vector<1x192xf32>
    %56 = arith.divf %54, %55 : vector<1x192xf32>
    %57 = vector.extract_strided_slice %50 {offsets = [0, 192], sizes = [1, 64], strides = [1, 1]} : vector<1x256xf32> to vector<1x64xf32>
    %58 = math.tanh %57 : vector<1x64xf32>
    %59 = vector.extract_strided_slice %56 {offsets = [0, 64], sizes = [1, 64], strides = [1, 1]} : vector<1x192xf32> to vector<1x64xf32>
    %60 = arith.mulf %59, %44 : vector<1x64xf32>
    %61 = vector.extract_strided_slice %56 {offsets = [0, 0], sizes = [1, 64], strides = [1, 1]} : vector<1x192xf32> to vector<1x64xf32>
    %62 = arith.mulf %61, %58 : vector<1x64xf32>
    %63 = arith.addf %60, %62 : vector<1x64xf32>
    %64 = vector.extract_strided_slice %56 {offsets = [0, 128], sizes = [1, 64], strides = [1, 1]} : vector<1x192xf32> to vector<1x64xf32>
    %65 = math.tanh %63 : vector<1x64xf32>
    %66 = arith.mulf %64, %65 : vector<1x64xf32>
    %cst_9 = arith.constant dense<0.000000e+00> : vector<1x256xf32>
    %67 = tpu.matmul %66, %2, %cst_9 {dimension_numbers = #tpu.dot_dimension_numbers<[1], [0], [0], [1], [0, 0, 1, 1], [], []>} : vector<1x64xf32>, vector<64x256xf32>, vector<1x256xf32> -> vector<1x256xf32>
    %68 = vector.extract_strided_slice %9 {offsets = [3, 0], sizes = [1, 256], strides = [1, 1]} : vector<8x256xf32> to vector<1x256xf32>
    %69 = arith.addf %67, %68 : vector<1x256xf32>
    %70 = vector.extract_strided_slice %69 {offsets = [0, 0], sizes = [1, 192], strides = [1, 1]} : vector<1x256xf32> to vector<1x192xf32>
    %71 = arith.negf %70 : vector<1x192xf32>
    %72 = math.exp %71 : vector<1x192xf32>
    %cst_10 = arith.constant 1.000000e+00 : f32
    %73 = vector.broadcast %cst_10 : f32 to vector<1x192xf32>
    %74 = arith.addf %73, %72 : vector<1x192xf32>
    %75 = arith.divf %73, %74 : vector<1x192xf32>
    %76 = vector.extract_strided_slice %69 {offsets = [0, 192], sizes = [1, 64], strides = [1, 1]} : vector<1x256xf32> to vector<1x64xf32>
    %77 = math.tanh %76 : vector<1x64xf32>
    %78 = vector.extract_strided_slice %75 {offsets = [0, 64], sizes = [1, 64], strides = [1, 1]} : vector<1x192xf32> to vector<1x64xf32>
    %79 = arith.mulf %78, %63 : vector<1x64xf32>
    %80 = vector.extract_strided_slice %75 {offsets = [0, 0], sizes = [1, 64], strides = [1, 1]} : vector<1x192xf32> to vector<1x64xf32>
    %81 = arith.mulf %80, %77 : vector<1x64xf32>
    %82 = arith.addf %79, %81 : vector<1x64xf32>
    %83 = vector.extract_strided_slice %75 {offsets = [0, 128], sizes = [1, 64], strides = [1, 1]} : vector<1x192xf32> to vector<1x64xf32>
    %84 = math.tanh %82 : vector<1x64xf32>
    %85 = arith.mulf %83, %84 : vector<1x64xf32>
    %cst_11 = arith.constant dense<0.000000e+00> : vector<1x256xf32>
    %86 = tpu.matmul %85, %2, %cst_11 {dimension_numbers = #tpu.dot_dimension_numbers<[1], [0], [0], [1], [0, 0, 1, 1], [], []>} : vector<1x64xf32>, vector<64x256xf32>, vector<1x256xf32> -> vector<1x256xf32>
    %87 = vector.extract_strided_slice %9 {offsets = [4, 0], sizes = [1, 256], strides = [1, 1]} : vector<8x256xf32> to vector<1x256xf32>
    %88 = arith.addf %86, %87 : vector<1x256xf32>
    %89 = vector.extract_strided_slice %88 {offsets = [0, 0], sizes = [1, 192], strides = [1, 1]} : vector<1x256xf32> to vector<1x192xf32>
    %90 = arith.negf %89 : vector<1x192xf32>
    %91 = math.exp %90 : vector<1x192xf32>
    %cst_12 = arith.constant 1.000000e+00 : f32
    %92 = vector.broadcast %cst_12 : f32 to vector<1x192xf32>
    %93 = arith.addf %92, %91 : vector<1x192xf32>
    %94 = arith.divf %92, %93 : vector<1x192xf32>
    %95 = vector.extract_strided_slice %88 {offsets = [0, 192], sizes = [1, 64], strides = [1, 1]} : vector<1x256xf32> to vector<1x64xf32>
    %96 = math.tanh %95 : vector<1x64xf32>
    %97 = vector.extract_strided_slice %94 {offsets = [0, 64], sizes = [1, 64], strides = [1, 1]} : vector<1x192xf32> to vector<1x64xf32>
    %98 = arith.mulf %97, %82 : vector<1x64xf32>
    %99 = vector.extract_strided_slice %94 {offsets = [0, 0], sizes = [1, 64], strides = [1, 1]} : vector<1x192xf32> to vector<1x64xf32>
    %100 = arith.mulf %99, %96 : vector<1x64xf32>
    %101 = arith.addf %98, %100 : vector<1x64xf32>
    %102 = vector.extract_strided_slice %94 {offsets = [0, 128], sizes = [1, 64], strides = [1, 1]} : vector<1x192xf32> to vector<1x64xf32>
    %103 = math.tanh %101 : vector<1x64xf32>
    %104 = arith.mulf %102, %103 : vector<1x64xf32>
    %cst_13 = arith.constant dense<0.000000e+00> : vector<1x256xf32>
    %105 = tpu.matmul %104, %2, %cst_13 {dimension_numbers = #tpu.dot_dimension_numbers<[1], [0], [0], [1], [0, 0, 1, 1], [], []>} : vector<1x64xf32>, vector<64x256xf32>, vector<1x256xf32> -> vector<1x256xf32>
    %106 = vector.extract_strided_slice %9 {offsets = [5, 0], sizes = [1, 256], strides = [1, 1]} : vector<8x256xf32> to vector<1x256xf32>
    %107 = arith.addf %105, %106 : vector<1x256xf32>
    %108 = vector.extract_strided_slice %107 {offsets = [0, 0], sizes = [1, 192], strides = [1, 1]} : vector<1x256xf32> to vector<1x192xf32>
    %109 = arith.negf %108 : vector<1x192xf32>
    %110 = math.exp %109 : vector<1x192xf32>
    %cst_14 = arith.constant 1.000000e+00 : f32
    %111 = vector.broadcast %cst_14 : f32 to vector<1x192xf32>
    %112 = arith.addf %111, %110 : vector<1x192xf32>
    %113 = arith.divf %111, %112 : vector<1x192xf32>
    %114 = vector.extract_strided_slice %107 {offsets = [0, 192], sizes = [1, 64], strides = [1, 1]} : vector<1x256xf32> to vector<1x64xf32>
    %115 = math.tanh %114 : vector<1x64xf32>
    %116 = vector.extract_strided_slice %113 {offsets = [0, 64], sizes = [1, 64], strides = [1, 1]} : vector<1x192xf32> to vector<1x64xf32>
    %117 = arith.mulf %116, %101 : vector<1x64xf32>
    %118 = vector.extract_strided_slice %113 {offsets = [0, 0], sizes = [1, 64], strides = [1, 1]} : vector<1x192xf32> to vector<1x64xf32>
    %119 = arith.mulf %118, %115 : vector<1x64xf32>
    %120 = arith.addf %117, %119 : vector<1x64xf32>
    %121 = vector.extract_strided_slice %113 {offsets = [0, 128], sizes = [1, 64], strides = [1, 1]} : vector<1x192xf32> to vector<1x64xf32>
    %122 = math.tanh %120 : vector<1x64xf32>
    %123 = arith.mulf %121, %122 : vector<1x64xf32>
    %cst_15 = arith.constant dense<0.000000e+00> : vector<1x256xf32>
    %124 = tpu.matmul %123, %2, %cst_15 {dimension_numbers = #tpu.dot_dimension_numbers<[1], [0], [0], [1], [0, 0, 1, 1], [], []>} : vector<1x64xf32>, vector<64x256xf32>, vector<1x256xf32> -> vector<1x256xf32>
    %125 = vector.extract_strided_slice %9 {offsets = [6, 0], sizes = [1, 256], strides = [1, 1]} : vector<8x256xf32> to vector<1x256xf32>
    %126 = arith.addf %124, %125 : vector<1x256xf32>
    %127 = vector.extract_strided_slice %126 {offsets = [0, 0], sizes = [1, 192], strides = [1, 1]} : vector<1x256xf32> to vector<1x192xf32>
    %128 = arith.negf %127 : vector<1x192xf32>
    %129 = math.exp %128 : vector<1x192xf32>
    %cst_16 = arith.constant 1.000000e+00 : f32
    %130 = vector.broadcast %cst_16 : f32 to vector<1x192xf32>
    %131 = arith.addf %130, %129 : vector<1x192xf32>
    %132 = arith.divf %130, %131 : vector<1x192xf32>
    %133 = vector.extract_strided_slice %126 {offsets = [0, 192], sizes = [1, 64], strides = [1, 1]} : vector<1x256xf32> to vector<1x64xf32>
    %134 = math.tanh %133 : vector<1x64xf32>
    %135 = vector.extract_strided_slice %132 {offsets = [0, 64], sizes = [1, 64], strides = [1, 1]} : vector<1x192xf32> to vector<1x64xf32>
    %136 = arith.mulf %135, %120 : vector<1x64xf32>
    %137 = vector.extract_strided_slice %132 {offsets = [0, 0], sizes = [1, 64], strides = [1, 1]} : vector<1x192xf32> to vector<1x64xf32>
    %138 = arith.mulf %137, %134 : vector<1x64xf32>
    %139 = arith.addf %136, %138 : vector<1x64xf32>
    %140 = vector.extract_strided_slice %132 {offsets = [0, 128], sizes = [1, 64], strides = [1, 1]} : vector<1x192xf32> to vector<1x64xf32>
    %141 = math.tanh %139 : vector<1x64xf32>
    %142 = arith.mulf %140, %141 : vector<1x64xf32>
    %cst_17 = arith.constant dense<0.000000e+00> : vector<1x256xf32>
    %143 = tpu.matmul %142, %2, %cst_17 {dimension_numbers = #tpu.dot_dimension_numbers<[1], [0], [0], [1], [0, 0, 1, 1], [], []>} : vector<1x64xf32>, vector<64x256xf32>, vector<1x256xf32> -> vector<1x256xf32>
    %144 = vector.extract_strided_slice %9 {offsets = [7, 0], sizes = [1, 256], strides = [1, 1]} : vector<8x256xf32> to vector<1x256xf32>
    %145 = arith.addf %143, %144 : vector<1x256xf32>
    %146 = vector.extract_strided_slice %145 {offsets = [0, 0], sizes = [1, 192], strides = [1, 1]} : vector<1x256xf32> to vector<1x192xf32>
    %147 = arith.negf %146 : vector<1x192xf32>
    %148 = math.exp %147 : vector<1x192xf32>
    %cst_18 = arith.constant 1.000000e+00 : f32
    %149 = vector.broadcast %cst_18 : f32 to vector<1x192xf32>
    %150 = arith.addf %149, %148 : vector<1x192xf32>
    %151 = arith.divf %149, %150 : vector<1x192xf32>
    %152 = vector.extract_strided_slice %145 {offsets = [0, 192], sizes = [1, 64], strides = [1, 1]} : vector<1x256xf32> to vector<1x64xf32>
    %153 = math.tanh %152 : vector<1x64xf32>
    %154 = vector.extract_strided_slice %151 {offsets = [0, 64], sizes = [1, 64], strides = [1, 1]} : vector<1x192xf32> to vector<1x64xf32>
    %155 = arith.mulf %154, %139 : vector<1x64xf32>
    %156 = vector.extract_strided_slice %151 {offsets = [0, 0], sizes = [1, 64], strides = [1, 1]} : vector<1x192xf32> to vector<1x64xf32>
    %157 = arith.mulf %156, %153 : vector<1x64xf32>
    %158 = arith.addf %155, %157 : vector<1x64xf32>
    %159 = vector.extract_strided_slice %151 {offsets = [0, 128], sizes = [1, 64], strides = [1, 1]} : vector<1x192xf32> to vector<1x64xf32>
    %160 = math.tanh %158 : vector<1x64xf32>
    %161 = arith.mulf %159, %160 : vector<1x64xf32>
    %162 = vector.extract_strided_slice %28 {offsets = [0, 0], sizes = [1, 32], strides = [1, 1]} : vector<1x64xf32> to vector<1x32xf32>
    %163 = vector.extract_strided_slice %47 {offsets = [0, 0], sizes = [1, 32], strides = [1, 1]} : vector<1x64xf32> to vector<1x32xf32>
    %164 = vector.extract_strided_slice %66 {offsets = [0, 0], sizes = [1, 32], strides = [1, 1]} : vector<1x64xf32> to vector<1x32xf32>
    %165 = vector.extract_strided_slice %85 {offsets = [0, 0], sizes = [1, 32], strides = [1, 1]} : vector<1x64xf32> to vector<1x32xf32>
    %166 = vector.extract_strided_slice %104 {offsets = [0, 0], sizes = [1, 32], strides = [1, 1]} : vector<1x64xf32> to vector<1x32xf32>
    %167 = vector.extract_strided_slice %123 {offsets = [0, 0], sizes = [1, 32], strides = [1, 1]} : vector<1x64xf32> to vector<1x32xf32>
    %168 = vector.extract_strided_slice %142 {offsets = [0, 0], sizes = [1, 32], strides = [1, 1]} : vector<1x64xf32> to vector<1x32xf32>
    %169 = vector.extract_strided_slice %161 {offsets = [0, 0], sizes = [1, 32], strides = [1, 1]} : vector<1x64xf32> to vector<1x32xf32>
    %170 = tpu.concatenate %162, %163, %164, %165, %166, %167, %168, %169 in 0 : vector<1x32xf32>, vector<1x32xf32>, vector<1x32xf32>, vector<1x32xf32>, vector<1x32xf32>, vector<1x32xf32>, vector<1x32xf32>, vector<1x32xf32> -> vector<8x32xf32>
    %171 = vector.extract_strided_slice %161 {offsets = [0, 32], sizes = [1, 32], strides = [1, 1]} : vector<1x64xf32> to vector<1x32xf32>
    %172 = vector.extract_strided_slice %142 {offsets = [0, 32], sizes = [1, 32], strides = [1, 1]} : vector<1x64xf32> to vector<1x32xf32>
    %173 = vector.extract_strided_slice %123 {offsets = [0, 32], sizes = [1, 32], strides = [1, 1]} : vector<1x64xf32> to vector<1x32xf32>
    %174 = vector.extract_strided_slice %104 {offsets = [0, 32], sizes = [1, 32], strides = [1, 1]} : vector<1x64xf32> to vector<1x32xf32>
    %175 = vector.extract_strided_slice %85 {offsets = [0, 32], sizes = [1, 32], strides = [1, 1]} : vector<1x64xf32> to vector<1x32xf32>
    %176 = vector.extract_strided_slice %66 {offsets = [0, 32], sizes = [1, 32], strides = [1, 1]} : vector<1x64xf32> to vector<1x32xf32>
    %177 = vector.extract_strided_slice %47 {offsets = [0, 32], sizes = [1, 32], strides = [1, 1]} : vector<1x64xf32> to vector<1x32xf32>
    %178 = vector.extract_strided_slice %28 {offsets = [0, 32], sizes = [1, 32], strides = [1, 1]} : vector<1x64xf32> to vector<1x32xf32>
    %179 = tpu.concatenate %171, %172, %173, %174, %175, %176, %177, %178 in 0 : vector<1x32xf32>, vector<1x32xf32>, vector<1x32xf32>, vector<1x32xf32>, vector<1x32xf32>, vector<1x32xf32>, vector<1x32xf32>, vector<1x32xf32> -> vector<8x32xf32>
    %180 = tpu.concatenate %170, %179 in 1 : vector<8x32xf32>, vector<8x32xf32> -> vector<8x64xf32>
    %c0_19 = arith.constant 0 : index
    %c0_20 = arith.constant 0 : index
    %181 = vector.load %arg4[%c0_19, %c0_20] : memref<120x256xf32, #tpu.memory_space<vmem>>, vector<120x256xf32>
    %182 = vector.extract_strided_slice %181 {offsets = [0, 0], sizes = [64, 256], strides = [1, 1]} : vector<120x256xf32> to vector<64x256xf32>
    %183 = vector.extract_strided_slice %181 {offsets = [64, 0], sizes = [32, 128], strides = [1, 1]} : vector<120x256xf32> to vector<32x128xf32>
    %184 = vector.extract_strided_slice %181 {offsets = [96, 0], sizes = [1, 128], strides = [1, 1]} : vector<120x256xf32> to vector<1x128xf32>
    %185 = vector.extract_strided_slice %181 {offsets = [104, 0], sizes = [1, 32], strides = [1, 1]} : vector<120x256xf32> to vector<1x32xf32>
    %186 = vector.shape_cast %185 : vector<1x32xf32> to vector<1x32xf32>
    %187 = vector.broadcast %186 : vector<1x32xf32> to vector<3x32xf32>
    %188 = vector.extract_strided_slice %181 {offsets = [112, 0], sizes = [1, 32], strides = [1, 1]} : vector<120x256xf32> to vector<1x32xf32>
    %189 = vector.shape_cast %188 : vector<1x32xf32> to vector<1x32xf32>
    %190 = vector.broadcast %189 : vector<1x32xf32> to vector<3x32xf32>
    %cst_21 = arith.constant dense<0.000000e+00> : vector<8x256xf32>
    %191 = tpu.matmul %180, %182, %cst_21 {dimension_numbers = #tpu.dot_dimension_numbers<[1], [0], [0], [1], [0, 0, 1, 1], [], []>} : vector<8x64xf32>, vector<64x256xf32>, vector<8x256xf32> -> vector<8x256xf32>
    %192 = vector.extract_strided_slice %191 {offsets = [0, 0], sizes = [8, 128], strides = [1, 1]} : vector<8x256xf32> to vector<8x128xf32>
    %193 = vector.extract_strided_slice %191 {offsets = [0, 128], sizes = [8, 128], strides = [1, 1]} : vector<8x256xf32> to vector<8x128xf32>
    %194 = tpu.concatenate %192, %193 in 0 : vector<8x128xf32>, vector<8x128xf32> -> vector<16x128xf32>
    %c0_22 = arith.constant 0 : index
    %c0_23 = arith.constant 0 : index
    %195 = vector.load %arg5[%c0_22, %c0_23] : memref<24x16xf32, #tpu.memory_space<vmem>>, vector<24x16xf32>
    %cst_24 = arith.constant dense<0.000000e+00> : vector<24x128xf32>
    %196 = tpu.matmul %195, %194, %cst_24 {dimension_numbers = #tpu.dot_dimension_numbers<[1], [0], [0], [1], [0, 0, 1, 1], [], []>} : vector<24x16xf32>, vector<16x128xf32>, vector<24x128xf32> -> vector<24x128xf32>
    %197 = vector.broadcast %184 : vector<1x128xf32> to vector<24x128xf32>
    %198 = arith.addf %196, %197 : vector<24x128xf32>
    %199 = tpu.iota {dimensions = array<i32: 0>} : vector<3x1xi32>
    %c0_i32 = arith.constant 0 : i32
    %200 = vector.broadcast %c0_i32 : i32 to vector<3x1xi32>
    %c0_i32_25 = arith.constant 0 : i32
    %201 = vector.broadcast %c0_i32_25 : i32 to vector<3x1xi32>
    %202 = arith.cmpi eq, %199, %201 : vector<3x1xi32>
    %c1 = arith.constant 1 : index
    %203 = memref.load %arg1[%c1] : memref<4xi32, #tpu.memory_space<smem>>
    %c0_26 = arith.constant 0 : index
    %204 = memref.load %arg1[%c0_26] : memref<4xi32, #tpu.memory_space<smem>>
    %205 = arith.subi %203, %204 : i32
    %206 = vector.broadcast %205 : i32 to vector<3x1xi32>
    %207 = arith.select %202, %206, %200 : vector<3x1xi1>, vector<3x1xi32>
    %c1_i32 = arith.constant 1 : i32
    %208 = vector.broadcast %c1_i32 : i32 to vector<3x1xi32>
    %209 = arith.cmpi eq, %199, %208 : vector<3x1xi32>
    %c2 = arith.constant 2 : index
    %210 = memref.load %arg1[%c2] : memref<4xi32, #tpu.memory_space<smem>>
    %c1_27 = arith.constant 1 : index
    %211 = memref.load %arg1[%c1_27] : memref<4xi32, #tpu.memory_space<smem>>
    %212 = arith.subi %210, %211 : i32
    %213 = vector.broadcast %212 : i32 to vector<3x1xi32>
    %214 = arith.select %209, %213, %207 : vector<3x1xi1>, vector<3x1xi32>
    %c2_i32 = arith.constant 2 : i32
    %215 = vector.broadcast %c2_i32 : i32 to vector<3x1xi32>
    %216 = arith.cmpi eq, %199, %215 : vector<3x1xi32>
    %c3 = arith.constant 3 : index
    %217 = memref.load %arg1[%c3] : memref<4xi32, #tpu.memory_space<smem>>
    %c2_28 = arith.constant 2 : index
    %218 = memref.load %arg1[%c2_28] : memref<4xi32, #tpu.memory_space<smem>>
    %219 = arith.subi %217, %218 : i32
    %220 = vector.broadcast %219 : i32 to vector<3x1xi32>
    %221 = arith.select %216, %220, %214 : vector<3x1xi1>, vector<3x1xi32>
    %cst_29 = arith.constant 0xFF800000 : f32
    %222 = vector.broadcast %cst_29 : f32 to vector<3x32xf32>
    %cst_30 = arith.constant dense<0.000000e+00> : vector<3x128xf32>
    %223 = tpu.matmul %187, %183, %cst_30 {dimension_numbers = #tpu.dot_dimension_numbers<[1], [0], [0], [1], [0, 0, 1, 1], [], []>} : vector<3x32xf32>, vector<32x128xf32>, vector<3x128xf32> -> vector<3x128xf32>
    %224 = vector.extract_strided_slice %198 {offsets = [0, 0], sizes = [3, 128], strides = [1, 1]} : vector<24x128xf32> to vector<3x128xf32>
    %225 = arith.addf %223, %224 : vector<3x128xf32>
    %226 = vector.extract_strided_slice %225 {offsets = [0, 0], sizes = [3, 96], strides = [1, 1]} : vector<3x128xf32> to vector<3x96xf32>
    %227 = arith.negf %226 : vector<3x96xf32>
    %228 = math.exp %227 : vector<3x96xf32>
    %cst_31 = arith.constant 1.000000e+00 : f32
    %229 = vector.broadcast %cst_31 : f32 to vector<3x96xf32>
    %230 = arith.addf %229, %228 : vector<3x96xf32>
    %231 = arith.divf %229, %230 : vector<3x96xf32>
    %232 = vector.extract_strided_slice %225 {offsets = [0, 96], sizes = [3, 32], strides = [1, 1]} : vector<3x128xf32> to vector<3x32xf32>
    %233 = math.tanh %232 : vector<3x32xf32>
    %234 = vector.extract_strided_slice %231 {offsets = [0, 32], sizes = [3, 32], strides = [1, 1]} : vector<3x96xf32> to vector<3x32xf32>
    %235 = arith.mulf %234, %190 : vector<3x32xf32>
    %236 = vector.extract_strided_slice %231 {offsets = [0, 0], sizes = [3, 32], strides = [1, 1]} : vector<3x96xf32> to vector<3x32xf32>
    %237 = arith.mulf %236, %233 : vector<3x32xf32>
    %238 = arith.addf %235, %237 : vector<3x32xf32>
    %239 = vector.extract_strided_slice %231 {offsets = [0, 64], sizes = [3, 32], strides = [1, 1]} : vector<3x96xf32> to vector<3x32xf32>
    %240 = math.tanh %238 : vector<3x32xf32>
    %241 = arith.mulf %239, %240 : vector<3x32xf32>
    %c0_i32_32 = arith.constant 0 : i32
    %242 = vector.broadcast %c0_i32_32 : i32 to vector<3x1xi32>
    %243 = arith.cmpi sgt, %221, %242 : vector<3x1xi32>
    %244 = arith.maximumf %222, %241 : vector<3x32xf32>
    %245 = vector.shape_cast %243 : vector<3x1xi1> to vector<3x1xi1>
    %246 = vector.broadcast %245 : vector<3x1xi1> to vector<3x32xi1>
    %247 = arith.select %246, %244, %222 : vector<3x32xi1>, vector<3x32xf32>
    %cst_33 = arith.constant dense<0.000000e+00> : vector<3x128xf32>
    %248 = tpu.matmul %241, %183, %cst_33 {dimension_numbers = #tpu.dot_dimension_numbers<[1], [0], [0], [1], [0, 0, 1, 1], [], []>} : vector<3x32xf32>, vector<32x128xf32>, vector<3x128xf32> -> vector<3x128xf32>
    %249 = vector.extract_strided_slice %198 {offsets = [3, 0], sizes = [3, 128], strides = [1, 1]} : vector<24x128xf32> to vector<3x128xf32>
    %250 = arith.addf %248, %249 : vector<3x128xf32>
    %251 = vector.extract_strided_slice %250 {offsets = [0, 0], sizes = [3, 96], strides = [1, 1]} : vector<3x128xf32> to vector<3x96xf32>
    %252 = arith.negf %251 : vector<3x96xf32>
    %253 = math.exp %252 : vector<3x96xf32>
    %cst_34 = arith.constant 1.000000e+00 : f32
    %254 = vector.broadcast %cst_34 : f32 to vector<3x96xf32>
    %255 = arith.addf %254, %253 : vector<3x96xf32>
    %256 = arith.divf %254, %255 : vector<3x96xf32>
    %257 = vector.extract_strided_slice %250 {offsets = [0, 96], sizes = [3, 32], strides = [1, 1]} : vector<3x128xf32> to vector<3x32xf32>
    %258 = math.tanh %257 : vector<3x32xf32>
    %259 = vector.extract_strided_slice %256 {offsets = [0, 32], sizes = [3, 32], strides = [1, 1]} : vector<3x96xf32> to vector<3x32xf32>
    %260 = arith.mulf %259, %238 : vector<3x32xf32>
    %261 = vector.extract_strided_slice %256 {offsets = [0, 0], sizes = [3, 32], strides = [1, 1]} : vector<3x96xf32> to vector<3x32xf32>
    %262 = arith.mulf %261, %258 : vector<3x32xf32>
    %263 = arith.addf %260, %262 : vector<3x32xf32>
    %264 = vector.extract_strided_slice %256 {offsets = [0, 64], sizes = [3, 32], strides = [1, 1]} : vector<3x96xf32> to vector<3x32xf32>
    %265 = math.tanh %263 : vector<3x32xf32>
    %266 = arith.mulf %264, %265 : vector<3x32xf32>
    %c1_i32_35 = arith.constant 1 : i32
    %267 = vector.broadcast %c1_i32_35 : i32 to vector<3x1xi32>
    %268 = arith.cmpi sgt, %221, %267 : vector<3x1xi32>
    %269 = arith.maximumf %247, %266 : vector<3x32xf32>
    %270 = vector.shape_cast %268 : vector<3x1xi1> to vector<3x1xi1>
    %271 = vector.broadcast %270 : vector<3x1xi1> to vector<3x32xi1>
    %272 = arith.select %271, %269, %247 : vector<3x32xi1>, vector<3x32xf32>
    %cst_36 = arith.constant dense<0.000000e+00> : vector<3x128xf32>
    %273 = tpu.matmul %266, %183, %cst_36 {dimension_numbers = #tpu.dot_dimension_numbers<[1], [0], [0], [1], [0, 0, 1, 1], [], []>} : vector<3x32xf32>, vector<32x128xf32>, vector<3x128xf32> -> vector<3x128xf32>
    %274 = vector.extract_strided_slice %198 {offsets = [6, 0], sizes = [3, 128], strides = [1, 1]} : vector<24x128xf32> to vector<3x128xf32>
    %275 = arith.addf %273, %274 : vector<3x128xf32>
    %276 = vector.extract_strided_slice %275 {offsets = [0, 0], sizes = [3, 96], strides = [1, 1]} : vector<3x128xf32> to vector<3x96xf32>
    %277 = arith.negf %276 : vector<3x96xf32>
    %278 = math.exp %277 : vector<3x96xf32>
    %cst_37 = arith.constant 1.000000e+00 : f32
    %279 = vector.broadcast %cst_37 : f32 to vector<3x96xf32>
    %280 = arith.addf %279, %278 : vector<3x96xf32>
    %281 = arith.divf %279, %280 : vector<3x96xf32>
    %282 = vector.extract_strided_slice %275 {offsets = [0, 96], sizes = [3, 32], strides = [1, 1]} : vector<3x128xf32> to vector<3x32xf32>
    %283 = math.tanh %282 : vector<3x32xf32>
    %284 = vector.extract_strided_slice %281 {offsets = [0, 32], sizes = [3, 32], strides = [1, 1]} : vector<3x96xf32> to vector<3x32xf32>
    %285 = arith.mulf %284, %263 : vector<3x32xf32>
    %286 = vector.extract_strided_slice %281 {offsets = [0, 0], sizes = [3, 32], strides = [1, 1]} : vector<3x96xf32> to vector<3x32xf32>
    %287 = arith.mulf %286, %283 : vector<3x32xf32>
    %288 = arith.addf %285, %287 : vector<3x32xf32>
    %289 = vector.extract_strided_slice %281 {offsets = [0, 64], sizes = [3, 32], strides = [1, 1]} : vector<3x96xf32> to vector<3x32xf32>
    %290 = math.tanh %288 : vector<3x32xf32>
    %291 = arith.mulf %289, %290 : vector<3x32xf32>
    %c2_i32_38 = arith.constant 2 : i32
    %292 = vector.broadcast %c2_i32_38 : i32 to vector<3x1xi32>
    %293 = arith.cmpi sgt, %221, %292 : vector<3x1xi32>
    %294 = arith.maximumf %272, %291 : vector<3x32xf32>
    %295 = vector.shape_cast %293 : vector<3x1xi1> to vector<3x1xi1>
    %296 = vector.broadcast %295 : vector<3x1xi1> to vector<3x32xi1>
    %297 = arith.select %296, %294, %272 : vector<3x32xi1>, vector<3x32xf32>
    %cst_39 = arith.constant dense<0.000000e+00> : vector<3x128xf32>
    %298 = tpu.matmul %291, %183, %cst_39 {dimension_numbers = #tpu.dot_dimension_numbers<[1], [0], [0], [1], [0, 0, 1, 1], [], []>} : vector<3x32xf32>, vector<32x128xf32>, vector<3x128xf32> -> vector<3x128xf32>
    %299 = vector.extract_strided_slice %198 {offsets = [9, 0], sizes = [3, 128], strides = [1, 1]} : vector<24x128xf32> to vector<3x128xf32>
    %300 = arith.addf %298, %299 : vector<3x128xf32>
    %301 = vector.extract_strided_slice %300 {offsets = [0, 0], sizes = [3, 96], strides = [1, 1]} : vector<3x128xf32> to vector<3x96xf32>
    %302 = arith.negf %301 : vector<3x96xf32>
    %303 = math.exp %302 : vector<3x96xf32>
    %cst_40 = arith.constant 1.000000e+00 : f32
    %304 = vector.broadcast %cst_40 : f32 to vector<3x96xf32>
    %305 = arith.addf %304, %303 : vector<3x96xf32>
    %306 = arith.divf %304, %305 : vector<3x96xf32>
    %307 = vector.extract_strided_slice %300 {offsets = [0, 96], sizes = [3, 32], strides = [1, 1]} : vector<3x128xf32> to vector<3x32xf32>
    %308 = math.tanh %307 : vector<3x32xf32>
    %309 = vector.extract_strided_slice %306 {offsets = [0, 32], sizes = [3, 32], strides = [1, 1]} : vector<3x96xf32> to vector<3x32xf32>
    %310 = arith.mulf %309, %288 : vector<3x32xf32>
    %311 = vector.extract_strided_slice %306 {offsets = [0, 0], sizes = [3, 32], strides = [1, 1]} : vector<3x96xf32> to vector<3x32xf32>
    %312 = arith.mulf %311, %308 : vector<3x32xf32>
    %313 = arith.addf %310, %312 : vector<3x32xf32>
    %314 = vector.extract_strided_slice %306 {offsets = [0, 64], sizes = [3, 32], strides = [1, 1]} : vector<3x96xf32> to vector<3x32xf32>
    %315 = math.tanh %313 : vector<3x32xf32>
    %316 = arith.mulf %314, %315 : vector<3x32xf32>
    %c3_i32 = arith.constant 3 : i32
    %317 = vector.broadcast %c3_i32 : i32 to vector<3x1xi32>
    %318 = arith.cmpi sgt, %221, %317 : vector<3x1xi32>
    %319 = arith.maximumf %297, %316 : vector<3x32xf32>
    %320 = vector.shape_cast %318 : vector<3x1xi1> to vector<3x1xi1>
    %321 = vector.broadcast %320 : vector<3x1xi1> to vector<3x32xi1>
    %322 = arith.select %321, %319, %297 : vector<3x32xi1>, vector<3x32xf32>
    %cst_41 = arith.constant dense<0.000000e+00> : vector<3x128xf32>
    %323 = tpu.matmul %316, %183, %cst_41 {dimension_numbers = #tpu.dot_dimension_numbers<[1], [0], [0], [1], [0, 0, 1, 1], [], []>} : vector<3x32xf32>, vector<32x128xf32>, vector<3x128xf32> -> vector<3x128xf32>
    %324 = vector.extract_strided_slice %198 {offsets = [12, 0], sizes = [3, 128], strides = [1, 1]} : vector<24x128xf32> to vector<3x128xf32>
    %325 = arith.addf %323, %324 : vector<3x128xf32>
    %326 = vector.extract_strided_slice %325 {offsets = [0, 0], sizes = [3, 96], strides = [1, 1]} : vector<3x128xf32> to vector<3x96xf32>
    %327 = arith.negf %326 : vector<3x96xf32>
    %328 = math.exp %327 : vector<3x96xf32>
    %cst_42 = arith.constant 1.000000e+00 : f32
    %329 = vector.broadcast %cst_42 : f32 to vector<3x96xf32>
    %330 = arith.addf %329, %328 : vector<3x96xf32>
    %331 = arith.divf %329, %330 : vector<3x96xf32>
    %332 = vector.extract_strided_slice %325 {offsets = [0, 96], sizes = [3, 32], strides = [1, 1]} : vector<3x128xf32> to vector<3x32xf32>
    %333 = math.tanh %332 : vector<3x32xf32>
    %334 = vector.extract_strided_slice %331 {offsets = [0, 32], sizes = [3, 32], strides = [1, 1]} : vector<3x96xf32> to vector<3x32xf32>
    %335 = arith.mulf %334, %313 : vector<3x32xf32>
    %336 = vector.extract_strided_slice %331 {offsets = [0, 0], sizes = [3, 32], strides = [1, 1]} : vector<3x96xf32> to vector<3x32xf32>
    %337 = arith.mulf %336, %333 : vector<3x32xf32>
    %338 = arith.addf %335, %337 : vector<3x32xf32>
    %339 = vector.extract_strided_slice %331 {offsets = [0, 64], sizes = [3, 32], strides = [1, 1]} : vector<3x96xf32> to vector<3x32xf32>
    %340 = math.tanh %338 : vector<3x32xf32>
    %341 = arith.mulf %339, %340 : vector<3x32xf32>
    %c4_i32 = arith.constant 4 : i32
    %342 = vector.broadcast %c4_i32 : i32 to vector<3x1xi32>
    %343 = arith.cmpi sgt, %221, %342 : vector<3x1xi32>
    %344 = arith.maximumf %322, %341 : vector<3x32xf32>
    %345 = vector.shape_cast %343 : vector<3x1xi1> to vector<3x1xi1>
    %346 = vector.broadcast %345 : vector<3x1xi1> to vector<3x32xi1>
    %347 = arith.select %346, %344, %322 : vector<3x32xi1>, vector<3x32xf32>
    %cst_43 = arith.constant dense<0.000000e+00> : vector<3x128xf32>
    %348 = tpu.matmul %341, %183, %cst_43 {dimension_numbers = #tpu.dot_dimension_numbers<[1], [0], [0], [1], [0, 0, 1, 1], [], []>} : vector<3x32xf32>, vector<32x128xf32>, vector<3x128xf32> -> vector<3x128xf32>
    %349 = vector.extract_strided_slice %198 {offsets = [15, 0], sizes = [3, 128], strides = [1, 1]} : vector<24x128xf32> to vector<3x128xf32>
    %350 = arith.addf %348, %349 : vector<3x128xf32>
    %351 = vector.extract_strided_slice %350 {offsets = [0, 0], sizes = [3, 96], strides = [1, 1]} : vector<3x128xf32> to vector<3x96xf32>
    %352 = arith.negf %351 : vector<3x96xf32>
    %353 = math.exp %352 : vector<3x96xf32>
    %cst_44 = arith.constant 1.000000e+00 : f32
    %354 = vector.broadcast %cst_44 : f32 to vector<3x96xf32>
    %355 = arith.addf %354, %353 : vector<3x96xf32>
    %356 = arith.divf %354, %355 : vector<3x96xf32>
    %357 = vector.extract_strided_slice %350 {offsets = [0, 96], sizes = [3, 32], strides = [1, 1]} : vector<3x128xf32> to vector<3x32xf32>
    %358 = math.tanh %357 : vector<3x32xf32>
    %359 = vector.extract_strided_slice %356 {offsets = [0, 32], sizes = [3, 32], strides = [1, 1]} : vector<3x96xf32> to vector<3x32xf32>
    %360 = arith.mulf %359, %338 : vector<3x32xf32>
    %361 = vector.extract_strided_slice %356 {offsets = [0, 0], sizes = [3, 32], strides = [1, 1]} : vector<3x96xf32> to vector<3x32xf32>
    %362 = arith.mulf %361, %358 : vector<3x32xf32>
    %363 = arith.addf %360, %362 : vector<3x32xf32>
    %364 = vector.extract_strided_slice %356 {offsets = [0, 64], sizes = [3, 32], strides = [1, 1]} : vector<3x96xf32> to vector<3x32xf32>
    %365 = math.tanh %363 : vector<3x32xf32>
    %366 = arith.mulf %364, %365 : vector<3x32xf32>
    %c5_i32 = arith.constant 5 : i32
    %367 = vector.broadcast %c5_i32 : i32 to vector<3x1xi32>
    %368 = arith.cmpi sgt, %221, %367 : vector<3x1xi32>
    %369 = arith.maximumf %347, %366 : vector<3x32xf32>
    %370 = vector.shape_cast %368 : vector<3x1xi1> to vector<3x1xi1>
    %371 = vector.broadcast %370 : vector<3x1xi1> to vector<3x32xi1>
    %372 = arith.select %371, %369, %347 : vector<3x32xi1>, vector<3x32xf32>
    %cst_45 = arith.constant dense<0.000000e+00> : vector<3x128xf32>
    %373 = tpu.matmul %366, %183, %cst_45 {dimension_numbers = #tpu.dot_dimension_numbers<[1], [0], [0], [1], [0, 0, 1, 1], [], []>} : vector<3x32xf32>, vector<32x128xf32>, vector<3x128xf32> -> vector<3x128xf32>
    %374 = vector.extract_strided_slice %198 {offsets = [18, 0], sizes = [3, 128], strides = [1, 1]} : vector<24x128xf32> to vector<3x128xf32>
    %375 = arith.addf %373, %374 : vector<3x128xf32>
    %376 = vector.extract_strided_slice %375 {offsets = [0, 0], sizes = [3, 96], strides = [1, 1]} : vector<3x128xf32> to vector<3x96xf32>
    %377 = arith.negf %376 : vector<3x96xf32>
    %378 = math.exp %377 : vector<3x96xf32>
    %cst_46 = arith.constant 1.000000e+00 : f32
    %379 = vector.broadcast %cst_46 : f32 to vector<3x96xf32>
    %380 = arith.addf %379, %378 : vector<3x96xf32>
    %381 = arith.divf %379, %380 : vector<3x96xf32>
    %382 = vector.extract_strided_slice %375 {offsets = [0, 96], sizes = [3, 32], strides = [1, 1]} : vector<3x128xf32> to vector<3x32xf32>
    %383 = math.tanh %382 : vector<3x32xf32>
    %384 = vector.extract_strided_slice %381 {offsets = [0, 32], sizes = [3, 32], strides = [1, 1]} : vector<3x96xf32> to vector<3x32xf32>
    %385 = arith.mulf %384, %363 : vector<3x32xf32>
    %386 = vector.extract_strided_slice %381 {offsets = [0, 0], sizes = [3, 32], strides = [1, 1]} : vector<3x96xf32> to vector<3x32xf32>
    %387 = arith.mulf %386, %383 : vector<3x32xf32>
    %388 = arith.addf %385, %387 : vector<3x32xf32>
    %389 = vector.extract_strided_slice %381 {offsets = [0, 64], sizes = [3, 32], strides = [1, 1]} : vector<3x96xf32> to vector<3x32xf32>
    %390 = math.tanh %388 : vector<3x32xf32>
    %391 = arith.mulf %389, %390 : vector<3x32xf32>
    %c6_i32 = arith.constant 6 : i32
    %392 = vector.broadcast %c6_i32 : i32 to vector<3x1xi32>
    %393 = arith.cmpi sgt, %221, %392 : vector<3x1xi32>
    %394 = arith.maximumf %372, %391 : vector<3x32xf32>
    %395 = vector.shape_cast %393 : vector<3x1xi1> to vector<3x1xi1>
    %396 = vector.broadcast %395 : vector<3x1xi1> to vector<3x32xi1>
    %397 = arith.select %396, %394, %372 : vector<3x32xi1>, vector<3x32xf32>
    %cst_47 = arith.constant dense<0.000000e+00> : vector<3x128xf32>
    %398 = tpu.matmul %391, %183, %cst_47 {dimension_numbers = #tpu.dot_dimension_numbers<[1], [0], [0], [1], [0, 0, 1, 1], [], []>} : vector<3x32xf32>, vector<32x128xf32>, vector<3x128xf32> -> vector<3x128xf32>
    %399 = vector.extract_strided_slice %198 {offsets = [21, 0], sizes = [3, 128], strides = [1, 1]} : vector<24x128xf32> to vector<3x128xf32>
    %400 = arith.addf %398, %399 : vector<3x128xf32>
    %401 = vector.extract_strided_slice %400 {offsets = [0, 0], sizes = [3, 96], strides = [1, 1]} : vector<3x128xf32> to vector<3x96xf32>
    %402 = arith.negf %401 : vector<3x96xf32>
    %403 = math.exp %402 : vector<3x96xf32>
    %cst_48 = arith.constant 1.000000e+00 : f32
    %404 = vector.broadcast %cst_48 : f32 to vector<3x96xf32>
    %405 = arith.addf %404, %403 : vector<3x96xf32>
    %406 = arith.divf %404, %405 : vector<3x96xf32>
    %407 = vector.extract_strided_slice %400 {offsets = [0, 96], sizes = [3, 32], strides = [1, 1]} : vector<3x128xf32> to vector<3x32xf32>
    %408 = math.tanh %407 : vector<3x32xf32>
    %409 = vector.extract_strided_slice %406 {offsets = [0, 32], sizes = [3, 32], strides = [1, 1]} : vector<3x96xf32> to vector<3x32xf32>
    %410 = arith.mulf %409, %388 : vector<3x32xf32>
    %411 = vector.extract_strided_slice %406 {offsets = [0, 0], sizes = [3, 32], strides = [1, 1]} : vector<3x96xf32> to vector<3x32xf32>
    %412 = arith.mulf %411, %408 : vector<3x32xf32>
    %413 = arith.addf %410, %412 : vector<3x32xf32>
    %414 = vector.extract_strided_slice %406 {offsets = [0, 64], sizes = [3, 32], strides = [1, 1]} : vector<3x96xf32> to vector<3x32xf32>
    %415 = math.tanh %413 : vector<3x32xf32>
    %416 = arith.mulf %414, %415 : vector<3x32xf32>
    %c7_i32 = arith.constant 7 : i32
    %417 = vector.broadcast %c7_i32 : i32 to vector<3x1xi32>
    %418 = arith.cmpi sgt, %221, %417 : vector<3x1xi32>
    %419 = arith.maximumf %397, %416 : vector<3x32xf32>
    %420 = vector.shape_cast %418 : vector<3x1xi1> to vector<3x1xi1>
    %421 = vector.broadcast %420 : vector<3x1xi1> to vector<3x32xi1>
    %422 = arith.select %421, %419, %397 : vector<3x32xi1>, vector<3x32xf32>
    %c0_49 = arith.constant 0 : index
    %c0_50 = arith.constant 0 : index
    %423 = vector.load %arg6[%c0_49, %c0_50] : memref<256x128xf32, #tpu.memory_space<vmem>>, vector<256x128xf32>
    %424 = vector.extract_strided_slice %423 {offsets = [0, 0], sizes = [32, 120], strides = [1, 1]} : vector<256x128xf32> to vector<32x120xf32>
    %425 = vector.extract_strided_slice %423 {offsets = [32, 0], sizes = [1, 120], strides = [1, 1]} : vector<256x128xf32> to vector<1x120xf32>
    %426 = vector.extract_strided_slice %423 {offsets = [40, 0], sizes = [120, 80], strides = [1, 1]} : vector<256x128xf32> to vector<120x80xf32>
    %427 = vector.extract_strided_slice %423 {offsets = [160, 0], sizes = [1, 80], strides = [1, 1]} : vector<256x128xf32> to vector<1x80xf32>
    %428 = vector.extract_strided_slice %423 {offsets = [168, 0], sizes = [80, 5], strides = [1, 1]} : vector<256x128xf32> to vector<80x5xf32>
    %429 = vector.extract_strided_slice %423 {offsets = [248, 0], sizes = [1, 5], strides = [1, 1]} : vector<256x128xf32> to vector<1x5xf32>
    %cst_51 = arith.constant dense<0.000000e+00> : vector<3x120xf32>
    %430 = tpu.matmul %422, %424, %cst_51 {dimension_numbers = #tpu.dot_dimension_numbers<[1], [0], [0], [1], [0, 0, 1, 1], [], []>} : vector<3x32xf32>, vector<32x120xf32>, vector<3x120xf32> -> vector<3x120xf32>
    %431 = vector.broadcast %425 : vector<1x120xf32> to vector<3x120xf32>
    %432 = arith.addf %430, %431 : vector<3x120xf32>
    %cst_52 = arith.constant 0.000000e+00 : f32
    %433 = vector.broadcast %cst_52 : f32 to vector<3x120xf32>
    %434 = arith.cmpf oge, %432, %433 : vector<3x120xf32>
    %cst_53 = arith.constant 0.00999999977 : f32
    %435 = vector.broadcast %cst_53 : f32 to vector<3x120xf32>
    %436 = arith.mulf %435, %432 : vector<3x120xf32>
    %437 = arith.select %434, %432, %436 : vector<3x120xi1>, vector<3x120xf32>
    %cst_54 = arith.constant dense<0.000000e+00> : vector<3x80xf32>
    %438 = tpu.matmul %437, %426, %cst_54 {dimension_numbers = #tpu.dot_dimension_numbers<[1], [0], [0], [1], [0, 0, 1, 1], [], []>} : vector<3x120xf32>, vector<120x80xf32>, vector<3x80xf32> -> vector<3x80xf32>
    %439 = vector.broadcast %427 : vector<1x80xf32> to vector<3x80xf32>
    %440 = arith.addf %438, %439 : vector<3x80xf32>
    %cst_55 = arith.constant 0.000000e+00 : f32
    %441 = vector.broadcast %cst_55 : f32 to vector<3x80xf32>
    %442 = arith.cmpf oge, %440, %441 : vector<3x80xf32>
    %cst_56 = arith.constant 0.00999999977 : f32
    %443 = vector.broadcast %cst_56 : f32 to vector<3x80xf32>
    %444 = arith.mulf %443, %440 : vector<3x80xf32>
    %445 = arith.select %442, %440, %444 : vector<3x80xi1>, vector<3x80xf32>
    %cst_57 = arith.constant dense<0.000000e+00> : vector<3x5xf32>
    %446 = tpu.matmul %445, %428, %cst_57 {dimension_numbers = #tpu.dot_dimension_numbers<[1], [0], [0], [1], [0, 0, 1, 1], [], []>} : vector<3x80xf32>, vector<80x5xf32>, vector<3x5xf32> -> vector<3x5xf32>
    %447 = vector.broadcast %429 : vector<1x5xf32> to vector<3x5xf32>
    %448 = arith.addf %446, %447 : vector<3x5xf32>
    %c0_58 = arith.constant 0 : index
    %c0_59 = arith.constant 0 : index
    %449 = vector.load %arg7[%c0_58, %c0_59] : memref<3x5xf32, #tpu.memory_space<vmem>>, vector<3x5xf32>
    tpu.vector_store %arg7[%c0_58, %c0_59], %448 {strides = array<i32>} : memref<3x5xf32, #tpu.memory_space<vmem>>, vector<3x5xf32>,
    return
  }
  func.func @transform_0(%arg0: i32, %arg1: memref<4xi32, #tpu.memory_space<smem>>) -> (i32, i32) {
    %c0_i32 = arith.constant 0 : i32
    %c0_i32_0 = arith.constant 0 : i32
    %c0_i32_1 = arith.constant 0 : i32
    return %c0_i32, %c0_i32_0 : i32, i32
  }
  func.func @transform_1(%arg0: i32, %arg1: memref<4xi32, #tpu.memory_space<smem>>) -> (i32, i32) {
    %c0_i32 = arith.constant 0 : i32
    %c0_i32_0 = arith.constant 0 : i32
    %c0_i32_1 = arith.constant 0 : i32
    return %c0_i32, %c0_i32_0 : i32, i32
  }
  func.func @transform_2(%arg0: i32, %arg1: memref<4xi32, #tpu.memory_space<smem>>) -> (i32, i32) {
    %c0_i32 = arith.constant 0 : i32
    %c0_i32_0 = arith.constant 0 : i32
    %c0_i32_1 = arith.constant 0 : i32
    return %c0_i32, %c0_i32_0 : i32, i32
  }
  func.func @transform_3(%arg0: i32, %arg1: memref<4xi32, #tpu.memory_space<smem>>) -> (i32, i32) {
    %c0_i32 = arith.constant 0 : i32
    %c0_i32_0 = arith.constant 0 : i32
    %c0_i32_1 = arith.constant 0 : i32
    return %c0_i32, %c0_i32_0 : i32, i32
  }
  func.func @transform_4(%arg0: i32, %arg1: memref<4xi32, #tpu.memory_space<smem>>) -> (i32, i32) {
    %c0_i32 = arith.constant 0 : i32
    %c0_i32_0 = arith.constant 0 : i32
    %c0_i32_1 = arith.constant 0 : i32
    return %c0_i32, %c0_i32_0 : i32, i32
  }
  func.func @transform_5(%arg0: i32, %arg1: memref<4xi32, #tpu.memory_space<smem>>) -> (i32, i32) {
    %c0_i32 = arith.constant 0 : i32
    %c0_i32_0 = arith.constant 0 : i32
    %c0_i32_1 = arith.constant 0 : i32
    return %c0_i32, %c0_i32_0 : i32, i32
  }
}

</mosaic_0001>

<llo_original>
// kernel: tpu_custom_call.1
$region0: #{tpu_custom_call.1}
  #allocation0 [shape = 'u32[]', space=smem, size = 0x4, offset = 0x4, fixed_abs, tag = 'smem constant byte address 0x4 - core index']
  #allocation1 [shape = 'u32[144,128]{1,0:T(1,128)}', space=vmem, size = 0x12000, scoped, tag = 'internal scratch']
  #allocation2 [shape = 's32[1]{0}', space=sflag, size = 0x4, scoped, tag = 'scoped memory for tpu_custom_call.1']
  #allocation3 [shape = 'u8[512]{0}', space=smem, size = 0x200, scoped, tag = 'prefetched SMEM operand 0']
  %s0 = inlined_call_operand.vmem [shape: s32[4], index: 0, kind: input, shape index: {}]
  %s1 = inlined_call_operand.vmem [shape: f32[8,32], index: 1, kind: input, shape index: {}]
  %s2 = inlined_call_operand.hbm [shape: f32[120,256], index: 2, kind: input, shape index: {}]
  %s3 = inlined_call_operand.hbm [shape: f32[120,256], index: 3, kind: input, shape index: {}]
  %s4 = inlined_call_operand.vmem [shape: f32[24,16], index: 4, kind: input, shape index: {}]
  %s5 = inlined_call_operand.hbm [shape: f32[256,128], index: 5, kind: input, shape index: {}]
  %s6 = inlined_call_operand.hbm [shape: f32[3,5], index: 6, kind: output, shape index: {}]
  %s7 = sld [smem:[#allocation0]]
  $region42: #{tpu_custom_call.1} parent=0
    _
  %s9 = ssub.s32 1, %s7
  %s10 = scalar_select 0, %s9, %s7
  %s11 = sshll.u32 %s0, 4
  %s12 = int_to_ptr.vmem [resolvable:$true] %s11
  %14 = dma.vmem_to_smem %s12, 16, [#allocation3], [#allocation2]
  %15 = dma.done [#allocation2], 16
  %16 = sfence
  $region1: #{tpu_custom_call.1} parent=0
    #allocation4 [shape = 'u8[122880]{0}', space=vmem, size = 0x1e000, scoped, tag = 'input window, operand 2, single buffered']
    #allocation5 [shape = 's32[1]{0}', space=sflag, size = 0x4, scoped, tag = 'scoped memory for tpu_custom_call.1']
    #allocation6 [shape = 's32[1]{0}', space=sflag, size = 0x4, scoped, tag = 'scoped memory for tpu_custom_call.1']
    #allocation7 [shape = 'u8[122880]{0}', space=vmem, size = 0x1e000, scoped, tag = 'input window, operand 3, single buffered']
    #allocation8 [shape = 's32[1]{0}', space=sflag, size = 0x4, scoped, tag = 'scoped memory for tpu_custom_call.1']
    #allocation9 [shape = 'u8[131072]{0}', space=vmem, size = 0x20000, scoped, tag = 'input window, operand 5, single buffered']
    #allocation10 [shape = 'u8[2048]{0}', space=vmem, size = 0x800, scoped, tag = 'output window, operand 0, single buffered']
    %17 = vsyncpa [#allocation5], 0
    %18 = vsyncpa [#allocation8], 0
    %19 = vsyncpa [#allocation6], 0
    // Predicated region
    $region2: #{tpu_custom_call.1} parent=1 // pred_check
      _
    $region3: #{tpu_custom_call.1} parent=1 // pred_check_branch
      %21 = sbr.rel (0) target = $region5
    $region4: #{tpu_custom_call.1} parent=1 // pred_region
      _
    $region5: #{tpu_custom_call.1} parent=1 // pred_fallthru
      _
    // Predicated region
    $region6: #{tpu_custom_call.1} parent=1 // pred_check
      _
    $region7: #{tpu_custom_call.1} parent=1 // pred_check_branch
      %23 = sbr.rel (0) target = $region9
    $region8: #{tpu_custom_call.1} parent=1 // pred_region
      %s25 = ssub.s32 3840, 3840
      %26 = vsyncadd [#allocation5], %s25
      %s27 = sshll.u32 [#allocation4], 4
      %s28 = int_to_ptr.vmem [resolvable:$true] %s27
      %33 = dma.hbm_to_vmem [thread:$0]  %s2, 3840, %s28, [#allocation5], 256, 256, 16
    $region9: #{tpu_custom_call.1} parent=1 // pred_fallthru
      _
    // Predicated region
    $region10: #{tpu_custom_call.1} parent=1 // pred_check
      _
    $region11: #{tpu_custom_call.1} parent=1 // pred_check_branch
      %35 = sbr.rel (0) target = $region13
    $region12: #{tpu_custom_call.1} parent=1 // pred_region
      %s37 = ssub.s32 3840, 3840
      %38 = vsyncadd [#allocation8], %s37
      %s39 = sshll.u32 [#allocation7], 4
      %s40 = int_to_ptr.vmem [resolvable:$true] %s39
      %45 = dma.hbm_to_vmem [thread:$0]  %s3, 3840, %s40, [#allocation8], 256, 256, 16
    $region13: #{tpu_custom_call.1} parent=1 // pred_fallthru
      _
    // Predicated region
    $region14: #{tpu_custom_call.1} parent=1 // pred_check
      _
    $region15: #{tpu_custom_call.1} parent=1 // pred_check_branch
      %47 = sbr.rel (0) target = $region17
    $region16: #{tpu_custom_call.1} parent=1 // pred_region
      _
    $region17: #{tpu_custom_call.1} parent=1 // pred_fallthru
      _
    // Predicated region
    $region18: #{tpu_custom_call.1} parent=1 // pred_check
      _
    $region19: #{tpu_custom_call.1} parent=1 // pred_check_branch
      %49 = sbr.rel (0) target = $region21
    $region20: #{tpu_custom_call.1} parent=1 // pred_region
      %s51 = ssub.s32 4096, 4096
      %52 = vsyncadd [#allocation8], %s51
      %s53 = sshll.u32 [#allocation9], 4
      %s54 = int_to_ptr.vmem [resolvable:$true] %s53
      %59 = dma.hbm_to_vmem [thread:$0]  %s5, 4096, %s54, [#allocation8], 128, 128, 8
    $region21: #{tpu_custom_call.1} parent=1 // pred_fallthru
      _
    // Predicated region
    $region22: #{tpu_custom_call.1} parent=1 // pred_check
      _
    $region23: #{tpu_custom_call.1} parent=1 // pred_check_branch
      %61 = sbr.rel (0) target = $region25
    $region24: #{tpu_custom_call.1} parent=1 // pred_region
      %62 = dma.done [#allocation5], 3840
    $region25: #{tpu_custom_call.1} parent=1 // pred_fallthru
      _
    // Predicated region
    $region26: #{tpu_custom_call.1} parent=1 // pred_check
      _
    $region27: #{tpu_custom_call.1} parent=1 // pred_check_branch
      %64 = sbr.rel (0) target = $region29
    $region28: #{tpu_custom_call.1} parent=1 // pred_region
      %65 = dma.done [#allocation8], 3840
    $region29: #{tpu_custom_call.1} parent=1 // pred_fallthru
      _
    // Predicated region
    $region30: #{tpu_custom_call.1} parent=1 // pred_check
      _
    $region31: #{tpu_custom_call.1} parent=1 // pred_check_branch
      %67 = sbr.rel (0) target = $region33
    $region32: #{tpu_custom_call.1} parent=1 // pred_region
      %68 = dma.done [#allocation8], 4096
    $region33: #{tpu_custom_call.1} parent=1 // pred_fallthru
      _
    %v69 = vld [vmem:[#allocation4] sm:$0xff]
    %v70 = vld [vmem:[#allocation4 + $0x8] sm:$0xff]
    %v71 = vld [vmem:[#allocation4 + $0x10] sm:$0xff]
    %v72 = vld [vmem:[#allocation4 + $0x18] sm:$0xff]
    %v73 = vld [vmem:[#allocation4 + $0x20] sm:$0xff]
    %v74 = vld [vmem:[#allocation4 + $0x28] sm:$0xff]
    %v75 = vld [vmem:[#allocation4 + $0x30] sm:$0xff]
    %v76 = vld [vmem:[#allocation4 + $0x38] sm:$0xff]
    %v77 = vld [vmem:[#allocation4 + $0x40] sm:$0xff]
    %v78 = vld [vmem:[#allocation4 + $0x48] sm:$0xff]
    %v79 = vld [vmem:[#allocation4 + $0x50] sm:$0xff]
    %v80 = vld [vmem:[#allocation4 + $0x58] sm:$0xff]
    %v81 = vld [vmem:[#allocation4 + $0x60] sm:$0xff]
    %v82 = vld [vmem:[#allocation4 + $0x68] sm:$0xff]
    %v83 = vld [vmem:[#allocation4 + $0x70] sm:$0xff]
    %v84 = vld [vmem:[#allocation4 + $0x78] sm:$0xff]
    %v85 = vld [vmem:[#allocation4 + $0x80] sm:$0xff]
    %v86 = vld [vmem:[#allocation4 + $0x88] sm:$0xff]
    %v87 = vld [vmem:[#allocation4 + $0x90] sm:$0xff]
    %v88 = vld [vmem:[#allocation4 + $0x98] sm:$0xff]
    %v89 = vld [vmem:[#allocation4 + $0xa0] sm:$0xff]
    %v90 = vld [vmem:[#allocation4 + $0xa8] sm:$0xff]
    %v91 = vld [vmem:[#allocation4 + $0xb0] sm:$0xff]
    %v92 = vld [vmem:[#allocation4 + $0xb8] sm:$0xff]
    %v93 = vld [vmem:[#allocation4 + $0xc0] sm:$0xff]
    %v94 = vld [vmem:[#allocation4 + $0xc8] sm:$0xff]
    %v95 = vld [vmem:[#allocation4 + $0xd0] sm:$0xff]
    %v96 = vld [vmem:[#allocation4 + $0xe0] sm:$0xff]
    %v97 = vld [vmem:[%s1] sm:$0xff]
    %v98 = vlaneseq
    %v99 = vshrl.u32 %v98, 7
    %v100 = vsub.s32 0, %v99
    %v101 = vrot.slane %v93, %v100
    %v102 = vlaneseq
    %v103 = vshrl.u32 %v102, 7
    %v104 = vsub.s32 0, %v103
    %v105 = vrot.slane %v94, %v104
    %vm106 = vcmask 261120
    %v108 = vsel %vm106, %v97, 0
    %110 = vmatprep.subr.mxu0 0.0
    %111 = vmatpush1.msra.mxu0 0.0
    %112 = vmatprep.subr.mxu0 0.0
    %113 = vmatpush1.msra.mxu0 0.0
    %114 = vmatprep.subr.mxu0 0.0
    %115 = vmatpush1.msra.mxu0 0.0
    %116 = vmatprep.subr.mxu0 0.0
    %117 = vmatpush1.msra.mxu0 0.0
    %118 = vmatprep.subr.mxu0 0.0
    %119 = vmatpush1.msra.mxu0 0.0
    %120 = vmatprep.subr.mxu0 0.0
    %121 = vmatpush1.msra.mxu0 0.0
    %122 = vmatprep.subr.mxu0 0.0
    %123 = vmatpush1.msra.mxu0 0.0
    %124 = vmatprep.subr.mxu0 0.0
    %125 = vmatpush1.msra.mxu0 0.0
    %126 = vmatprep.subr.mxu0 0.0
    %127 = vmatpush1.msra.mxu0 0.0
    %128 = vmatprep.subr.mxu0 0.0
    %129 = vmatpush1.msra.mxu0 0.0
    %130 = vmatprep.subr.mxu0 0.0
    %131 = vmatpush1.msra.mxu0 0.0
    %132 = vmatprep.subr.mxu0 0.0
    %133 = vmatpush1.msra.mxu0 0.0
    %134 = vmatprep.subr.mxu0 %v76
    %135 = vmatpush1.msra.mxu0 %v75
    %136 = vmatprep.subr.mxu0 %v74
    %137 = vmatpush1.msra.mxu0 %v73
    %138 = vmatprep.subr.mxu0 %v72
    %139 = vmatpush1.msra.mxu0 %v71
    %140 = vmatprep.subr.mxu0 %v70
    %141 = vmatpush1.msra.mxu0 %v69
    %142 = vmatprep.subr.mxu0 0.0
    %143 = vmatpush2.msra.mxu0 0.0
    %144 = vmatprep.subr.mxu0 0.0
    %145 = vmatpush2.msra.mxu0 0.0
    %146 = vmatprep.subr.mxu0 0.0
    %147 = vmatpush2.msra.mxu0 0.0
    %148 = vmatprep.subr.mxu0 0.0
    %149 = vmatpush2.msra.mxu0 0.0
    %150 = vmatprep.subr.mxu0 0.0
    %151 = vmatpush2.msra.mxu0 0.0
    %152 = vmatprep.subr.mxu0 0.0
    %153 = vmatpush2.msra.mxu0 0.0
    %154 = vmatprep.subr.mxu0 0.0
    %155 = vmatpush2.msra.mxu0 0.0
    %156 = vmatprep.subr.mxu0 0.0
    %157 = vmatpush2.msra.mxu0 0.0
    %158 = vmatprep.subr.mxu0 0.0
    %159 = vmatpush2.msra.mxu0 0.0
    %160 = vmatprep.subr.mxu0 0.0
    %161 = vmatpush2.msra.mxu0 0.0
    %162 = vmatprep.subr.mxu0 0.0
    %163 = vmatpush2.msra.mxu0 0.0
    %164 = vmatprep.subr.mxu0 0.0
    %165 = vmatpush2.msra.mxu0 0.0
    %166 = vmatprep.subr.mxu0 0.0
    %167 = vmatpush2.msra.mxu0 0.0
    %168 = vmatprep.subr.mxu0 0.0
    %169 = vmatpush2.msra.mxu0 0.0
    %170 = vmatprep.subr.mxu0 0.0
    %171 = vmatpush2.msra.mxu0 0.0
    %172 = vmatprep.subr.mxu0 0.0
    %173 = vmatpush2.msra.mxu0 0.0
    %174 = vmatprep.mubr.f32.mxu0 0.0
    %175 = vmatmul.mubr.f32.gmra.mxu0 %v108
    %v176 = vpop.f32.mrf.mxu0
    %v177 = vadd.f32 %v101, %v176
    %v178 = vpop.f32.mrf.mxu0
    %v179 = vadd.f32 %v105, %v178
    %180 = vdwg.mxu0
    %vm181 = vcmask 523264
    %v183 = vsel %vm181, %v95, 0
    %185 = vmatprep.subr.mxu0 0.0
    %186 = vmatpush1.msra.mxu0 0.0
    %187 = vmatprep.subr.mxu0 0.0
    %188 = vmatpush1.msra.mxu0 0.0
    %189 = vmatprep.subr.mxu0 0.0
    %190 = vmatpush1.msra.mxu0 0.0
    %191 = vmatprep.subr.mxu0 0.0
    %192 = vmatpush1.msra.mxu0 0.0
    %193 = vmatprep.subr.mxu0 0.0
    %194 = vmatpush1.msra.mxu0 0.0
    %195 = vmatprep.subr.mxu0 0.0
    %196 = vmatpush1.msra.mxu0 0.0
    %197 = vmatprep.subr.mxu0 0.0
    %198 = vmatpush1.msra.mxu0 0.0
    %199 = vmatprep.subr.mxu0 0.0
    %200 = vmatpush1.msra.mxu0 0.0
    %201 = vmatprep.subr.mxu0 %v92
    %202 = vmatpush1.msra.mxu0 %v91
    %203 = vmatprep.subr.mxu0 %v90
    %204 = vmatpush1.msra.mxu0 %v89
    %205 = vmatprep.subr.mxu0 %v88
    %206 = vmatpush1.msra.mxu0 %v87
    %207 = vmatprep.subr.mxu0 %v86
    %208 = vmatpush1.msra.mxu0 %v85
    %209 = vmatprep.subr.mxu0 %v84
    %210 = vmatpush1.msra.mxu0 %v83
    %211 = vmatprep.subr.mxu0 %v82
    %212 = vmatpush1.msra.mxu0 %v81
    %213 = vmatprep.subr.mxu0 %v80
    %214 = vmatpush1.msra.mxu0 %v79
    %215 = vmatprep.subr.mxu0 %v78
    %216 = vmatpush1.msra.mxu0 %v77
    %217 = vmatprep.subr.mxu0 0.0
    %218 = vmatpush2.msra.mxu0 0.0
    %219 = vmatprep.subr.mxu0 0.0
    %220 = vmatpush2.msra.mxu0 0.0
    %221 = vmatprep.subr.mxu0 0.0
    %222 = vmatpush2.msra.mxu0 0.0
    %223 = vmatprep.subr.mxu0 0.0
    %224 = vmatpush2.msra.mxu0 0.0
    %225 = vmatprep.subr.mxu0 0.0
    %226 = vmatpush2.msra.mxu0 0.0
    %227 = vmatprep.subr.mxu0 0.0
    %228 = vmatpush2.msra.mxu0 0.0
    %229 = vmatprep.subr.mxu0 0.0
    %230 = vmatpush2.msra.mxu0 0.0
    %231 = vmatprep.subr.mxu0 0.0
    %232 = vmatpush2.msra.mxu0 0.0
    %233 = vmatprep.subr.mxu0 0.0
    %234 = vmatpush2.msra.mxu0 0.0
    %235 = vmatprep.subr.mxu0 0.0
    %236 = vmatpush2.msra.mxu0 0.0
    %237 = vmatprep.subr.mxu0 0.0
    %238 = vmatpush2.msra.mxu0 0.0
    %239 = vmatprep.subr.mxu0 0.0
    %240 = vmatpush2.msra.mxu0 0.0
    %241 = vmatprep.subr.mxu0 0.0
    %242 = vmatpush2.msra.mxu0 0.0
    %243 = vmatprep.subr.mxu0 0.0
    %244 = vmatpush2.msra.mxu0 0.0
    %245 = vmatprep.subr.mxu0 0.0
    %246 = vmatpush2.msra.mxu0 0.0
    %247 = vmatprep.subr.mxu0 0.0
    %248 = vmatpush2.msra.mxu0 0.0
    %249 = vmatprep.mubr.f32.mxu0 0.0
    %250 = vmatmul.mubr.f32.gmra.mxu0 %v183
    %v251 = vpop.f32.mrf.mxu0
    %v252 = vadd.f32 %v177, %v251
    %v253 = vpop.f32.mrf.mxu0
    %v254 = vadd.f32 %v179, %v253
    %255 = vdwg.mxu0
    %v256 = vxor.u32 %v252, 2147483648
    %v257 = vxor.u32 %v254, 2147483648
    %v258 = vmul.f32 %v256, 1.442695
    %v259 = vpow.pop %v258
    %v260 = vmul.f32 %v257, 1.442695
    %v261 = vpow.pop %v260
    %v262 = vadd.f32 %v259, 1.0
    %v263 = vadd.f32 %v261, 1.0
    %v264 = vrcp.pop %v262
    %v265 = vmul.f32 1.0, %v264
    %v266 = vrcp.pop %v263
    %v267 = vmul.f32 1.0, %v266
    %v268 = vtanh.pop %v254
    %270 = vrot.lane.b32.xlu0 %v96, 64
    %v271 = vpop.permute.xlu0 %270
    %v273 = vmul.f32 %v265, %v271
    %275 = vrot.lane.b32.xlu0 %v268, 64
    %v276 = vpop.permute.xlu0 %275
    %v278 = vmul.f32 %v265, %v276
    %280 = vrot.lane.b32.xlu0 %v278, 64
    %v281 = vpop.permute.xlu0 %280
    %v283 = vadd.f32 %v273, %v281
    %v284 = vtanh.pop %v283
    %286 = vrot.lane.b32.xlu0 %v284, 64
    %v287 = vpop.permute.xlu0 %286
    %v289 = vmul.f32 %v267, %v287
    %v292 = vrot.slane %v177, 1
    %v293 = vrot.slane %v179, 1
    %v297 = vsel %vm181, %v289, 0
    %299 = vmatprep.subr.mxu0 0.0
    %300 = vmatpush1.msra.mxu0 0.0
    %301 = vmatprep.subr.mxu0 0.0
    %302 = vmatpush1.msra.mxu0 0.0
    %303 = vmatprep.subr.mxu0 0.0
    %304 = vmatpush1.msra.mxu0 0.0
    %305 = vmatprep.subr.mxu0 0.0
    %306 = vmatpush1.msra.mxu0 0.0
    %307 = vmatprep.subr.mxu0 0.0
    %308 = vmatpush1.msra.mxu0 0.0
    %309 = vmatprep.subr.mxu0 0.0
    %310 = vmatpush1.msra.mxu0 0.0
    %311 = vmatprep.subr.mxu0 0.0
    %312 = vmatpush1.msra.mxu0 0.0
    %313 = vmatprep.subr.mxu0 0.0
    %314 = vmatpush1.msra.mxu0 0.0
    %315 = vmatprep.subr.mxu0 %v92
    %316 = vmatpush1.msra.mxu0 %v91
    %317 = vmatprep.subr.mxu0 %v90
    %318 = vmatpush1.msra.mxu0 %v89
    %319 = vmatprep.subr.mxu0 %v88
    %320 = vmatpush1.msra.mxu0 %v87
    %321 = vmatprep.subr.mxu0 %v86
    %322 = vmatpush1.msra.mxu0 %v85
    %323 = vmatprep.subr.mxu0 %v84
    %324 = vmatpush1.msra.mxu0 %v83
    %325 = vmatprep.subr.mxu0 %v82
    %326 = vmatpush1.msra.mxu0 %v81
    %327 = vmatprep.subr.mxu0 %v80
    %328 = vmatpush1.msra.mxu0 %v79
    %329 = vmatprep.subr.mxu0 %v78
    %330 = vmatpush1.msra.mxu0 %v77
    %331 = vmatprep.subr.mxu0 0.0
    %332 = vmatpush2.msra.mxu0 0.0
    %333 = vmatprep.subr.mxu0 0.0
    %334 = vmatpush2.msra.mxu0 0.0
    %335 = vmatprep.subr.mxu0 0.0
    %336 = vmatpush2.msra.mxu0 0.0
    %337 = vmatprep.subr.mxu0 0.0
    %338 = vmatpush2.msra.mxu0 0.0
    %339 = vmatprep.subr.mxu0 0.0
    %340 = vmatpush2.msra.mxu0 0.0
    %341 = vmatprep.subr.mxu0 0.0
    %342 = vmatpush2.msra.mxu0 0.0
    %343 = vmatprep.subr.mxu0 0.0
    %344 = vmatpush2.msra.mxu0 0.0
    %345 = vmatprep.subr.mxu0 0.0
    %346 = vmatpush2.msra.mxu0 0.0
    %347 = vmatprep.subr.mxu0 0.0
    %348 = vmatpush2.msra.mxu0 0.0
    %349 = vmatprep.subr.mxu0 0.0
    %350 = vmatpush2.msra.mxu0 0.0
    %351 = vmatprep.subr.mxu0 0.0
    %352 = vmatpush2.msra.mxu0 0.0
    %353 = vmatprep.subr.mxu0 0.0
    %354 = vmatpush2.msra.mxu0 0.0
    %355 = vmatprep.subr.mxu0 0.0
    %356 = vmatpush2.msra.mxu0 0.0
    %357 = vmatprep.subr.mxu0 0.0
    %358 = vmatpush2.msra.mxu0 0.0
    %359 = vmatprep.subr.mxu0 0.0
    %360 = vmatpush2.msra.mxu0 0.0
    %361 = vmatprep.subr.mxu0 0.0
    %362 = vmatpush2.msra.mxu0 0.0
    %363 = vmatprep.mubr.f32.mxu0 0.0
    %364 = vmatmul.mubr.f32.gmra.mxu0 %v297
    %v365 = vpop.f32.mrf.mxu0
    %v366 = vadd.f32 %v292, %v365
    %v367 = vpop.f32.mrf.mxu0
    %v368 = vadd.f32 %v293, %v367
    %369 = vdwg.mxu0
    %v370 = vxor.u32 %v366, 2147483648
    %v371 = vxor.u32 %v368, 2147483648
    %v372 = vmul.f32 %v370, 1.442695
    %v373 = vpow.pop %v372
    %v374 = vmul.f32 %v371, 1.442695
    %v375 = vpow.pop %v374
    %v376 = vadd.f32 %v373, 1.0
    %v377 = vadd.f32 %v375, 1.0
    %v378 = vrcp.pop %v376
    %v379 = vmul.f32 1.0, %v378
    %v380 = vrcp.pop %v377
    %v381 = vmul.f32 1.0, %v380
    %v382 = vtanh.pop %v368
    %v383 = vmul.f32 %v379, %v283
    %385 = vrot.lane.b32.xlu0 %v382, 64
    %v386 = vpop.permute.xlu0 %385
    %v388 = vmul.f32 %v379, %v386
    %390 = vrot.lane.b32.xlu0 %v388, 64
    %v391 = vpop.permute.xlu0 %390
    %v393 = vadd.f32 %v383, %v391
    %v394 = vtanh.pop %v393
    %396 = vrot.lane.b32.xlu0 %v394, 64
    %v397 = vpop.permute.xlu0 %396
    %v399 = vmul.f32 %v381, %v397
    %v400 = vrot.slane %v177, 2
    %v401 = vrot.slane %v179, 2
    %v405 = vsel %vm181, %v399, 0
    %407 = vmatprep.subr.mxu0 0.0
    %408 = vmatpush1.msra.mxu0 0.0
    %409 = vmatprep.subr.mxu0 0.0
    %410 = vmatpush1.msra.mxu0 0.0
    %411 = vmatprep.subr.mxu0 0.0
    %412 = vmatpush1.msra.mxu0 0.0
    %413 = vmatprep.subr.mxu0 0.0
    %414 = vmatpush1.msra.mxu0 0.0
    %415 = vmatprep.subr.mxu0 0.0
    %416 = vmatpush1.msra.mxu0 0.0
    %417 = vmatprep.subr.mxu0 0.0
    %418 = vmatpush1.msra.mxu0 0.0
    %419 = vmatprep.subr.mxu0 0.0
    %420 = vmatpush1.msra.mxu0 0.0
    %421 = vmatprep.subr.mxu0 0.0
    %422 = vmatpush1.msra.mxu0 0.0
    %423 = vmatprep.subr.mxu0 %v92
    %424 = vmatpush1.msra.mxu0 %v91
    %425 = vmatprep.subr.mxu0 %v90
    %426 = vmatpush1.msra.mxu0 %v89
    %427 = vmatprep.subr.mxu0 %v88
    %428 = vmatpush1.msra.mxu0 %v87
    %429 = vmatprep.subr.mxu0 %v86
    %430 = vmatpush1.msra.mxu0 %v85
    %431 = vmatprep.subr.mxu0 %v84
    %432 = vmatpush1.msra.mxu0 %v83
    %433 = vmatprep.subr.mxu0 %v82
    %434 = vmatpush1.msra.mxu0 %v81
    %435 = vmatprep.subr.mxu0 %v80
    %436 = vmatpush1.msra.mxu0 %v79
    %437 = vmatprep.subr.mxu0 %v78
    %438 = vmatpush1.msra.mxu0 %v77
    %439 = vmatprep.subr.mxu0 0.0
    %440 = vmatpush2.msra.mxu0 0.0
    %441 = vmatprep.subr.mxu0 0.0
    %442 = vmatpush2.msra.mxu0 0.0
    %443 = vmatprep.subr.mxu0 0.0
    %444 = vmatpush2.msra.mxu0 0.0
    %445 = vmatprep.subr.mxu0 0.0
    %446 = vmatpush2.msra.mxu0 0.0
    %447 = vmatprep.subr.mxu0 0.0
    %448 = vmatpush2.msra.mxu0 0.0
    %449 = vmatprep.subr.mxu0 0.0
    %450 = vmatpush2.msra.mxu0 0.0
    %451 = vmatprep.subr.mxu0 0.0
    %452 = vmatpush2.msra.mxu0 0.0
    %453 = vmatprep.subr.mxu0 0.0
    %454 = vmatpush2.msra.mxu0 0.0
    %455 = vmatprep.subr.mxu0 0.0
    %456 = vmatpush2.msra.mxu0 0.0
    %457 = vmatprep.subr.mxu0 0.0
    %458 = vmatpush2.msra.mxu0 0.0
    %459 = vmatprep.subr.mxu0 0.0
    %460 = vmatpush2.msra.mxu0 0.0
    %461 = vmatprep.subr.mxu0 0.0
    %462 = vmatpush2.msra.mxu0 0.0
    %463 = vmatprep.subr.mxu0 0.0
    %464 = vmatpush2.msra.mxu0 0.0
    %465 = vmatprep.subr.mxu0 0.0
    %466 = vmatpush2.msra.mxu0 0.0
    %467 = vmatprep.subr.mxu0 0.0
    %468 = vmatpush2.msra.mxu0 0.0
    %469 = vmatprep.subr.mxu0 0.0
    %470 = vmatpush2.msra.mxu0 0.0
    %471 = vmatprep.mubr.f32.mxu0 0.0
    %472 = vmatmul.mubr.f32.gmra.mxu0 %v405
    %v473 = vpop.f32.mrf.mxu0
    %v474 = vadd.f32 %v400, %v473
    %v475 = vpop.f32.mrf.mxu0
    %v476 = vadd.f32 %v401, %v475
    %477 = vdwg.mxu0
    %v478 = vxor.u32 %v474, 2147483648
    %v479 = vxor.u32 %v476, 2147483648
    %v480 = vmul.f32 %v478, 1.442695
    %v481 = vpow.pop %v480
    %v482 = vmul.f32 %v479, 1.442695
    %v483 = vpow.pop %v482
    %v484 = vadd.f32 %v481, 1.0
    %v485 = vadd.f32 %v483, 1.0
    %v486 = vrcp.pop %v484
    %v487 = vmul.f32 1.0, %v486
    %v488 = vrcp.pop %v485
    %v489 = vmul.f32 1.0, %v488
    %v490 = vtanh.pop %v476
    %v491 = vmul.f32 %v487, %v393
    %493 = vrot.lane.b32.xlu0 %v490, 64
    %v494 = vpop.permute.xlu0 %493
    %v496 = vmul.f32 %v487, %v494
    %498 = vrot.lane.b32.xlu0 %v496, 64
    %v499 = vpop.permute.xlu0 %498
    %v501 = vadd.f32 %v491, %v499
    %v502 = vtanh.pop %v501
    %504 = vrot.lane.b32.xlu0 %v502, 64
    %v505 = vpop.permute.xlu0 %504
    %v507 = vmul.f32 %v489, %v505
    %v508 = vrot.slane %v177, 3
    %v509 = vrot.slane %v179, 3
    %v513 = vsel %vm181, %v507, 0
    %515 = vmatprep.subr.mxu0 0.0
    %516 = vmatpush1.msra.mxu0 0.0
    %517 = vmatprep.subr.mxu0 0.0
    %518 = vmatpush1.msra.mxu0 0.0
    %519 = vmatprep.subr.mxu0 0.0
    %520 = vmatpush1.msra.mxu0 0.0
    %521 = vmatprep.subr.mxu0 0.0
    %522 = vmatpush1.msra.mxu0 0.0
    %523 = vmatprep.subr.mxu0 0.0
    %524 = vmatpush1.msra.mxu0 0.0
    %525 = vmatprep.subr.mxu0 0.0
    %526 = vmatpush1.msra.mxu0 0.0
    %527 = vmatprep.subr.mxu0 0.0
    %528 = vmatpush1.msra.mxu0 0.0
    %529 = vmatprep.subr.mxu0 0.0
    %530 = vmatpush1.msra.mxu0 0.0
    %531 = vmatprep.subr.mxu0 %v92
    %532 = vmatpush1.msra.mxu0 %v91
    %533 = vmatprep.subr.mxu0 %v90
    %534 = vmatpush1.msra.mxu0 %v89
    %535 = vmatprep.subr.mxu0 %v88
    %536 = vmatpush1.msra.mxu0 %v87
    %537 = vmatprep.subr.mxu0 %v86
    %538 = vmatpush1.msra.mxu0 %v85
    %539 = vmatprep.subr.mxu0 %v84
    %540 = vmatpush1.msra.mxu0 %v83
    %541 = vmatprep.subr.mxu0 %v82
    %542 = vmatpush1.msra.mxu0 %v81
    %543 = vmatprep.subr.mxu0 %v80
    %544 = vmatpush1.msra.mxu0 %v79
    %545 = vmatprep.subr.mxu0 %v78
    %546 = vmatpush1.msra.mxu0 %v77
    %547 = vmatprep.subr.mxu0 0.0
    %548 = vmatpush2.msra.mxu0 0.0
    %549 = vmatprep.subr.mxu0 0.0
    %550 = vmatpush2.msra.mxu0 0.0
    %551 = vmatprep.subr.mxu0 0.0
    %552 = vmatpush2.msra.mxu0 0.0
    %553 = vmatprep.subr.mxu0 0.0
    %554 = vmatpush2.msra.mxu0 0.0
    %555 = vmatprep.subr.mxu0 0.0
    %556 = vmatpush2.msra.mxu0 0.0
    %557 = vmatprep.subr.mxu0 0.0
    %558 = vmatpush2.msra.mxu0 0.0
    %559 = vmatprep.subr.mxu0 0.0
    %560 = vmatpush2.msra.mxu0 0.0
    %561 = vmatprep.subr.mxu0 0.0
    %562 = vmatpush2.msra.mxu0 0.0
    %563 = vmatprep.subr.mxu0 0.0
    %564 = vmatpush2.msra.mxu0 0.0
    %565 = vmatprep.subr.mxu0 0.0
    %566 = vmatpush2.msra.mxu0 0.0
    %567 = vmatprep.subr.mxu0 0.0
    %568 = vmatpush2.msra.mxu0 0.0
    %569 = vmatprep.subr.mxu0 0.0
    %570 = vmatpush2.msra.mxu0 0.0
    %571 = vmatprep.subr.mxu0 0.0
    %572 = vmatpush2.msra.mxu0 0.0
    %573 = vmatprep.subr.mxu0 0.0
    %574 = vmatpush2.msra.mxu0 0.0
    %575 = vmatprep.subr.mxu0 0.0
    %576 = vmatpush2.msra.mxu0 0.0
    %577 = vmatprep.subr.mxu0 0.0
    %578 = vmatpush2.msra.mxu0 0.0
    %579 = vmatprep.mubr.f32.mxu0 0.0
    %580 = vmatmul.mubr.f32.gmra.mxu0 %v513
    %v581 = vpop.f32.mrf.mxu0
    %v582 = vadd.f32 %v508, %v581
    %v583 = vpop.f32.mrf.mxu0
    %v584 = vadd.f32 %v509, %v583
    %585 = vdwg.mxu0
    %v586 = vxor.u32 %v582, 2147483648
    %v587 = vxor.u32 %v584, 2147483648
    %v588 = vmul.f32 %v586, 1.442695
    %v589 = vpow.pop %v588
    %v590 = vmul.f32 %v587, 1.442695
    %v591 = vpow.pop %v590
    %v592 = vadd.f32 %v589, 1.0
    %v593 = vadd.f32 %v591, 1.0
    %v594 = vrcp.pop %v592
    %v595 = vmul.f32 1.0, %v594
    %v596 = vrcp.pop %v593
    %v597 = vmul.f32 1.0, %v596
    %v598 = vtanh.pop %v584
    %v599 = vmul.f32 %v595, %v501
    %601 = vrot.lane.b32.xlu0 %v598, 64
    %v602 = vpop.permute.xlu0 %601
    %v604 = vmul.f32 %v595, %v602
    %606 = vrot.lane.b32.xlu0 %v604, 64
    %v607 = vpop.permute.xlu0 %606
    %v609 = vadd.f32 %v599, %v607
    %v610 = vtanh.pop %v609
    %612 = vrot.lane.b32.xlu0 %v610, 64
    %v613 = vpop.permute.xlu0 %612
    %v615 = vmul.f32 %v597, %v613
    %v616 = vrot.slane %v177, 4
    %v617 = vrot.slane %v179, 4
    %v621 = vsel %vm181, %v615, 0
    %623 = vmatprep.subr.mxu0 0.0
    %624 = vmatpush1.msra.mxu0 0.0
    %625 = vmatprep.subr.mxu0 0.0
    %626 = vmatpush1.msra.mxu0 0.0
    %627 = vmatprep.subr.mxu0 0.0
    %628 = vmatpush1.msra.mxu0 0.0
    %629 = vmatprep.subr.mxu0 0.0
    %630 = vmatpush1.msra.mxu0 0.0
    %631 = vmatprep.subr.mxu0 0.0
    %632 = vmatpush1.msra.mxu0 0.0
    %633 = vmatprep.subr.mxu0 0.0
    %634 = vmatpush1.msra.mxu0 0.0
    %635 = vmatprep.subr.mxu0 0.0
    %636 = vmatpush1.msra.mxu0 0.0
    %637 = vmatprep.subr.mxu0 0.0
    %638 = vmatpush1.msra.mxu0 0.0
    %639 = vmatprep.subr.mxu0 %v92
    %640 = vmatpush1.msra.mxu0 %v91
    %641 = vmatprep.subr.mxu0 %v90
    %642 = vmatpush1.msra.mxu0 %v89
    %643 = vmatprep.subr.mxu0 %v88
    %644 = vmatpush1.msra.mxu0 %v87
    %645 = vmatprep.subr.mxu0 %v86
    %646 = vmatpush1.msra.mxu0 %v85
    %647 = vmatprep.subr.mxu0 %v84
    %648 = vmatpush1.msra.mxu0 %v83
    %649 = vmatprep.subr.mxu0 %v82
    %650 = vmatpush1.msra.mxu0 %v81
    %651 = vmatprep.subr.mxu0 %v80
    %652 = vmatpush1.msra.mxu0 %v79
    %653 = vmatprep.subr.mxu0 %v78
    %654 = vmatpush1.msra.mxu0 %v77
    %655 = vmatprep.subr.mxu0 0.0
    %656 = vmatpush2.msra.mxu0 0.0
    %657 = vmatprep.subr.mxu0 0.0
    %658 = vmatpush2.msra.mxu0 0.0
    %659 = vmatprep.subr.mxu0 0.0
    %660 = vmatpush2.msra.mxu0 0.0
    %661 = vmatprep.subr.mxu0 0.0
    %662 = vmatpush2.msra.mxu0 0.0
    %663 = vmatprep.subr.mxu0 0.0
    %664 = vmatpush2.msra.mxu0 0.0
    %665 = vmatprep.subr.mxu0 0.0
    %666 = vmatpush2.msra.mxu0 0.0
    %667 = vmatprep.subr.mxu0 0.0
    %668 = vmatpush2.msra.mxu0 0.0
    %669 = vmatprep.subr.mxu0 0.0
    %670 = vmatpush2.msra.mxu0 0.0
    %671 = vmatprep.subr.mxu0 0.0
    %672 = vmatpush2.msra.mxu0 0.0
    %673 = vmatprep.subr.mxu0 0.0
    %674 = vmatpush2.msra.mxu0 0.0
    %675 = vmatprep.subr.mxu0 0.0
    %676 = vmatpush2.msra.mxu0 0.0
    %677 = vmatprep.subr.mxu0 0.0
    %678 = vmatpush2.msra.mxu0 0.0
    %679 = vmatprep.subr.mxu0 0.0
    %680 = vmatpush2.msra.mxu0 0.0
    %681 = vmatprep.subr.mxu0 0.0
    %682 = vmatpush2.msra.mxu0 0.0
    %683 = vmatprep.subr.mxu0 0.0
    %684 = vmatpush2.msra.mxu0 0.0
    %685 = vmatprep.subr.mxu0 0.0
    %686 = vmatpush2.msra.mxu0 0.0
    %687 = vmatprep.mubr.f32.mxu0 0.0
    %688 = vmatmul.mubr.f32.gmra.mxu0 %v621
    %v689 = vpop.f32.mrf.mxu0
    %v690 = vadd.f32 %v616, %v689
    %v691 = vpop.f32.mrf.mxu0
    %v692 = vadd.f32 %v617, %v691
    %693 = vdwg.mxu0
    %v694 = vxor.u32 %v690, 2147483648
    %v695 = vxor.u32 %v692, 2147483648
    %v696 = vmul.f32 %v694, 1.442695
    %v697 = vpow.pop %v696
    %v698 = vmul.f32 %v695, 1.442695
    %v699 = vpow.pop %v698
    %v700 = vadd.f32 %v697, 1.0
    %v701 = vadd.f32 %v699, 1.0
    %v702 = vrcp.pop %v700
    %v703 = vmul.f32 1.0, %v702
    %v704 = vrcp.pop %v701
    %v705 = vmul.f32 1.0, %v704
    %v706 = vtanh.pop %v692
    %v707 = vmul.f32 %v703, %v609
    %709 = vrot.lane.b32.xlu0 %v706, 64
    %v710 = vpop.permute.xlu0 %709
    %v712 = vmul.f32 %v703, %v710
    %714 = vrot.lane.b32.xlu0 %v712, 64
    %v715 = vpop.permute.xlu0 %714
    %v717 = vadd.f32 %v707, %v715
    %v718 = vtanh.pop %v717
    %720 = vrot.lane.b32.xlu0 %v718, 64
    %v721 = vpop.permute.xlu0 %720
    %v723 = vmul.f32 %v705, %v721
    %v724 = vrot.slane %v177, 5
    %v725 = vrot.slane %v179, 5
    %v729 = vsel %vm181, %v723, 0
    %731 = vmatprep.subr.mxu0 0.0
    %732 = vmatpush1.msra.mxu0 0.0
    %733 = vmatprep.subr.mxu0 0.0
    %734 = vmatpush1.msra.mxu0 0.0
    %735 = vmatprep.subr.mxu0 0.0
    %736 = vmatpush1.msra.mxu0 0.0
    %737 = vmatprep.subr.mxu0 0.0
    %738 = vmatpush1.msra.mxu0 0.0
    %739 = vmatprep.subr.mxu0 0.0
    %740 = vmatpush1.msra.mxu0 0.0
    %741 = vmatprep.subr.mxu0 0.0
    %742 = vmatpush1.msra.mxu0 0.0
    %743 = vmatprep.subr.mxu0 0.0
    %744 = vmatpush1.msra.mxu0 0.0
    %745 = vmatprep.subr.mxu0 0.0
    %746 = vmatpush1.msra.mxu0 0.0
    %747 = vmatprep.subr.mxu0 %v92
    %748 = vmatpush1.msra.mxu0 %v91
    %749 = vmatprep.subr.mxu0 %v90
    %750 = vmatpush1.msra.mxu0 %v89
    %751 = vmatprep.subr.mxu0 %v88
    %752 = vmatpush1.msra.mxu0 %v87
    %753 = vmatprep.subr.mxu0 %v86
    %754 = vmatpush1.msra.mxu0 %v85
    %755 = vmatprep.subr.mxu0 %v84
    %756 = vmatpush1.msra.mxu0 %v83
    %757 = vmatprep.subr.mxu0 %v82
    %758 = vmatpush1.msra.mxu0 %v81
    %759 = vmatprep.subr.mxu0 %v80
    %760 = vmatpush1.msra.mxu0 %v79
    %761 = vmatprep.subr.mxu0 %v78
    %762 = vmatpush1.msra.mxu0 %v77
    %763 = vmatprep.subr.mxu0 0.0
    %764 = vmatpush2.msra.mxu0 0.0
    %765 = vmatprep.subr.mxu0 0.0
    %766 = vmatpush2.msra.mxu0 0.0
    %767 = vmatprep.subr.mxu0 0.0
    %768 = vmatpush2.msra.mxu0 0.0
    %769 = vmatprep.subr.mxu0 0.0
    %770 = vmatpush2.msra.mxu0 0.0
    %771 = vmatprep.subr.mxu0 0.0
    %772 = vmatpush2.msra.mxu0 0.0
    %773 = vmatprep.subr.mxu0 0.0
    %774 = vmatpush2.msra.mxu0 0.0
    %775 = vmatprep.subr.mxu0 0.0
    %776 = vmatpush2.msra.mxu0 0.0
    %777 = vmatprep.subr.mxu0 0.0
    %778 = vmatpush2.msra.mxu0 0.0
    %779 = vmatprep.subr.mxu0 0.0
    %780 = vmatpush2.msra.mxu0 0.0
    %781 = vmatprep.subr.mxu0 0.0
    %782 = vmatpush2.msra.mxu0 0.0
    %783 = vmatprep.subr.mxu0 0.0
    %784 = vmatpush2.msra.mxu0 0.0
    %785 = vmatprep.subr.mxu0 0.0
    %786 = vmatpush2.msra.mxu0 0.0
    %787 = vmatprep.subr.mxu0 0.0
    %788 = vmatpush2.msra.mxu0 0.0
    %789 = vmatprep.subr.mxu0 0.0
    %790 = vmatpush2.msra.mxu0 0.0
    %791 = vmatprep.subr.mxu0 0.0
    %792 = vmatpush2.msra.mxu0 0.0
    %793 = vmatprep.subr.mxu0 0.0
    %794 = vmatpush2.msra.mxu0 0.0
    %795 = vmatprep.mubr.f32.mxu0 0.0
    %796 = vmatmul.mubr.f32.gmra.mxu0 %v729
    %v797 = vpop.f32.mrf.mxu0
    %v798 = vadd.f32 %v724, %v797
    %v799 = vpop.f32.mrf.mxu0
    %v800 = vadd.f32 %v725, %v799
    %801 = vdwg.mxu0
    %v802 = vxor.u32 %v798, 2147483648
    %v803 = vxor.u32 %v800, 2147483648
    %v804 = vmul.f32 %v802, 1.442695
    %v805 = vpow.pop %v804
    %v806 = vmul.f32 %v803, 1.442695
    %v807 = vpow.pop %v806
    %v808 = vadd.f32 %v805, 1.0
    %v809 = vadd.f32 %v807, 1.0
    %v810 = vrcp.pop %v808
    %v811 = vmul.f32 1.0, %v810
    %v812 = vrcp.pop %v809
    %v813 = vmul.f32 1.0, %v812
    %v814 = vtanh.pop %v800
    %v815 = vmul.f32 %v811, %v717
    %817 = vrot.lane.b32.xlu0 %v814, 64
    %v818 = vpop.permute.xlu0 %817
    %v820 = vmul.f32 %v811, %v818
    %822 = vrot.lane.b32.xlu0 %v820, 64
    %v823 = vpop.permute.xlu0 %822
    %v825 = vadd.f32 %v815, %v823
    %v826 = vtanh.pop %v825
    %828 = vrot.lane.b32.xlu0 %v826, 64
    %v829 = vpop.permute.xlu0 %828
    %v831 = vmul.f32 %v813, %v829
    %v832 = vrot.slane %v177, 6
    %v833 = vrot.slane %v179, 6
    %v837 = vsel %vm181, %v831, 0
    %839 = vmatprep.subr.mxu0 0.0
    %840 = vmatpush1.msra.mxu0 0.0
    %841 = vmatprep.subr.mxu0 0.0
    %842 = vmatpush1.msra.mxu0 0.0
    %843 = vmatprep.subr.mxu0 0.0
    %844 = vmatpush1.msra.mxu0 0.0
    %845 = vmatprep.subr.mxu0 0.0
    %846 = vmatpush1.msra.mxu0 0.0
    %847 = vmatprep.subr.mxu0 0.0
    %848 = vmatpush1.msra.mxu0 0.0
    %849 = vmatprep.subr.mxu0 0.0
    %850 = vmatpush1.msra.mxu0 0.0
    %851 = vmatprep.subr.mxu0 0.0
    %852 = vmatpush1.msra.mxu0 0.0
    %853 = vmatprep.subr.mxu0 0.0
    %854 = vmatpush1.msra.mxu0 0.0
    %855 = vmatprep.subr.mxu0 %v92
    %856 = vmatpush1.msra.mxu0 %v91
    %857 = vmatprep.subr.mxu0 %v90
    %858 = vmatpush1.msra.mxu0 %v89
    %859 = vmatprep.subr.mxu0 %v88
    %860 = vmatpush1.msra.mxu0 %v87
    %861 = vmatprep.subr.mxu0 %v86
    %862 = vmatpush1.msra.mxu0 %v85
    %863 = vmatprep.subr.mxu0 %v84
    %864 = vmatpush1.msra.mxu0 %v83
    %865 = vmatprep.subr.mxu0 %v82
    %866 = vmatpush1.msra.mxu0 %v81
    %867 = vmatprep.subr.mxu0 %v80
    %868 = vmatpush1.msra.mxu0 %v79
    %869 = vmatprep.subr.mxu0 %v78
    %870 = vmatpush1.msra.mxu0 %v77
    %871 = vmatprep.subr.mxu0 0.0
    %872 = vmatpush2.msra.mxu0 0.0
    %873 = vmatprep.subr.mxu0 0.0
    %874 = vmatpush2.msra.mxu0 0.0
    %875 = vmatprep.subr.mxu0 0.0
    %876 = vmatpush2.msra.mxu0 0.0
    %877 = vmatprep.subr.mxu0 0.0
    %878 = vmatpush2.msra.mxu0 0.0
    %879 = vmatprep.subr.mxu0 0.0
    %880 = vmatpush2.msra.mxu0 0.0
    %881 = vmatprep.subr.mxu0 0.0
    %882 = vmatpush2.msra.mxu0 0.0
    %883 = vmatprep.subr.mxu0 0.0
    %884 = vmatpush2.msra.mxu0 0.0
    %885 = vmatprep.subr.mxu0 0.0
    %886 = vmatpush2.msra.mxu0 0.0
    %887 = vmatprep.subr.mxu0 0.0
    %888 = vmatpush2.msra.mxu0 0.0
    %889 = vmatprep.subr.mxu0 0.0
    %890 = vmatpush2.msra.mxu0 0.0
    %891 = vmatprep.subr.mxu0 0.0
    %892 = vmatpush2.msra.mxu0 0.0
    %893 = vmatprep.subr.mxu0 0.0
    %894 = vmatpush2.msra.mxu0 0.0
    %895 = vmatprep.subr.mxu0 0.0
    %896 = vmatpush2.msra.mxu0 0.0
    %897 = vmatprep.subr.mxu0 0.0
    %898 = vmatpush2.msra.mxu0 0.0
    %899 = vmatprep.subr.mxu0 0.0
    %900 = vmatpush2.msra.mxu0 0.0
    %901 = vmatprep.subr.mxu0 0.0
    %902 = vmatpush2.msra.mxu0 0.0
    %903 = vmatprep.mubr.f32.mxu0 0.0
    %904 = vmatmul.mubr.f32.gmra.mxu0 %v837
    %v905 = vpop.f32.mrf.mxu0
    %v906 = vadd.f32 %v832, %v905
    %v907 = vpop.f32.mrf.mxu0
    %v908 = vadd.f32 %v833, %v907
    %909 = vdwg.mxu0
    %v910 = vxor.u32 %v906, 2147483648
    %v911 = vxor.u32 %v908, 2147483648
    %v912 = vmul.f32 %v910, 1.442695
    %v913 = vpow.pop %v912
    %v914 = vmul.f32 %v911, 1.442695
    %v915 = vpow.pop %v914
    %v916 = vadd.f32 %v913, 1.0
    %v917 = vadd.f32 %v915, 1.0
    %v918 = vrcp.pop %v916
    %v919 = vmul.f32 1.0, %v918
    %v920 = vrcp.pop %v917
    %v921 = vmul.f32 1.0, %v920
    %v922 = vtanh.pop %v908
    %v923 = vmul.f32 %v919, %v825
    %925 = vrot.lane.b32.xlu0 %v922, 64
    %v926 = vpop.permute.xlu0 %925
    %v928 = vmul.f32 %v919, %v926
    %930 = vrot.lane.b32.xlu0 %v928, 64
    %v931 = vpop.permute.xlu0 %930
    %v933 = vadd.f32 %v923, %v931
    %v934 = vtanh.pop %v933
    %936 = vrot.lane.b32.xlu0 %v934, 64
    %v937 = vpop.permute.xlu0 %936
    %v939 = vmul.f32 %v921, %v937
    %v940 = vrot.slane %v177, 7
    %v941 = vrot.slane %v179, 7
    %v945 = vsel %vm181, %v939, 0
    %947 = vmatprep.subr.mxu0 0.0
    %948 = vmatpush1.msra.mxu0 0.0
    %949 = vmatprep.subr.mxu0 0.0
    %950 = vmatpush1.msra.mxu0 0.0
    %951 = vmatprep.subr.mxu0 0.0
    %952 = vmatpush1.msra.mxu0 0.0
    %953 = vmatprep.subr.mxu0 0.0
    %954 = vmatpush1.msra.mxu0 0.0
    %955 = vmatprep.subr.mxu0 0.0
    %956 = vmatpush1.msra.mxu0 0.0
    %957 = vmatprep.subr.mxu0 0.0
    %958 = vmatpush1.msra.mxu0 0.0
    %959 = vmatprep.subr.mxu0 0.0
    %960 = vmatpush1.msra.mxu0 0.0
    %961 = vmatprep.subr.mxu0 0.0
    %962 = vmatpush1.msra.mxu0 0.0
    %963 = vmatprep.subr.mxu0 %v92
    %964 = vmatpush1.msra.mxu0 %v91
    %965 = vmatprep.subr.mxu0 %v90
    %966 = vmatpush1.msra.mxu0 %v89
    %967 = vmatprep.subr.mxu0 %v88
    %968 = vmatpush1.msra.mxu0 %v87
    %969 = vmatprep.subr.mxu0 %v86
    %970 = vmatpush1.msra.mxu0 %v85
    %971 = vmatprep.subr.mxu0 %v84
    %972 = vmatpush1.msra.mxu0 %v83
    %973 = vmatprep.subr.mxu0 %v82
    %974 = vmatpush1.msra.mxu0 %v81
    %975 = vmatprep.subr.mxu0 %v80
    %976 = vmatpush1.msra.mxu0 %v79
    %977 = vmatprep.subr.mxu0 %v78
    %978 = vmatpush1.msra.mxu0 %v77
    %979 = vmatprep.subr.mxu0 0.0
    %980 = vmatpush2.msra.mxu0 0.0
    %981 = vmatprep.subr.mxu0 0.0
    %982 = vmatpush2.msra.mxu0 0.0
    %983 = vmatprep.subr.mxu0 0.0
    %984 = vmatpush2.msra.mxu0 0.0
    %985 = vmatprep.subr.mxu0 0.0
    %986 = vmatpush2.msra.mxu0 0.0
    %987 = vmatprep.subr.mxu0 0.0
    %988 = vmatpush2.msra.mxu0 0.0
    %989 = vmatprep.subr.mxu0 0.0
    %990 = vmatpush2.msra.mxu0 0.0
    %991 = vmatprep.subr.mxu0 0.0
    %992 = vmatpush2.msra.mxu0 0.0
    %993 = vmatprep.subr.mxu0 0.0
    %994 = vmatpush2.msra.mxu0 0.0
    %995 = vmatprep.subr.mxu0 0.0
    %996 = vmatpush2.msra.mxu0 0.0
    %997 = vmatprep.subr.mxu0 0.0
    %998 = vmatpush2.msra.mxu0 0.0
    %999 = vmatprep.subr.mxu0 0.0
    %1000 = vmatpush2.msra.mxu0 0.0
    %1001 = vmatprep.subr.mxu0 0.0
    %1002 = vmatpush2.msra.mxu0 0.0
    %1003 = vmatprep.subr.mxu0 0.0
    %1004 = vmatpush2.msra.mxu0 0.0
    %1005 = vmatprep.subr.mxu0 0.0
    %1006 = vmatpush2.msra.mxu0 0.0
    %1007 = vmatprep.subr.mxu0 0.0
    %1008 = vmatpush2.msra.mxu0 0.0
    %1009 = vmatprep.subr.mxu0 0.0
    %1010 = vmatpush2.msra.mxu0 0.0
    %1011 = vmatprep.mubr.f32.mxu0 0.0
    %1012 = vmatmul.mubr.f32.gmra.mxu0 %v945
    %v1013 = vpop.f32.mrf.mxu0
    %v1014 = vadd.f32 %v940, %v1013
    %v1015 = vpop.f32.mrf.mxu0
    %v1016 = vadd.f32 %v941, %v1015
    %1017 = vdwg.mxu0
    %v1018 = vxor.u32 %v1014, 2147483648
    %v1019 = vxor.u32 %v1016, 2147483648
    %v1020 = vmul.f32 %v1018, 1.442695
    %v1021 = vpow.pop %v1020
    %v1022 = vmul.f32 %v1019, 1.442695
    %v1023 = vpow.pop %v1022
    %v1024 = vadd.f32 %v1021, 1.0
    %v1025 = vadd.f32 %v1023, 1.0
    %v1026 = vrcp.pop %v1024
    %v1027 = vmul.f32 1.0, %v1026
    %v1028 = vrcp.pop %v1025
    %v1029 = vmul.f32 1.0, %v1028
    %v1030 = vtanh.pop %v1016
    %v1031 = vmul.f32 %v1027, %v933
    %1033 = vrot.lane.b32.xlu0 %v1030, 64
    %v1034 = vpop.permute.xlu0 %1033
    %v1036 = vmul.f32 %v1027, %v1034
    %1038 = vrot.lane.b32.xlu0 %v1036, 64
    %v1039 = vpop.permute.xlu0 %1038
    %v1041 = vadd.f32 %v1031, %v1039
    %v1042 = vtanh.pop %v1041
    %1044 = vrot.lane.b32.xlu0 %v1042, 64
    %v1045 = vpop.permute.xlu0 %1044
    %v1047 = vmul.f32 %v1029, %v1045
    %v1048 = vrot.slane %v399, 7
    %v1050 = vrot.slane %v507, 6
    %v1052 = vrot.slane %v615, 5
    %v1054 = vrot.slane %v723, 4
    %v1056 = vrot.slane %v831, 3
    %v1058 = vrot.slane %v939, 2
    %v1061 = vrot.slane %v1047, 1
    %vm1063 = vcmask 1040384
    %v1064 = vsel %vm1063, %v289, %v1048
    %vm1065 = vcmask 1041408
    %v1066 = vsel %vm1065, %v1064, %v1050
    %vm1067 = vcmask 1042432
    %v1068 = vsel %vm1067, %v1066, %v1052
    %vm1069 = vcmask 1043456
    %v1070 = vsel %vm1069, %v1068, %v1054
    %vm1071 = vcmask 1044480
    %v1072 = vsel %vm1071, %v1070, %v1056
    %vm1073 = vcmask 1045504
    %v1074 = vsel %vm1073, %v1072, %v1058
    %vm1075 = vcmask 1046528
    %v1076 = vsel %vm1075, %v1074, %v1061
    %v1077 = vrot.slane %v939, 7
    %v1079 = vrot.slane %v831, 6
    %v1081 = vrot.slane %v723, 5
    %v1083 = vrot.slane %v615, 4
    %v1085 = vrot.slane %v507, 3
    %v1087 = vrot.slane %v399, 2
    %v1089 = vrot.slane %v289, 1
    %v1091 = vsel %vm1063, %v1047, %v1077
    %v1092 = vsel %vm1065, %v1091, %v1079
    %v1093 = vsel %vm1067, %v1092, %v1081
    %v1094 = vsel %vm1069, %v1093, %v1083
    %v1095 = vsel %vm1071, %v1094, %v1085
    %v1096 = vsel %vm1073, %v1095, %v1087
    %v1097 = vsel %vm1075, %v1096, %v1089
    %v1098 = vsel %vm106, %v1076, %v1097
    %v1099 = vld [vmem:[#allocation7] sm:$0xff]
    %v1100 = vld [vmem:[#allocation7 + $0x8] sm:$0xff]
    %v1101 = vld [vmem:[#allocation7 + $0x10] sm:$0xff]
    %v1102 = vld [vmem:[#allocation7 + $0x18] sm:$0xff]
    %v1103 = vld [vmem:[#allocation7 + $0x20] sm:$0xff]
    %v1104 = vld [vmem:[#allocation7 + $0x28] sm:$0xff]
    %v1105 = vld [vmem:[#allocation7 + $0x30] sm:$0xff]
    %v1106 = vld [vmem:[#allocation7 + $0x38] sm:$0xff]
    %v1107 = vld [vmem:[#allocation7 + $0x40] sm:$0xff]
    %v1108 = vld [vmem:[#allocation7 + $0x48] sm:$0xff]
    %v1109 = vld [vmem:[#allocation7 + $0x50] sm:$0xff]
    %v1110 = vld [vmem:[#allocation7 + $0x58] sm:$0xff]
    %v1111 = vld [vmem:[#allocation7 + $0x60] sm:$0xff]
    %v1112 = vld [vmem:[#allocation7 + $0x68] sm:$0xff]
    %v1113 = vld [vmem:[#allocation7 + $0x70] sm:$0xff]
    %v1114 = vld [vmem:[#allocation7 + $0x78] sm:$0xff]
    %v1115 = vld [vmem:[#allocation7 + $0x80] sm:$0xff]
    %v1116 = vld [vmem:[#allocation7 + $0x90] sm:$0xff]
    %v1117 = vld [vmem:[#allocation7 + $0xa0] sm:$0xff]
    %v1118 = vld [vmem:[#allocation7 + $0xb0] sm:$0xff]
    %v1119 = vld [vmem:[#allocation7 + $0xc0] sm:$0xff]
    %v1120 = vld [vmem:[#allocation7 + $0xd0] sm:$0xff]
    %v1121 = vld [vmem:[#allocation7 + $0xe0] sm:$0xff]
    %v1122 = vlaneseq
    %v1123 = vshrl.u32 %v1122, 7
    %v1124 = vsub.s32 0, %v1123
    %v1125 = vrot.slane %v1120, %v1124
    %v1126 = vlaneseq
    %v1127 = vshrl.u32 %v1126, 7
    %v1128 = vsub.s32 0, %v1127
    %v1129 = vrot.slane %v1121, %v1128
    %v1131 = vsel %vm181, %v1098, 0
    %1133 = vmatprep.subr.mxu0 0.0
    %1134 = vmatpush1.msra.mxu0 0.0
    %1135 = vmatprep.subr.mxu0 0.0
    %1136 = vmatpush1.msra.mxu0 0.0
    %1137 = vmatprep.subr.mxu0 0.0
    %1138 = vmatpush1.msra.mxu0 0.0
    %1139 = vmatprep.subr.mxu0 0.0
    %1140 = vmatpush1.msra.mxu0 0.0
    %1141 = vmatprep.subr.mxu0 0.0
    %1142 = vmatpush1.msra.mxu0 0.0
    %1143 = vmatprep.subr.mxu0 0.0
    %1144 = vmatpush1.msra.mxu0 0.0
    %1145 = vmatprep.subr.mxu0 0.0
    %1146 = vmatpush1.msra.mxu0 0.0
    %1147 = vmatprep.subr.mxu0 0.0
    %1148 = vmatpush1.msra.mxu0 0.0
    %1149 = vmatprep.subr.mxu0 %v1114
    %1150 = vmatpush1.msra.mxu0 %v1113
    %1151 = vmatprep.subr.mxu0 %v1112
    %1152 = vmatpush1.msra.mxu0 %v1111
    %1153 = vmatprep.subr.mxu0 %v1110
    %1154 = vmatpush1.msra.mxu0 %v1109
    %1155 = vmatprep.subr.mxu0 %v1108
    %1156 = vmatpush1.msra.mxu0 %v1107
    %1157 = vmatprep.subr.mxu0 %v1106
    %1158 = vmatpush1.msra.mxu0 %v1105
    %1159 = vmatprep.subr.mxu0 %v1104
    %1160 = vmatpush1.msra.mxu0 %v1103
    %1161 = vmatprep.subr.mxu0 %v1102
    %1162 = vmatpush1.msra.mxu0 %v1101
    %1163 = vmatprep.subr.mxu0 %v1100
    %1164 = vmatpush1.msra.mxu0 %v1099
    %1165 = vmatprep.subr.mxu0 0.0
    %1166 = vmatpush2.msra.mxu0 0.0
    %1167 = vmatprep.subr.mxu0 0.0
    %1168 = vmatpush2.msra.mxu0 0.0
    %1169 = vmatprep.subr.mxu0 0.0
    %1170 = vmatpush2.msra.mxu0 0.0
    %1171 = vmatprep.subr.mxu0 0.0
    %1172 = vmatpush2.msra.mxu0 0.0
    %1173 = vmatprep.subr.mxu0 0.0
    %1174 = vmatpush2.msra.mxu0 0.0
    %1175 = vmatprep.subr.mxu0 0.0
    %1176 = vmatpush2.msra.mxu0 0.0
    %1177 = vmatprep.subr.mxu0 0.0
    %1178 = vmatpush2.msra.mxu0 0.0
    %1179 = vmatprep.subr.mxu0 0.0
    %1180 = vmatpush2.msra.mxu0 0.0
    %1181 = vmatprep.subr.mxu0 0.0
    %1182 = vmatpush2.msra.mxu0 0.0
    %1183 = vmatprep.subr.mxu0 0.0
    %1184 = vmatpush2.msra.mxu0 0.0
    %1185 = vmatprep.subr.mxu0 0.0
    %1186 = vmatpush2.msra.mxu0 0.0
    %1187 = vmatprep.subr.mxu0 0.0
    %1188 = vmatpush2.msra.mxu0 0.0
    %1189 = vmatprep.subr.mxu0 0.0
    %1190 = vmatpush2.msra.mxu0 0.0
    %1191 = vmatprep.subr.mxu0 0.0
    %1192 = vmatpush2.msra.mxu0 0.0
    %1193 = vmatprep.subr.mxu0 0.0
    %1194 = vmatpush2.msra.mxu0 0.0
    %1195 = vmatprep.subr.mxu0 0.0
    %1196 = vmatpush2.msra.mxu0 0.0
    %1197 = vmatprep.mubr.f32.mxu0 0.0
    %1198 = vmatmul.mubr.f32.gmra.mxu0 %v1131
    %v1199 = vpop.f32.mrf.mxu0
    %v1200 = vadd.f32 0.0, %v1199
    %v1201 = vpop.f32.mrf.mxu0
    %v1202 = vadd.f32 0.0, %v1201
    %1203 = vdwg.mxu0
    %v1204 = vld [vmem:[%s4] sm:$0xff]
    %v1205 = vld [vmem:[%s4 + $0x8] sm:$0xff]
    %v1206 = vld [vmem:[%s4 + $0x10] sm:$0xff]
    %v1207 = vlaneseq
    %v1208 = vshrl.u32 %v1207, 7
    %v1209 = vsub.s32 0, %v1208
    %v1210 = vrot.slane %v1119, %v1209
    %vm1211 = vcmask 130048
    %v1213 = vsel %vm1211, %v1204, 0
    %v1216 = vsel %vm1211, %v1205, 0
    %v1219 = vsel %vm1211, %v1206, 0
    %1221 = vmatprep.subr.mxu0 0.0
    %1222 = vmatpush1.msra.mxu0 0.0
    %1223 = vmatprep.subr.mxu0 0.0
    %1224 = vmatpush1.msra.mxu0 0.0
    %1225 = vmatprep.subr.mxu0 0.0
    %1226 = vmatpush1.msra.mxu0 0.0
    %1227 = vmatprep.subr.mxu0 0.0
    %1228 = vmatpush1.msra.mxu0 0.0
    %1229 = vmatprep.subr.mxu0 0.0
    %1230 = vmatpush1.msra.mxu0 0.0
    %1231 = vmatprep.subr.mxu0 0.0
    %1232 = vmatpush1.msra.mxu0 0.0
    %1233 = vmatprep.subr.mxu0 0.0
    %1234 = vmatpush1.msra.mxu0 0.0
    %1235 = vmatprep.subr.mxu0 0.0
    %1236 = vmatpush1.msra.mxu0 0.0
    %1237 = vmatprep.subr.mxu0 0.0
    %1238 = vmatpush1.msra.mxu0 0.0
    %1239 = vmatprep.subr.mxu0 0.0
    %1240 = vmatpush1.msra.mxu0 0.0
    %1241 = vmatprep.subr.mxu0 0.0
    %1242 = vmatpush1.msra.mxu0 0.0
    %1243 = vmatprep.subr.mxu0 0.0
    %1244 = vmatpush1.msra.mxu0 0.0
    %1245 = vmatprep.subr.mxu0 0.0
    %1246 = vmatpush1.msra.mxu0 0.0
    %1247 = vmatprep.subr.mxu0 0.0
    %1248 = vmatpush1.msra.mxu0 0.0
    %1249 = vmatprep.subr.mxu0 0.0
    %1250 = vmatpush1.msra.mxu0 %v1202
    %1251 = vmatprep.subr.mxu0 0.0
    %1252 = vmatpush1.msra.mxu0 %v1200
    %1253 = vmatprep.subr.mxu0 0.0
    %1254 = vmatpush2.msra.mxu0 0.0
    %1255 = vmatprep.subr.mxu0 0.0
    %1256 = vmatpush2.msra.mxu0 0.0
    %1257 = vmatprep.subr.mxu0 0.0
    %1258 = vmatpush2.msra.mxu0 0.0
    %1259 = vmatprep.subr.mxu0 0.0
    %1260 = vmatpush2.msra.mxu0 0.0
    %1261 = vmatprep.subr.mxu0 0.0
    %1262 = vmatpush2.msra.mxu0 0.0
    %1263 = vmatprep.subr.mxu0 0.0
    %1264 = vmatpush2.msra.mxu0 0.0
    %1265 = vmatprep.subr.mxu0 0.0
    %1266 = vmatpush2.msra.mxu0 0.0
    %1267 = vmatprep.subr.mxu0 0.0
    %1268 = vmatpush2.msra.mxu0 0.0
    %1269 = vmatprep.subr.mxu0 0.0
    %1270 = vmatpush2.msra.mxu0 0.0
    %1271 = vmatprep.subr.mxu0 0.0
    %1272 = vmatpush2.msra.mxu0 0.0
    %1273 = vmatprep.subr.mxu0 0.0
    %1274 = vmatpush2.msra.mxu0 0.0
    %1275 = vmatprep.subr.mxu0 0.0
    %1276 = vmatpush2.msra.mxu0 0.0
    %1277 = vmatprep.subr.mxu0 0.0
    %1278 = vmatpush2.msra.mxu0 0.0
    %1279 = vmatprep.subr.mxu0 0.0
    %1280 = vmatpush2.msra.mxu0 0.0
    %1281 = vmatprep.subr.mxu0 0.0
    %1282 = vmatpush2.msra.mxu0 0.0
    %1283 = vmatprep.subr.mxu0 0.0
    %1284 = vmatpush2.msra.mxu0 0.0
    %1285 = vmatprep.mubr.f32.mxu0 0.0
    %1286 = vmatmul.mubr.f32.gmra.mxu0 %v1213
    %v1287 = vpop.f32.mrf.mxu0
    %v1288 = vadd.f32 %v1210, %v1287
    %v1289 = vpop.f32.mrf.mxu0
    %1290 = vmatprep.mubr.f32.mxu0 0.0
    %1291 = vmatmul.mubr.f32.gmra.mxu0 %v1216
    %v1292 = vpop.f32.mrf.mxu0
    %v1293 = vadd.f32 %v1210, %v1292
    %v1294 = vpop.f32.mrf.mxu0
    %1295 = vmatprep.mubr.f32.mxu0 0.0
    %1296 = vmatmul.mubr.f32.gmra.mxu0 %v1219
    %v1297 = vpop.f32.mrf.mxu0
    %v1298 = vadd.f32 %v1210, %v1297
    %v1299 = vpop.f32.mrf.mxu0
    %1300 = vdwg.mxu0
    %v1301 = vlaneseq
    %v1302 = vshrl.u32 %v1301, 7
    %vm1303 = vcmp.eq.s32.totalorder %v1302, 0
    %s1304 = sld [smem:[#allocation3 + $0x1]]
    %s1305 = sld [smem:[#allocation3]]
    %s1306 = ssub.s32 %s1304, %s1305
    %v1307 = vstv %s1306
    %v1308 = vsel %vm1303, %v1307, 0
    %vm1309 = vcmp.eq.s32.totalorder %v1302, 1
    %s1310 = sld [smem:[#allocation3 + $0x2]]
    %s1311 = ssub.s32 %s1310, %s1304
    %v1312 = vstv %s1311
    %v1313 = vsel %vm1309, %v1312, %v1308
    %vm1314 = vcmp.eq.s32.totalorder %v1302, 2
    %s1315 = sld [smem:[#allocation3 + $0x3]]
    %s1316 = ssub.s32 %s1315, %s1310
    %v1317 = vstv %s1316
    %v1318 = vsel %vm1314, %v1317, %v1313
    %v1320 = vsel %vm106, %v1125, 0
    %1322 = vmatprep.subr.mxu0 0.0
    %1323 = vmatpush1.msra.mxu0 0.0
    %1324 = vmatprep.subr.mxu0 0.0
    %1325 = vmatpush1.msra.mxu0 0.0
    %1326 = vmatprep.subr.mxu0 0.0
    %1327 = vmatpush1.msra.mxu0 0.0
    %1328 = vmatprep.subr.mxu0 0.0
    %1329 = vmatpush1.msra.mxu0 0.0
    %1330 = vmatprep.subr.mxu0 0.0
    %1331 = vmatpush1.msra.mxu0 0.0
    %1332 = vmatprep.subr.mxu0 0.0
    %1333 = vmatpush1.msra.mxu0 0.0
    %1334 = vmatprep.subr.mxu0 0.0
    %1335 = vmatpush1.msra.mxu0 0.0
    %1336 = vmatprep.subr.mxu0 0.0
    %1337 = vmatpush1.msra.mxu0 0.0
    %1338 = vmatprep.subr.mxu0 0.0
    %1339 = vmatpush1.msra.mxu0 0.0
    %1340 = vmatprep.subr.mxu0 0.0
    %1341 = vmatpush1.msra.mxu0 0.0
    %1342 = vmatprep.subr.mxu0 0.0
    %1343 = vmatpush1.msra.mxu0 0.0
    %1344 = vmatprep.subr.mxu0 0.0
    %1345 = vmatpush1.msra.mxu0 0.0
    %1346 = vmatprep.subr.mxu0 0.0
    %1347 = vmatpush1.msra.mxu0 %v1118
    %1348 = vmatprep.subr.mxu0 0.0
    %1349 = vmatpush1.msra.mxu0 %v1117
    %1350 = vmatprep.subr.mxu0 0.0
    %1351 = vmatpush1.msra.mxu0 %v1116
    %1352 = vmatprep.subr.mxu0 0.0
    %1353 = vmatpush1.msra.mxu0 %v1115
    %1354 = vmatprep.subr.mxu0 0.0
    %1355 = vmatpush2.msra.mxu0 0.0
    %1356 = vmatprep.subr.mxu0 0.0
    %1357 = vmatpush2.msra.mxu0 0.0
    %1358 = vmatprep.subr.mxu0 0.0
    %1359 = vmatpush2.msra.mxu0 0.0
    %1360 = vmatprep.subr.mxu0 0.0
    %1361 = vmatpush2.msra.mxu0 0.0
    %1362 = vmatprep.subr.mxu0 0.0
    %1363 = vmatpush2.msra.mxu0 0.0
    %1364 = vmatprep.subr.mxu0 0.0
    %1365 = vmatpush2.msra.mxu0 0.0
    %1366 = vmatprep.subr.mxu0 0.0
    %1367 = vmatpush2.msra.mxu0 0.0
    %1368 = vmatprep.subr.mxu0 0.0
    %1369 = vmatpush2.msra.mxu0 0.0
    %1370 = vmatprep.subr.mxu0 0.0
    %1371 = vmatpush2.msra.mxu0 0.0
    %1372 = vmatprep.subr.mxu0 0.0
    %1373 = vmatpush2.msra.mxu0 0.0
    %1374 = vmatprep.subr.mxu0 0.0
    %1375 = vmatpush2.msra.mxu0 0.0
    %1376 = vmatprep.subr.mxu0 0.0
    %1377 = vmatpush2.msra.mxu0 0.0
    %1378 = vmatprep.subr.mxu0 0.0
    %1379 = vmatpush2.msra.mxu0 0.0
    %1380 = vmatprep.subr.mxu0 0.0
    %1381 = vmatpush2.msra.mxu0 0.0
    %1382 = vmatprep.subr.mxu0 0.0
    %1383 = vmatpush2.msra.mxu0 0.0
    %1384 = vmatprep.subr.mxu0 0.0
    %1385 = vmatpush2.msra.mxu0 0.0
    %1386 = vmatprep.mubr.f32.mxu0 0.0
    %1387 = vmatmul.mubr.f32.gmra.mxu0 %v1320
    %v1388 = vpop.f32.mrf.mxu0
    %v1389 = vadd.f32 %v1288, %v1388
    %v1390 = vpop.f32.mrf.mxu0
    %1391 = vdwg.mxu0
    %v1392 = vxor.u32 %v1389, 2147483648
    %v1393 = vmul.f32 %v1392, 1.442695
    %v1394 = vpow.pop %v1393
    %v1395 = vadd.f32 %v1394, 1.0
    %v1396 = vrcp.pop %v1395
    %v1397 = vmul.f32 1.0, %v1396
    %v1398 = vtanh.pop %v1389
    %1400 = vrot.lane.b32.xlu0 %v1129, 32
    %v1401 = vpop.permute.xlu0 %1400
    %v1403 = vmul.f32 %v1397, %v1401
    %1405 = vrot.lane.b32.xlu0 %v1398, 32
    %v1406 = vpop.permute.xlu0 %1405
    %v1408 = vmul.f32 %v1397, %v1406
    %1410 = vrot.lane.b32.xlu0 %v1408, 32
    %v1411 = vpop.permute.xlu0 %1410
    %v1413 = vadd.f32 %v1403, %v1411
    %v1414 = vtanh.pop %v1413
    %1416 = vrot.lane.b32.xlu0 %v1414, 32
    %v1417 = vpop.permute.xlu0 %1416
    %v1419 = vmul.f32 %v1397, %v1417
    %vm1420 = vcmp.gt.s32.totalorder %v1318, 0
    %v1421 = vsel %vm1420, 1, 0
    %vm1422 = vcmp.eq.s32.totalorder %v1421, 1
    %v1423 = vsel %vm1422, %v1419, -inf
    %1425 = vrot.lane.b32.xlu0 %v1419, 64
    %v1426 = vpop.permute.xlu0 %1425
    %v1428 = vrot.slane %v1288, 3
    %v1430 = vsel %vm106, %v1426, 0
    %1432 = vmatprep.subr.mxu0 0.0
    %1433 = vmatpush1.msra.mxu0 0.0
    %1434 = vmatprep.subr.mxu0 0.0
    %1435 = vmatpush1.msra.mxu0 0.0
    %1436 = vmatprep.subr.mxu0 0.0
    %1437 = vmatpush1.msra.mxu0 0.0
    %1438 = vmatprep.subr.mxu0 0.0
    %1439 = vmatpush1.msra.mxu0 0.0
    %1440 = vmatprep.subr.mxu0 0.0
    %1441 = vmatpush1.msra.mxu0 0.0
    %1442 = vmatprep.subr.mxu0 0.0
    %1443 = vmatpush1.msra.mxu0 0.0
    %1444 = vmatprep.subr.mxu0 0.0
    %1445 = vmatpush1.msra.mxu0 0.0
    %1446 = vmatprep.subr.mxu0 0.0
    %1447 = vmatpush1.msra.mxu0 0.0
    %1448 = vmatprep.subr.mxu0 0.0
    %1449 = vmatpush1.msra.mxu0 0.0
    %1450 = vmatprep.subr.mxu0 0.0
    %1451 = vmatpush1.msra.mxu0 0.0
    %1452 = vmatprep.subr.mxu0 0.0
    %1453 = vmatpush1.msra.mxu0 0.0
    %1454 = vmatprep.subr.mxu0 0.0
    %1455 = vmatpush1.msra.mxu0 0.0
    %1456 = vmatprep.subr.mxu0 0.0
    %1457 = vmatpush1.msra.mxu0 %v1118
    %1458 = vmatprep.subr.mxu0 0.0
    %1459 = vmatpush1.msra.mxu0 %v1117
    %1460 = vmatprep.subr.mxu0 0.0
    %1461 = vmatpush1.msra.mxu0 %v1116
    %1462 = vmatprep.subr.mxu0 0.0
    %1463 = vmatpush1.msra.mxu0 %v1115
    %1464 = vmatprep.subr.mxu0 0.0
    %1465 = vmatpush2.msra.mxu0 0.0
    %1466 = vmatprep.subr.mxu0 0.0
    %1467 = vmatpush2.msra.mxu0 0.0
    %1468 = vmatprep.subr.mxu0 0.0
    %1469 = vmatpush2.msra.mxu0 0.0
    %1470 = vmatprep.subr.mxu0 0.0
    %1471 = vmatpush2.msra.mxu0 0.0
    %1472 = vmatprep.subr.mxu0 0.0
    %1473 = vmatpush2.msra.mxu0 0.0
    %1474 = vmatprep.subr.mxu0 0.0
    %1475 = vmatpush2.msra.mxu0 0.0
    %1476 = vmatprep.subr.mxu0 0.0
    %1477 = vmatpush2.msra.mxu0 0.0
    %1478 = vmatprep.subr.mxu0 0.0
    %1479 = vmatpush2.msra.mxu0 0.0
    %1480 = vmatprep.subr.mxu0 0.0
    %1481 = vmatpush2.msra.mxu0 0.0
    %1482 = vmatprep.subr.mxu0 0.0
    %1483 = vmatpush2.msra.mxu0 0.0
    %1484 = vmatprep.subr.mxu0 0.0
    %1485 = vmatpush2.msra.mxu0 0.0
    %1486 = vmatprep.subr.mxu0 0.0
    %1487 = vmatpush2.msra.mxu0 0.0
    %1488 = vmatprep.subr.mxu0 0.0
    %1489 = vmatpush2.msra.mxu0 0.0
    %1490 = vmatprep.subr.mxu0 0.0
    %1491 = vmatpush2.msra.mxu0 0.0
    %1492 = vmatprep.subr.mxu0 0.0
    %1493 = vmatpush2.msra.mxu0 0.0
    %1494 = vmatprep.subr.mxu0 0.0
    %1495 = vmatpush2.msra.mxu0 0.0
    %1496 = vmatprep.mubr.f32.mxu0 0.0
    %1497 = vmatmul.mubr.f32.gmra.mxu0 %v1430
    %v1498 = vpop.f32.mrf.mxu0
    %v1499 = vadd.f32 %v1428, %v1498
    %v1500 = vpop.f32.mrf.mxu0
    %1501 = vdwg.mxu0
    %v1502 = vxor.u32 %v1499, 2147483648
    %v1503 = vmul.f32 %v1502, 1.442695
    %v1504 = vpow.pop %v1503
    %v1505 = vadd.f32 %v1504, 1.0
    %v1506 = vrcp.pop %v1505
    %v1507 = vmul.f32 1.0, %v1506
    %v1508 = vtanh.pop %v1499
    %v1509 = vmul.f32 %v1507, %v1413
    %1511 = vrot.lane.b32.xlu0 %v1508, 32
    %v1512 = vpop.permute.xlu0 %1511
    %v1514 = vmul.f32 %v1507, %v1512
    %1516 = vrot.lane.b32.xlu0 %v1514, 32
    %v1517 = vpop.permute.xlu0 %1516
    %v1519 = vadd.f32 %v1509, %v1517
    %v1520 = vtanh.pop %v1519
    %1522 = vrot.lane.b32.xlu0 %v1520, 32
    %v1523 = vpop.permute.xlu0 %1522
    %v1525 = vmul.f32 %v1507, %v1523
    %vm1526 = vcmp.gt.s32.totalorder %v1318, 1
    %v1527 = vmax.f32 %v1423, %v1525
    %v1528 = vsel %vm1526, 1, 0
    %vm1529 = vcmp.eq.s32.totalorder %v1528, 1
    %v1530 = vsel %vm1529, %v1527, %v1423
    %1532 = vrot.lane.b32.xlu0 %v1525, 64
    %v1533 = vpop.permute.xlu0 %1532
    %v1535 = vrot.slane %v1288, 6
    %v1536 = vrot.slane %v1293, 6
    %v1537 = vsel %vm1065, %v1535, %v1536
    %v1539 = vsel %vm106, %v1533, 0
    %1541 = vmatprep.subr.mxu0 0.0
    %1542 = vmatpush1.msra.mxu0 0.0
    %1543 = vmatprep.subr.mxu0 0.0
    %1544 = vmatpush1.msra.mxu0 0.0
    %1545 = vmatprep.subr.mxu0 0.0
    %1546 = vmatpush1.msra.mxu0 0.0
    %1547 = vmatprep.subr.mxu0 0.0
    %1548 = vmatpush1.msra.mxu0 0.0
    %1549 = vmatprep.subr.mxu0 0.0
    %1550 = vmatpush1.msra.mxu0 0.0
    %1551 = vmatprep.subr.mxu0 0.0
    %1552 = vmatpush1.msra.mxu0 0.0
    %1553 = vmatprep.subr.mxu0 0.0
    %1554 = vmatpush1.msra.mxu0 0.0
    %1555 = vmatprep.subr.mxu0 0.0
    %1556 = vmatpush1.msra.mxu0 0.0
    %1557 = vmatprep.subr.mxu0 0.0
    %1558 = vmatpush1.msra.mxu0 0.0
    %1559 = vmatprep.subr.mxu0 0.0
    %1560 = vmatpush1.msra.mxu0 0.0
    %1561 = vmatprep.subr.mxu0 0.0
    %1562 = vmatpush1.msra.mxu0 0.0
    %1563 = vmatprep.subr.mxu0 0.0
    %1564 = vmatpush1.msra.mxu0 0.0
    %1565 = vmatprep.subr.mxu0 0.0
    %1566 = vmatpush1.msra.mxu0 %v1118
    %1567 = vmatprep.subr.mxu0 0.0
    %1568 = vmatpush1.msra.mxu0 %v1117
    %1569 = vmatprep.subr.mxu0 0.0
    %1570 = vmatpush1.msra.mxu0 %v1116
    %1571 = vmatprep.subr.mxu0 0.0
    %1572 = vmatpush1.msra.mxu0 %v1115
    %1573 = vmatprep.subr.mxu0 0.0
    %1574 = vmatpush2.msra.mxu0 0.0
    %1575 = vmatprep.subr.mxu0 0.0
    %1576 = vmatpush2.msra.mxu0 0.0
    %1577 = vmatprep.subr.mxu0 0.0
    %1578 = vmatpush2.msra.mxu0 0.0
    %1579 = vmatprep.subr.mxu0 0.0
    %1580 = vmatpush2.msra.mxu0 0.0
    %1581 = vmatprep.subr.mxu0 0.0
    %1582 = vmatpush2.msra.mxu0 0.0
    %1583 = vmatprep.subr.mxu0 0.0
    %1584 = vmatpush2.msra.mxu0 0.0
    %1585 = vmatprep.subr.mxu0 0.0
    %1586 = vmatpush2.msra.mxu0 0.0
    %1587 = vmatprep.subr.mxu0 0.0
    %1588 = vmatpush2.msra.mxu0 0.0
    %1589 = vmatprep.subr.mxu0 0.0
    %1590 = vmatpush2.msra.mxu0 0.0
    %1591 = vmatprep.subr.mxu0 0.0
    %1592 = vmatpush2.msra.mxu0 0.0
    %1593 = vmatprep.subr.mxu0 0.0
    %1594 = vmatpush2.msra.mxu0 0.0
    %1595 = vmatprep.subr.mxu0 0.0
    %1596 = vmatpush2.msra.mxu0 0.0
    %1597 = vmatprep.subr.mxu0 0.0
    %1598 = vmatpush2.msra.mxu0 0.0
    %1599 = vmatprep.subr.mxu0 0.0
    %1600 = vmatpush2.msra.mxu0 0.0
    %1601 = vmatprep.subr.mxu0 0.0
    %1602 = vmatpush2.msra.mxu0 0.0
    %1603 = vmatprep.subr.mxu0 0.0
    %1604 = vmatpush2.msra.mxu0 0.0
    %1605 = vmatprep.mubr.f32.mxu0 0.0
    %1606 = vmatmul.mubr.f32.gmra.mxu0 %v1539
    %v1607 = vpop.f32.mrf.mxu0
    %v1608 = vadd.f32 %v1537, %v1607
    %v1609 = vpop.f32.mrf.mxu0
    %1610 = vdwg.mxu0
    %v1611 = vxor.u32 %v1608, 2147483648
    %v1612 = vmul.f32 %v1611, 1.442695
    %v1613 = vpow.pop %v1612
    %v1614 = vadd.f32 %v1613, 1.0
    %v1615 = vrcp.pop %v1614
    %v1616 = vmul.f32 1.0, %v1615
    %v1617 = vtanh.pop %v1608
    %v1618 = vmul.f32 %v1616, %v1519
    %1620 = vrot.lane.b32.xlu0 %v1617, 32
    %v1621 = vpop.permute.xlu0 %1620
    %v1623 = vmul.f32 %v1616, %v1621
    %1625 = vrot.lane.b32.xlu0 %v1623, 32
    %v1626 = vpop.permute.xlu0 %1625
    %v1628 = vadd.f32 %v1618, %v1626
    %v1629 = vtanh.pop %v1628
    %1631 = vrot.lane.b32.xlu0 %v1629, 32
    %v1632 = vpop.permute.xlu0 %1631
    %v1634 = vmul.f32 %v1616, %v1632
    %vm1635 = vcmp.gt.s32.totalorder %v1318, 2
    %v1636 = vmax.f32 %v1530, %v1634
    %v1637 = vsel %vm1635, 1, 0
    %vm1638 = vcmp.eq.s32.totalorder %v1637, 1
    %v1639 = vsel %vm1638, %v1636, %v1530
    %1641 = vrot.lane.b32.xlu0 %v1634, 64
    %v1642 = vpop.permute.xlu0 %1641
    %v1643 = vrot.slane %v1293, 1
    %v1645 = vsel %vm106, %v1642, 0
    %1647 = vmatprep.subr.mxu0 0.0
    %1648 = vmatpush1.msra.mxu0 0.0
    %1649 = vmatprep.subr.mxu0 0.0
    %1650 = vmatpush1.msra.mxu0 0.0
    %1651 = vmatprep.subr.mxu0 0.0
    %1652 = vmatpush1.msra.mxu0 0.0
    %1653 = vmatprep.subr.mxu0 0.0
    %1654 = vmatpush1.msra.mxu0 0.0
    %1655 = vmatprep.subr.mxu0 0.0
    %1656 = vmatpush1.msra.mxu0 0.0
    %1657 = vmatprep.subr.mxu0 0.0
    %1658 = vmatpush1.msra.mxu0 0.0
    %1659 = vmatprep.subr.mxu0 0.0
    %1660 = vmatpush1.msra.mxu0 0.0
    %1661 = vmatprep.subr.mxu0 0.0
    %1662 = vmatpush1.msra.mxu0 0.0
    %1663 = vmatprep.subr.mxu0 0.0
    %1664 = vmatpush1.msra.mxu0 0.0
    %1665 = vmatprep.subr.mxu0 0.0
    %1666 = vmatpush1.msra.mxu0 0.0
    %1667 = vmatprep.subr.mxu0 0.0
    %1668 = vmatpush1.msra.mxu0 0.0
    %1669 = vmatprep.subr.mxu0 0.0
    %1670 = vmatpush1.msra.mxu0 0.0
    %1671 = vmatprep.subr.mxu0 0.0
    %1672 = vmatpush1.msra.mxu0 %v1118
    %1673 = vmatprep.subr.mxu0 0.0
    %1674 = vmatpush1.msra.mxu0 %v1117
    %1675 = vmatprep.subr.mxu0 0.0
    %1676 = vmatpush1.msra.mxu0 %v1116
    %1677 = vmatprep.subr.mxu0 0.0
    %1678 = vmatpush1.msra.mxu0 %v1115
    %1679 = vmatprep.subr.mxu0 0.0
    %1680 = vmatpush2.msra.mxu0 0.0
    %1681 = vmatprep.subr.mxu0 0.0
    %1682 = vmatpush2.msra.mxu0 0.0
    %1683 = vmatprep.subr.mxu0 0.0
    %1684 = vmatpush2.msra.mxu0 0.0
    %1685 = vmatprep.subr.mxu0 0.0
    %1686 = vmatpush2.msra.mxu0 0.0
    %1687 = vmatprep.subr.mxu0 0.0
    %1688 = vmatpush2.msra.mxu0 0.0
    %1689 = vmatprep.subr.mxu0 0.0
    %1690 = vmatpush2.msra.mxu0 0.0
    %1691 = vmatprep.subr.mxu0 0.0
    %1692 = vmatpush2.msra.mxu0 0.0
    %1693 = vmatprep.subr.mxu0 0.0
    %1694 = vmatpush2.msra.mxu0 0.0
    %1695 = vmatprep.subr.mxu0 0.0
    %1696 = vmatpush2.msra.mxu0 0.0
    %1697 = vmatprep.subr.mxu0 0.0
    %1698 = vmatpush2.msra.mxu0 0.0
    %1699 = vmatprep.subr.mxu0 0.0
    %1700 = vmatpush2.msra.mxu0 0.0
    %1701 = vmatprep.subr.mxu0 0.0
    %1702 = vmatpush2.msra.mxu0 0.0
    %1703 = vmatprep.subr.mxu0 0.0
    %1704 = vmatpush2.msra.mxu0 0.0
    %1705 = vmatprep.subr.mxu0 0.0
    %1706 = vmatpush2.msra.mxu0 0.0
    %1707 = vmatprep.subr.mxu0 0.0
    %1708 = vmatpush2.msra.mxu0 0.0
    %1709 = vmatprep.subr.mxu0 0.0
    %1710 = vmatpush2.msra.mxu0 0.0
    %1711 = vmatprep.mubr.f32.mxu0 0.0
    %1712 = vmatmul.mubr.f32.gmra.mxu0 %v1645
    %v1713 = vpop.f32.mrf.mxu0
    %v1714 = vadd.f32 %v1643, %v1713
    %v1715 = vpop.f32.mrf.mxu0
    %1716 = vdwg.mxu0
    %v1717 = vxor.u32 %v1714, 2147483648
    %v1718 = vmul.f32 %v1717, 1.442695
    %v1719 = vpow.pop %v1718
    %v1720 = vadd.f32 %v1719, 1.0
    %v1721 = vrcp.pop %v1720
    %v1722 = vmul.f32 1.0, %v1721
    %v1723 = vtanh.pop %v1714
    %v1724 = vmul.f32 %v1722, %v1628
    %1726 = vrot.lane.b32.xlu0 %v1723, 32
    %v1727 = vpop.permute.xlu0 %1726
    %v1729 = vmul.f32 %v1722, %v1727
    %1731 = vrot.lane.b32.xlu0 %v1729, 32
    %v1732 = vpop.permute.xlu0 %1731
    %v1734 = vadd.f32 %v1724, %v1732
    %v1735 = vtanh.pop %v1734
    %1737 = vrot.lane.b32.xlu0 %v1735, 32
    %v1738 = vpop.permute.xlu0 %1737
    %v1740 = vmul.f32 %v1722, %v1738
    %vm1741 = vcmp.gt.s32.totalorder %v1318, 3
    %v1742 = vmax.f32 %v1639, %v1740
    %v1743 = vsel %vm1741, 1, 0
    %vm1744 = vcmp.eq.s32.totalorder %v1743, 1
    %v1745 = vsel %vm1744, %v1742, %v1639
    %1747 = vrot.lane.b32.xlu0 %v1740, 64
    %v1748 = vpop.permute.xlu0 %1747
    %v1749 = vrot.slane %v1293, 4
    %v1751 = vsel %vm106, %v1748, 0
    %1753 = vmatprep.subr.mxu0 0.0
    %1754 = vmatpush1.msra.mxu0 0.0
    %1755 = vmatprep.subr.mxu0 0.0
    %1756 = vmatpush1.msra.mxu0 0.0
    %1757 = vmatprep.subr.mxu0 0.0
    %1758 = vmatpush1.msra.mxu0 0.0
    %1759 = vmatprep.subr.mxu0 0.0
    %1760 = vmatpush1.msra.mxu0 0.0
    %1761 = vmatprep.subr.mxu0 0.0
    %1762 = vmatpush1.msra.mxu0 0.0
    %1763 = vmatprep.subr.mxu0 0.0
    %1764 = vmatpush1.msra.mxu0 0.0
    %1765 = vmatprep.subr.mxu0 0.0
    %1766 = vmatpush1.msra.mxu0 0.0
    %1767 = vmatprep.subr.mxu0 0.0
    %1768 = vmatpush1.msra.mxu0 0.0
    %1769 = vmatprep.subr.mxu0 0.0
    %1770 = vmatpush1.msra.mxu0 0.0
    %1771 = vmatprep.subr.mxu0 0.0
    %1772 = vmatpush1.msra.mxu0 0.0
    %1773 = vmatprep.subr.mxu0 0.0
    %1774 = vmatpush1.msra.mxu0 0.0
    %1775 = vmatprep.subr.mxu0 0.0
    %1776 = vmatpush1.msra.mxu0 0.0
    %1777 = vmatprep.subr.mxu0 0.0
    %1778 = vmatpush1.msra.mxu0 %v1118
    %1779 = vmatprep.subr.mxu0 0.0
    %1780 = vmatpush1.msra.mxu0 %v1117
    %1781 = vmatprep.subr.mxu0 0.0
    %1782 = vmatpush1.msra.mxu0 %v1116
    %1783 = vmatprep.subr.mxu0 0.0
    %1784 = vmatpush1.msra.mxu0 %v1115
    %1785 = vmatprep.subr.mxu0 0.0
    %1786 = vmatpush2.msra.mxu0 0.0
    %1787 = vmatprep.subr.mxu0 0.0
    %1788 = vmatpush2.msra.mxu0 0.0
    %1789 = vmatprep.subr.mxu0 0.0
    %1790 = vmatpush2.msra.mxu0 0.0
    %1791 = vmatprep.subr.mxu0 0.0
    %1792 = vmatpush2.msra.mxu0 0.0
    %1793 = vmatprep.subr.mxu0 0.0
    %1794 = vmatpush2.msra.mxu0 0.0
    %1795 = vmatprep.subr.mxu0 0.0
    %1796 = vmatpush2.msra.mxu0 0.0
    %1797 = vmatprep.subr.mxu0 0.0
    %1798 = vmatpush2.msra.mxu0 0.0
    %1799 = vmatprep.subr.mxu0 0.0
    %1800 = vmatpush2.msra.mxu0 0.0
    %1801 = vmatprep.subr.mxu0 0.0
    %1802 = vmatpush2.msra.mxu0 0.0
    %1803 = vmatprep.subr.mxu0 0.0
    %1804 = vmatpush2.msra.mxu0 0.0
    %1805 = vmatprep.subr.mxu0 0.0
    %1806 = vmatpush2.msra.mxu0 0.0
    %1807 = vmatprep.subr.mxu0 0.0
    %1808 = vmatpush2.msra.mxu0 0.0
    %1809 = vmatprep.subr.mxu0 0.0
    %1810 = vmatpush2.msra.mxu0 0.0
    %1811 = vmatprep.subr.mxu0 0.0
    %1812 = vmatpush2.msra.mxu0 0.0
    %1813 = vmatprep.subr.mxu0 0.0
    %1814 = vmatpush2.msra.mxu0 0.0
    %1815 = vmatprep.subr.mxu0 0.0
    %1816 = vmatpush2.msra.mxu0 0.0
    %1817 = vmatprep.mubr.f32.mxu0 0.0
    %1818 = vmatmul.mubr.f32.gmra.mxu0 %v1751
    %v1819 = vpop.f32.mrf.mxu0
    %v1820 = vadd.f32 %v1749, %v1819
    %v1821 = vpop.f32.mrf.mxu0
    %1822 = vdwg.mxu0
    %v1823 = vxor.u32 %v1820, 2147483648
    %v1824 = vmul.f32 %v1823, 1.442695
    %v1825 = vpow.pop %v1824
    %v1826 = vadd.f32 %v1825, 1.0
    %v1827 = vrcp.pop %v1826
    %v1828 = vmul.f32 1.0, %v1827
    %v1829 = vtanh.pop %v1820
    %v1830 = vmul.f32 %v1828, %v1734
    %1832 = vrot.lane.b32.xlu0 %v1829, 32
    %v1833 = vpop.permute.xlu0 %1832
    %v1835 = vmul.f32 %v1828, %v1833
    %1837 = vrot.lane.b32.xlu0 %v1835, 32
    %v1838 = vpop.permute.xlu0 %1837
    %v1840 = vadd.f32 %v1830, %v1838
    %v1841 = vtanh.pop %v1840
    %1843 = vrot.lane.b32.xlu0 %v1841, 32
    %v1844 = vpop.permute.xlu0 %1843
    %v1846 = vmul.f32 %v1828, %v1844
    %vm1847 = vcmp.gt.s32.totalorder %v1318, 4
    %v1848 = vmax.f32 %v1745, %v1846
    %v1849 = vsel %vm1847, 1, 0
    %vm1850 = vcmp.eq.s32.totalorder %v1849, 1
    %v1851 = vsel %vm1850, %v1848, %v1745
    %1853 = vrot.lane.b32.xlu0 %v1846, 64
    %v1854 = vpop.permute.xlu0 %1853
    %v1856 = vrot.slane %v1293, 7
    %v1857 = vrot.slane %v1298, 7
    %v1858 = vsel %vm1063, %v1856, %v1857
    %v1860 = vsel %vm106, %v1854, 0
    %1862 = vmatprep.subr.mxu0 0.0
    %1863 = vmatpush1.msra.mxu0 0.0
    %1864 = vmatprep.subr.mxu0 0.0
    %1865 = vmatpush1.msra.mxu0 0.0
    %1866 = vmatprep.subr.mxu0 0.0
    %1867 = vmatpush1.msra.mxu0 0.0
    %1868 = vmatprep.subr.mxu0 0.0
    %1869 = vmatpush1.msra.mxu0 0.0
    %1870 = vmatprep.subr.mxu0 0.0
    %1871 = vmatpush1.msra.mxu0 0.0
    %1872 = vmatprep.subr.mxu0 0.0
    %1873 = vmatpush1.msra.mxu0 0.0
    %1874 = vmatprep.subr.mxu0 0.0
    %1875 = vmatpush1.msra.mxu0 0.0
    %1876 = vmatprep.subr.mxu0 0.0
    %1877 = vmatpush1.msra.mxu0 0.0
    %1878 = vmatprep.subr.mxu0 0.0
    %1879 = vmatpush1.msra.mxu0 0.0
    %1880 = vmatprep.subr.mxu0 0.0
    %1881 = vmatpush1.msra.mxu0 0.0
    %1882 = vmatprep.subr.mxu0 0.0
    %1883 = vmatpush1.msra.mxu0 0.0
    %1884 = vmatprep.subr.mxu0 0.0
    %1885 = vmatpush1.msra.mxu0 0.0
    %1886 = vmatprep.subr.mxu0 0.0
    %1887 = vmatpush1.msra.mxu0 %v1118
    %1888 = vmatprep.subr.mxu0 0.0
    %1889 = vmatpush1.msra.mxu0 %v1117
    %1890 = vmatprep.subr.mxu0 0.0
    %1891 = vmatpush1.msra.mxu0 %v1116
    %1892 = vmatprep.subr.mxu0 0.0
    %1893 = vmatpush1.msra.mxu0 %v1115
    %1894 = vmatprep.subr.mxu0 0.0
    %1895 = vmatpush2.msra.mxu0 0.0
    %1896 = vmatprep.subr.mxu0 0.0
    %1897 = vmatpush2.msra.mxu0 0.0
    %1898 = vmatprep.subr.mxu0 0.0
    %1899 = vmatpush2.msra.mxu0 0.0
    %1900 = vmatprep.subr.mxu0 0.0
    %1901 = vmatpush2.msra.mxu0 0.0
    %1902 = vmatprep.subr.mxu0 0.0
    %1903 = vmatpush2.msra.mxu0 0.0
    %1904 = vmatprep.subr.mxu0 0.0
    %1905 = vmatpush2.msra.mxu0 0.0
    %1906 = vmatprep.subr.mxu0 0.0
    %1907 = vmatpush2.msra.mxu0 0.0
    %1908 = vmatprep.subr.mxu0 0.0
    %1909 = vmatpush2.msra.mxu0 0.0
    %1910 = vmatprep.subr.mxu0 0.0
    %1911 = vmatpush2.msra.mxu0 0.0
    %1912 = vmatprep.subr.mxu0 0.0
    %1913 = vmatpush2.msra.mxu0 0.0
    %1914 = vmatprep.subr.mxu0 0.0
    %1915 = vmatpush2.msra.mxu0 0.0
    %1916 = vmatprep.subr.mxu0 0.0
    %1917 = vmatpush2.msra.mxu0 0.0
    %1918 = vmatprep.subr.mxu0 0.0
    %1919 = vmatpush2.msra.mxu0 0.0
    %1920 = vmatprep.subr.mxu0 0.0
    %1921 = vmatpush2.msra.mxu0 0.0
    %1922 = vmatprep.subr.mxu0 0.0
    %1923 = vmatpush2.msra.mxu0 0.0
    %1924 = vmatprep.subr.mxu0 0.0
    %1925 = vmatpush2.msra.mxu0 0.0
    %1926 = vmatprep.mubr.f32.mxu0 0.0
    %1927 = vmatmul.mubr.f32.gmra.mxu0 %v1860
    %v1928 = vpop.f32.mrf.mxu0
    %v1929 = vadd.f32 %v1858, %v1928
    %v1930 = vpop.f32.mrf.mxu0
    %1931 = vdwg.mxu0
    %v1932 = vxor.u32 %v1929, 2147483648
    %v1933 = vmul.f32 %v1932, 1.442695
    %v1934 = vpow.pop %v1933
    %v1935 = vadd.f32 %v1934, 1.0
    %v1936 = vrcp.pop %v1935
    %v1937 = vmul.f32 1.0, %v1936
    %v1938 = vtanh.pop %v1929
    %v1939 = vmul.f32 %v1937, %v1840
    %1941 = vrot.lane.b32.xlu0 %v1938, 32
    %v1942 = vpop.permute.xlu0 %1941
    %v1944 = vmul.f32 %v1937, %v1942
    %1946 = vrot.lane.b32.xlu0 %v1944, 32
    %v1947 = vpop.permute.xlu0 %1946
    %v1949 = vadd.f32 %v1939, %v1947
    %v1950 = vtanh.pop %v1949
    %1952 = vrot.lane.b32.xlu0 %v1950, 32
    %v1953 = vpop.permute.xlu0 %1952
    %v1955 = vmul.f32 %v1937, %v1953
    %vm1956 = vcmp.gt.s32.totalorder %v1318, 5
    %v1957 = vmax.f32 %v1851, %v1955
    %v1958 = vsel %vm1956, 1, 0
    %vm1959 = vcmp.eq.s32.totalorder %v1958, 1
    %v1960 = vsel %vm1959, %v1957, %v1851
    %1962 = vrot.lane.b32.xlu0 %v1955, 64
    %v1963 = vpop.permute.xlu0 %1962
    %v1964 = vrot.slane %v1298, 2
    %v1966 = vsel %vm106, %v1963, 0
    %1968 = vmatprep.subr.mxu0 0.0
    %1969 = vmatpush1.msra.mxu0 0.0
    %1970 = vmatprep.subr.mxu0 0.0
    %1971 = vmatpush1.msra.mxu0 0.0
    %1972 = vmatprep.subr.mxu0 0.0
    %1973 = vmatpush1.msra.mxu0 0.0
    %1974 = vmatprep.subr.mxu0 0.0
    %1975 = vmatpush1.msra.mxu0 0.0
    %1976 = vmatprep.subr.mxu0 0.0
    %1977 = vmatpush1.msra.mxu0 0.0
    %1978 = vmatprep.subr.mxu0 0.0
    %1979 = vmatpush1.msra.mxu0 0.0
    %1980 = vmatprep.subr.mxu0 0.0
    %1981 = vmatpush1.msra.mxu0 0.0
    %1982 = vmatprep.subr.mxu0 0.0
    %1983 = vmatpush1.msra.mxu0 0.0
    %1984 = vmatprep.subr.mxu0 0.0
    %1985 = vmatpush1.msra.mxu0 0.0
    %1986 = vmatprep.subr.mxu0 0.0
    %1987 = vmatpush1.msra.mxu0 0.0
    %1988 = vmatprep.subr.mxu0 0.0
    %1989 = vmatpush1.msra.mxu0 0.0
    %1990 = vmatprep.subr.mxu0 0.0
    %1991 = vmatpush1.msra.mxu0 0.0
    %1992 = vmatprep.subr.mxu0 0.0
    %1993 = vmatpush1.msra.mxu0 %v1118
    %1994 = vmatprep.subr.mxu0 0.0
    %1995 = vmatpush1.msra.mxu0 %v1117
    %1996 = vmatprep.subr.mxu0 0.0
    %1997 = vmatpush1.msra.mxu0 %v1116
    %1998 = vmatprep.subr.mxu0 0.0
    %1999 = vmatpush1.msra.mxu0 %v1115
    %2000 = vmatprep.subr.mxu0 0.0
    %2001 = vmatpush2.msra.mxu0 0.0
    %2002 = vmatprep.subr.mxu0 0.0
    %2003 = vmatpush2.msra.mxu0 0.0
    %2004 = vmatprep.subr.mxu0 0.0
    %2005 = vmatpush2.msra.mxu0 0.0
    %2006 = vmatprep.subr.mxu0 0.0
    %2007 = vmatpush2.msra.mxu0 0.0
    %2008 = vmatprep.subr.mxu0 0.0
    %2009 = vmatpush2.msra.mxu0 0.0
    %2010 = vmatprep.subr.mxu0 0.0
    %2011 = vmatpush2.msra.mxu0 0.0
    %2012 = vmatprep.subr.mxu0 0.0
    %2013 = vmatpush2.msra.mxu0 0.0
    %2014 = vmatprep.subr.mxu0 0.0
    %2015 = vmatpush2.msra.mxu0 0.0
    %2016 = vmatprep.subr.mxu0 0.0
    %2017 = vmatpush2.msra.mxu0 0.0
    %2018 = vmatprep.subr.mxu0 0.0
    %2019 = vmatpush2.msra.mxu0 0.0
    %2020 = vmatprep.subr.mxu0 0.0
    %2021 = vmatpush2.msra.mxu0 0.0
    %2022 = vmatprep.subr.mxu0 0.0
    %2023 = vmatpush2.msra.mxu0 0.0
    %2024 = vmatprep.subr.mxu0 0.0
    %2025 = vmatpush2.msra.mxu0 0.0
    %2026 = vmatprep.subr.mxu0 0.0
    %2027 = vmatpush2.msra.mxu0 0.0
    %2028 = vmatprep.subr.mxu0 0.0
    %2029 = vmatpush2.msra.mxu0 0.0
    %2030 = vmatprep.subr.mxu0 0.0
    %2031 = vmatpush2.msra.mxu0 0.0
    %2032 = vmatprep.mubr.f32.mxu0 0.0
    %2033 = vmatmul.mubr.f32.gmra.mxu0 %v1966
    %v2034 = vpop.f32.mrf.mxu0
    %v2035 = vadd.f32 %v1964, %v2034
    %v2036 = vpop.f32.mrf.mxu0
    %2037 = vdwg.mxu0
    %v2038 = vxor.u32 %v2035, 2147483648
    %v2039 = vmul.f32 %v2038, 1.442695
    %v2040 = vpow.pop %v2039
    %v2041 = vadd.f32 %v2040, 1.0
    %v2042 = vrcp.pop %v2041
    %v2043 = vmul.f32 1.0, %v2042
    %v2044 = vtanh.pop %v2035
    %v2045 = vmul.f32 %v2043, %v1949
    %2047 = vrot.lane.b32.xlu0 %v2044, 32
    %v2048 = vpop.permute.xlu0 %2047
    %v2050 = vmul.f32 %v2043, %v2048
    %2052 = vrot.lane.b32.xlu0 %v2050, 32
    %v2053 = vpop.permute.xlu0 %2052
    %v2055 = vadd.f32 %v2045, %v2053
    %v2056 = vtanh.pop %v2055
    %2058 = vrot.lane.b32.xlu0 %v2056, 32
    %v2059 = vpop.permute.xlu0 %2058
    %v2061 = vmul.f32 %v2043, %v2059
    %vm2062 = vcmp.gt.s32.totalorder %v1318, 6
    %v2063 = vmax.f32 %v1960, %v2061
    %v2064 = vsel %vm2062, 1, 0
    %vm2065 = vcmp.eq.s32.totalorder %v2064, 1
    %v2066 = vsel %vm2065, %v2063, %v1960
    %2068 = vrot.lane.b32.xlu0 %v2061, 64
    %v2069 = vpop.permute.xlu0 %2068
    %v2070 = vrot.slane %v1298, 5
    %v2072 = vsel %vm106, %v2069, 0
    %2074 = vmatprep.subr.mxu0 0.0
    %2075 = vmatpush1.msra.mxu0 0.0
    %2076 = vmatprep.subr.mxu0 0.0
    %2077 = vmatpush1.msra.mxu0 0.0
    %2078 = vmatprep.subr.mxu0 0.0
    %2079 = vmatpush1.msra.mxu0 0.0
    %2080 = vmatprep.subr.mxu0 0.0
    %2081 = vmatpush1.msra.mxu0 0.0
    %2082 = vmatprep.subr.mxu0 0.0
    %2083 = vmatpush1.msra.mxu0 0.0
    %2084 = vmatprep.subr.mxu0 0.0
    %2085 = vmatpush1.msra.mxu0 0.0
    %2086 = vmatprep.subr.mxu0 0.0
    %2087 = vmatpush1.msra.mxu0 0.0
    %2088 = vmatprep.subr.mxu0 0.0
    %2089 = vmatpush1.msra.mxu0 0.0
    %2090 = vmatprep.subr.mxu0 0.0
    %2091 = vmatpush1.msra.mxu0 0.0
    %2092 = vmatprep.subr.mxu0 0.0
    %2093 = vmatpush1.msra.mxu0 0.0
    %2094 = vmatprep.subr.mxu0 0.0
    %2095 = vmatpush1.msra.mxu0 0.0
    %2096 = vmatprep.subr.mxu0 0.0
    %2097 = vmatpush1.msra.mxu0 0.0
    %2098 = vmatprep.subr.mxu0 0.0
    %2099 = vmatpush1.msra.mxu0 %v1118
    %2100 = vmatprep.subr.mxu0 0.0
    %2101 = vmatpush1.msra.mxu0 %v1117
    %2102 = vmatprep.subr.mxu0 0.0
    %2103 = vmatpush1.msra.mxu0 %v1116
    %2104 = vmatprep.subr.mxu0 0.0
    %2105 = vmatpush1.msra.mxu0 %v1115
    %2106 = vmatprep.subr.mxu0 0.0
    %2107 = vmatpush2.msra.mxu0 0.0
    %2108 = vmatprep.subr.mxu0 0.0
    %2109 = vmatpush2.msra.mxu0 0.0
    %2110 = vmatprep.subr.mxu0 0.0
    %2111 = vmatpush2.msra.mxu0 0.0
    %2112 = vmatprep.subr.mxu0 0.0
    %2113 = vmatpush2.msra.mxu0 0.0
    %2114 = vmatprep.subr.mxu0 0.0
    %2115 = vmatpush2.msra.mxu0 0.0
    %2116 = vmatprep.subr.mxu0 0.0
    %2117 = vmatpush2.msra.mxu0 0.0
    %2118 = vmatprep.subr.mxu0 0.0
    %2119 = vmatpush2.msra.mxu0 0.0
    %2120 = vmatprep.subr.mxu0 0.0
    %2121 = vmatpush2.msra.mxu0 0.0
    %2122 = vmatprep.subr.mxu0 0.0
    %2123 = vmatpush2.msra.mxu0 0.0
    %2124 = vmatprep.subr.mxu0 0.0
    %2125 = vmatpush2.msra.mxu0 0.0
    %2126 = vmatprep.subr.mxu0 0.0
    %2127 = vmatpush2.msra.mxu0 0.0
    %2128 = vmatprep.subr.mxu0 0.0
    %2129 = vmatpush2.msra.mxu0 0.0
    %2130 = vmatprep.subr.mxu0 0.0
    %2131 = vmatpush2.msra.mxu0 0.0
    %2132 = vmatprep.subr.mxu0 0.0
    %2133 = vmatpush2.msra.mxu0 0.0
    %2134 = vmatprep.subr.mxu0 0.0
    %2135 = vmatpush2.msra.mxu0 0.0
    %2136 = vmatprep.subr.mxu0 0.0
    %2137 = vmatpush2.msra.mxu0 0.0
    %2138 = vmatprep.mubr.f32.mxu0 0.0
    %2139 = vmatmul.mubr.f32.gmra.mxu0 %v2072
    %v2140 = vpop.f32.mrf.mxu0
    %v2141 = vadd.f32 %v2070, %v2140
    %v2142 = vpop.f32.mrf.mxu0
    %2143 = vdwg.mxu0
    %v2144 = vxor.u32 %v2141, 2147483648
    %v2145 = vmul.f32 %v2144, 1.442695
    %v2146 = vpow.pop %v2145
    %v2147 = vadd.f32 %v2146, 1.0
    %v2148 = vrcp.pop %v2147
    %v2149 = vmul.f32 1.0, %v2148
    %v2150 = vtanh.pop %v2141
    %v2151 = vmul.f32 %v2149, %v2055
    %2153 = vrot.lane.b32.xlu0 %v2150, 32
    %v2154 = vpop.permute.xlu0 %2153
    %v2156 = vmul.f32 %v2149, %v2154
    %2158 = vrot.lane.b32.xlu0 %v2156, 32
    %v2159 = vpop.permute.xlu0 %2158
    %v2161 = vadd.f32 %v2151, %v2159
    %v2162 = vtanh.pop %v2161
    %2164 = vrot.lane.b32.xlu0 %v2162, 32
    %v2165 = vpop.permute.xlu0 %2164
    %v2167 = vmul.f32 %v2149, %v2165
    %vm2168 = vcmp.gt.s32.totalorder %v1318, 7
    %v2169 = vmax.f32 %v2066, %v2167
    %v2170 = vsel %vm2168, 1, 0
    %vm2171 = vcmp.eq.s32.totalorder %v2170, 1
    %v2172 = vsel %vm2171, %v2169, %v2066
    %v2173 = vld [vmem:[#allocation9] sm:$0xff]
    %v2174 = vld [vmem:[#allocation9 + $0x8] sm:$0xff]
    %v2175 = vld [vmem:[#allocation9 + $0x10] sm:$0xff]
    %v2176 = vld [vmem:[#allocation9 + $0x18] sm:$0xff]
    %v2177 = vld [vmem:[#allocation9 + $0x20] sm:$0xff]
    %v2178 = vld [vmem:[#allocation9 + $0x28] sm:$0xff]
    %v2179 = vld [vmem:[#allocation9 + $0x30] sm:$0xff]
    %v2180 = vld [vmem:[#allocation9 + $0x38] sm:$0xff]
    %v2181 = vld [vmem:[#allocation9 + $0x40] sm:$0xff]
    %v2182 = vld [vmem:[#allocation9 + $0x48] sm:$0xff]
    %v2183 = vld [vmem:[#allocation9 + $0x50] sm:$0xff]
    %v2184 = vld [vmem:[#allocation9 + $0x58] sm:$0xff]
    %v2185 = vld [vmem:[#allocation9 + $0x60] sm:$0xff]
    %v2186 = vld [vmem:[#allocation9 + $0x68] sm:$0xff]
    %v2187 = vld [vmem:[#allocation9 + $0x70] sm:$0xff]
    %v2188 = vld [vmem:[#allocation9 + $0x78] sm:$0xff]
    %v2189 = vld [vmem:[#allocation9 + $0x80] sm:$0xff]
    %v2190 = vld [vmem:[#allocation9 + $0x88] sm:$0xff]
    %v2191 = vld [vmem:[#allocation9 + $0x90] sm:$0xff]
    %v2192 = vld [vmem:[#allocation9 + $0x98] sm:$0xff]
    %v2193 = vld [vmem:[#allocation9 + $0xa0] sm:$0xff]
    %v2194 = vld [vmem:[#allocation9 + $0xa8] sm:$0xff]
    %v2195 = vld [vmem:[#allocation9 + $0xb0] sm:$0xff]
    %v2196 = vld [vmem:[#allocation9 + $0xb8] sm:$0xff]
    %v2197 = vld [vmem:[#allocation9 + $0xc0] sm:$0xff]
    %v2198 = vld [vmem:[#allocation9 + $0xc8] sm:$0xff]
    %v2199 = vld [vmem:[#allocation9 + $0xd0] sm:$0xff]
    %v2200 = vld [vmem:[#allocation9 + $0xd8] sm:$0xff]
    %v2201 = vld [vmem:[#allocation9 + $0xe0] sm:$0xff]
    %v2202 = vld [vmem:[#allocation9 + $0xe8] sm:$0xff]
    %v2203 = vld [vmem:[#allocation9 + $0xf0] sm:$0xff]
    %v2204 = vld [vmem:[#allocation9 + $0xf8] sm:$0xff]
    %v2205 = vlaneseq
    %v2206 = vshrl.u32 %v2205, 7
    %v2207 = vsub.s32 0, %v2206
    %v2208 = vrot.slane %v2177, %v2207
    %2210 = vrot.lane.b32.xlu0 %v2172, 64
    %v2211 = vpop.permute.xlu0 %2210
    %v2212 = vsel %vm106, %v2211, 0
    %2214 = vmatprep.subr.mxu0 0.0
    %2215 = vmatpush1.msra.mxu0 0.0
    %2216 = vmatprep.subr.mxu0 0.0
    %2217 = vmatpush1.msra.mxu0 0.0
    %2218 = vmatprep.subr.mxu0 0.0
    %2219 = vmatpush1.msra.mxu0 0.0
    %2220 = vmatprep.subr.mxu0 0.0
    %2221 = vmatpush1.msra.mxu0 0.0
    %2222 = vmatprep.subr.mxu0 0.0
    %2223 = vmatpush1.msra.mxu0 0.0
    %2224 = vmatprep.subr.mxu0 0.0
    %2225 = vmatpush1.msra.mxu0 0.0
    %2226 = vmatprep.subr.mxu0 0.0
    %2227 = vmatpush1.msra.mxu0 0.0
    %2228 = vmatprep.subr.mxu0 0.0
    %2229 = vmatpush1.msra.mxu0 0.0
    %2230 = vmatprep.subr.mxu0 0.0
    %2231 = vmatpush1.msra.mxu0 0.0
    %2232 = vmatprep.subr.mxu0 0.0
    %2233 = vmatpush1.msra.mxu0 0.0
    %2234 = vmatprep.subr.mxu0 0.0
    %2235 = vmatpush1.msra.mxu0 0.0
    %2236 = vmatprep.subr.mxu0 0.0
    %2237 = vmatpush1.msra.mxu0 0.0
    %2238 = vmatprep.subr.mxu0 0.0
    %2239 = vmatpush1.msra.mxu0 %v2176
    %2240 = vmatprep.subr.mxu0 0.0
    %2241 = vmatpush1.msra.mxu0 %v2175
    %2242 = vmatprep.subr.mxu0 0.0
    %2243 = vmatpush1.msra.mxu0 %v2174
    %2244 = vmatprep.subr.mxu0 0.0
    %2245 = vmatpush1.msra.mxu0 %v2173
    %2246 = vmatprep.subr.mxu0 0.0
    %2247 = vmatpush2.msra.mxu0 0.0
    %2248 = vmatprep.subr.mxu0 0.0
    %2249 = vmatpush2.msra.mxu0 0.0
    %2250 = vmatprep.subr.mxu0 0.0
    %2251 = vmatpush2.msra.mxu0 0.0
    %2252 = vmatprep.subr.mxu0 0.0
    %2253 = vmatpush2.msra.mxu0 0.0
    %2254 = vmatprep.subr.mxu0 0.0
    %2255 = vmatpush2.msra.mxu0 0.0
    %2256 = vmatprep.subr.mxu0 0.0
    %2257 = vmatpush2.msra.mxu0 0.0
    %2258 = vmatprep.subr.mxu0 0.0
    %2259 = vmatpush2.msra.mxu0 0.0
    %2260 = vmatprep.subr.mxu0 0.0
    %2261 = vmatpush2.msra.mxu0 0.0
    %2262 = vmatprep.subr.mxu0 0.0
    %2263 = vmatpush2.msra.mxu0 0.0
    %2264 = vmatprep.subr.mxu0 0.0
    %2265 = vmatpush2.msra.mxu0 0.0
    %2266 = vmatprep.subr.mxu0 0.0
    %2267 = vmatpush2.msra.mxu0 0.0
    %2268 = vmatprep.subr.mxu0 0.0
    %2269 = vmatpush2.msra.mxu0 0.0
    %2270 = vmatprep.subr.mxu0 0.0
    %2271 = vmatpush2.msra.mxu0 0.0
    %2272 = vmatprep.subr.mxu0 0.0
    %2273 = vmatpush2.msra.mxu0 0.0
    %2274 = vmatprep.subr.mxu0 0.0
    %2275 = vmatpush2.msra.mxu0 0.0
    %2276 = vmatprep.subr.mxu0 0.0
    %2277 = vmatpush2.msra.mxu0 0.0
    %2278 = vmatprep.mubr.f32.mxu0 0.0
    %2279 = vmatmul.mubr.f32.gmra.mxu0 %v2212
    %v2280 = vpop.f32.mrf.mxu0
    %v2281 = vadd.f32 %v2208, %v2280
    %v2282 = vpop.f32.mrf.mxu0
    %2283 = vdwg.mxu0
    %vm2284 = vcmp.ge.f32.partialorder %v2281, 0.0
    %v2285 = vmul.f32 %v2281, 0.01
    %v2286 = vsel %vm2284, %v2281, %v2285
    %v2287 = vlaneseq
    %v2288 = vshrl.u32 %v2287, 7
    %v2289 = vsub.s32 0, %v2288
    %v2290 = vrot.slane %v2193, %v2289
    %vm2291 = vcmask 982016
    %v2293 = vsel %vm2291, %v2286, 0
    %2295 = vmatprep.subr.mxu0 0.0
    %2296 = vmatpush1.msra.mxu0 0.0
    %2297 = vmatprep.subr.mxu0 0.0
    %2298 = vmatpush1.msra.mxu0 %v2192
    %2299 = vmatprep.subr.mxu0 0.0
    %2300 = vmatpush1.msra.mxu0 %v2191
    %2301 = vmatprep.subr.mxu0 0.0
    %2302 = vmatpush1.msra.mxu0 %v2190
    %2303 = vmatprep.subr.mxu0 0.0
    %2304 = vmatpush1.msra.mxu0 %v2189
    %2305 = vmatprep.subr.mxu0 0.0
    %2306 = vmatpush1.msra.mxu0 %v2188
    %2307 = vmatprep.subr.mxu0 0.0
    %2308 = vmatpush1.msra.mxu0 %v2187
    %2309 = vmatprep.subr.mxu0 0.0
    %2310 = vmatpush1.msra.mxu0 %v2186
    %2311 = vmatprep.subr.mxu0 0.0
    %2312 = vmatpush1.msra.mxu0 %v2185
    %2313 = vmatprep.subr.mxu0 0.0
    %2314 = vmatpush1.msra.mxu0 %v2184
    %2315 = vmatprep.subr.mxu0 0.0
    %2316 = vmatpush1.msra.mxu0 %v2183
    %2317 = vmatprep.subr.mxu0 0.0
    %2318 = vmatpush1.msra.mxu0 %v2182
    %2319 = vmatprep.subr.mxu0 0.0
    %2320 = vmatpush1.msra.mxu0 %v2181
    %2321 = vmatprep.subr.mxu0 0.0
    %2322 = vmatpush1.msra.mxu0 %v2180
    %2323 = vmatprep.subr.mxu0 0.0
    %2324 = vmatpush1.msra.mxu0 %v2179
    %2325 = vmatprep.subr.mxu0 0.0
    %2326 = vmatpush1.msra.mxu0 %v2178
    %2327 = vmatprep.subr.mxu0 0.0
    %2328 = vmatpush2.msra.mxu0 0.0
    %2329 = vmatprep.subr.mxu0 0.0
    %2330 = vmatpush2.msra.mxu0 0.0
    %2331 = vmatprep.subr.mxu0 0.0
    %2332 = vmatpush2.msra.mxu0 0.0
    %2333 = vmatprep.subr.mxu0 0.0
    %2334 = vmatpush2.msra.mxu0 0.0
    %2335 = vmatprep.subr.mxu0 0.0
    %2336 = vmatpush2.msra.mxu0 0.0
    %2337 = vmatprep.subr.mxu0 0.0
    %2338 = vmatpush2.msra.mxu0 0.0
    %2339 = vmatprep.subr.mxu0 0.0
    %2340 = vmatpush2.msra.mxu0 0.0
    %2341 = vmatprep.subr.mxu0 0.0
    %2342 = vmatpush2.msra.mxu0 0.0
    %2343 = vmatprep.subr.mxu0 0.0
    %2344 = vmatpush2.msra.mxu0 0.0
    %2345 = vmatprep.subr.mxu0 0.0
    %2346 = vmatpush2.msra.mxu0 0.0
    %2347 = vmatprep.subr.mxu0 0.0
    %2348 = vmatpush2.msra.mxu0 0.0
    %2349 = vmatprep.subr.mxu0 0.0
    %2350 = vmatpush2.msra.mxu0 0.0
    %2351 = vmatprep.subr.mxu0 0.0
    %2352 = vmatpush2.msra.mxu0 0.0
    %2353 = vmatprep.subr.mxu0 0.0
    %2354 = vmatpush2.msra.mxu0 0.0
    %2355 = vmatprep.subr.mxu0 0.0
    %2356 = vmatpush2.msra.mxu0 0.0
    %2357 = vmatprep.subr.mxu0 0.0
    %2358 = vmatpush2.msra.mxu0 0.0
    %2359 = vmatprep.mubr.f32.mxu0 0.0
    %2360 = vmatmul.mubr.f32.gmra.mxu0 %v2293
    %v2361 = vpop.f32.mrf.mxu0
    %v2362 = vadd.f32 %v2290, %v2361
    %v2363 = vpop.f32.mrf.mxu0
    %2364 = vdwg.mxu0
    %vm2365 = vcmp.ge.f32.partialorder %v2362, 0.0
    %v2366 = vmul.f32 %v2362, 0.01
    %v2367 = vsel %vm2365, %v2362, %v2366
    %v2368 = vlaneseq
    %v2369 = vshrl.u32 %v2368, 7
    %v2370 = vsub.s32 0, %v2369
    %v2371 = vrot.slane %v2204, %v2370
    %vm2372 = vcmask 654336
    %v2374 = vsel %vm2372, %v2367, 0
    %2376 = vmatprep.subr.mxu0 0.0
    %2377 = vmatpush1.msra.mxu0 0.0
    %2378 = vmatprep.subr.mxu0 0.0
    %2379 = vmatpush1.msra.mxu0 0.0
    %2380 = vmatprep.subr.mxu0 0.0
    %2381 = vmatpush1.msra.mxu0 0.0
    %2382 = vmatprep.subr.mxu0 0.0
    %2383 = vmatpush1.msra.mxu0 0.0
    %2384 = vmatprep.subr.mxu0 0.0
    %2385 = vmatpush1.msra.mxu0 0.0
    %2386 = vmatprep.subr.mxu0 0.0
    %2387 = vmatpush1.msra.mxu0 0.0
    %2388 = vmatprep.subr.mxu0 0.0
    %2389 = vmatpush1.msra.mxu0 %v2203
    %2390 = vmatprep.subr.mxu0 0.0
    %2391 = vmatpush1.msra.mxu0 %v2202
    %2392 = vmatprep.subr.mxu0 0.0
    %2393 = vmatpush1.msra.mxu0 %v2201
    %2394 = vmatprep.subr.mxu0 0.0
    %2395 = vmatpush1.msra.mxu0 %v2200
    %2396 = vmatprep.subr.mxu0 0.0
    %2397 = vmatpush1.msra.mxu0 %v2199
    %2398 = vmatprep.subr.mxu0 0.0
    %2399 = vmatpush1.msra.mxu0 %v2198
    %2400 = vmatprep.subr.mxu0 0.0
    %2401 = vmatpush1.msra.mxu0 %v2197
    %2402 = vmatprep.subr.mxu0 0.0
    %2403 = vmatpush1.msra.mxu0 %v2196
    %2404 = vmatprep.subr.mxu0 0.0
    %2405 = vmatpush1.msra.mxu0 %v2195
    %2406 = vmatprep.subr.mxu0 0.0
    %2407 = vmatpush1.msra.mxu0 %v2194
    %2408 = vmatprep.subr.mxu0 0.0
    %2409 = vmatpush2.msra.mxu0 0.0
    %2410 = vmatprep.subr.mxu0 0.0
    %2411 = vmatpush2.msra.mxu0 0.0
    %2412 = vmatprep.subr.mxu0 0.0
    %2413 = vmatpush2.msra.mxu0 0.0
    %2414 = vmatprep.subr.mxu0 0.0
    %2415 = vmatpush2.msra.mxu0 0.0
    %2416 = vmatprep.subr.mxu0 0.0
    %2417 = vmatpush2.msra.mxu0 0.0
    %2418 = vmatprep.subr.mxu0 0.0
    %2419 = vmatpush2.msra.mxu0 0.0
    %2420 = vmatprep.subr.mxu0 0.0
    %2421 = vmatpush2.msra.mxu0 0.0
    %2422 = vmatprep.subr.mxu0 0.0
    %2423 = vmatpush2.msra.mxu0 0.0
    %2424 = vmatprep.subr.mxu0 0.0
    %2425 = vmatpush2.msra.mxu0 0.0
    %2426 = vmatprep.subr.mxu0 0.0
    %2427 = vmatpush2.msra.mxu0 0.0
    %2428 = vmatprep.subr.mxu0 0.0
    %2429 = vmatpush2.msra.mxu0 0.0
    %2430 = vmatprep.subr.mxu0 0.0
    %2431 = vmatpush2.msra.mxu0 0.0
    %2432 = vmatprep.subr.mxu0 0.0
    %2433 = vmatpush2.msra.mxu0 0.0
    %2434 = vmatprep.subr.mxu0 0.0
    %2435 = vmatpush2.msra.mxu0 0.0
    %2436 = vmatprep.subr.mxu0 0.0
    %2437 = vmatpush2.msra.mxu0 0.0
    %2438 = vmatprep.subr.mxu0 0.0
    %2439 = vmatpush2.msra.mxu0 0.0
    %2440 = vmatprep.mubr.f32.mxu0 0.0
    %2441 = vmatmul.mubr.f32.gmra.mxu0 %v2374
    %v2442 = vpop.f32.mrf.mxu0
    %v2443 = vadd.f32 %v2371, %v2442
    %v2444 = vpop.f32.mrf.mxu0
    %2445 = vdwg.mxu0
    %vm2446 = vcmask 34816
    %2447 = vst.msk [vmem:[#allocation10] sm:$0x7] %vm2446, %v2443
    // Predicated region
    $region34: #{tpu_custom_call.1} parent=1 // pred_check
      _
    $region35: #{tpu_custom_call.1} parent=1 // pred_check_branch
      %2449 = sbr.rel (0) target = $region37
    $region36: #{tpu_custom_call.1} parent=1 // pred_region
      %s2451 = ssub.s32 64, 64
      %2452 = vsyncadd [#allocation6], %s2451
      %s2454 = sshll.u32 [#allocation10], 4
      %s2455 = int_to_ptr.vmem [resolvable:$true] %s2454
      %2457 = dma.vmem_to_hbm [thread:$0]  %s2455, 64, %s6, [#allocation6]
    $region37: #{tpu_custom_call.1} parent=1 // pred_fallthru
      _
    // Predicated region
    $region38: #{tpu_custom_call.1} parent=1 // pred_check
      _
    $region39: #{tpu_custom_call.1} parent=1 // pred_check_branch
      %2459 = sbr.rel (0) target = $region41
    $region40: #{tpu_custom_call.1} parent=1 // pred_region
      %2460 = dma.done [#allocation6], 64
    $region41: #{tpu_custom_call.1} parent=1 // pred_fallthru
      _
    %2461 = vsyncpa [#allocation5], 1
    %2462 = vsyncpa [#allocation8], 1
    %2463 = vsyncpa [#allocation6], 1

</llo_original>
